<compile_context>
chip_gen: v7x
topology: tpu7x:2x2x1
jax: 0.10.0
libtpu: 0.0.40
codegen_flags: <defaults>
</compile_context>

<pallas_src>
import functools

import jax
import jax.numpy as jnp
from jax.experimental import pallas as pl
from jax.experimental.pallas import tpu as pltpu


# ----------------------- generation-aware tiling limits ----------------------

@functools.lru_cache(maxsize=None)
def _limits():
    """(vmem_limit_bytes, max_row_tile), chosen per TPU generation."""
    try:
        vmem_phys = int(pltpu.get_tpu_info().vmem_capacity_bytes)
    except Exception:                       # no query available -> be conservative
        vmem_phys = 64 * 1024 * 1024
    if vmem_phys >= 96 * 1024 * 1024:       # v5e / v6e: 128 MiB physical VMEM
        return 100 * 1024 * 1024, 1024
    return 48 * 1024 * 1024, 512            # v7x: 64 MiB physical VMEM


def _row_tile(m, max_tile):
    """Multiple-of-8 row tile <= max_tile, aiming for >= 4 grid steps."""
    if m <= 8:
        return m
    t = ((pl.cdiv(m, 4) + 7) // 8) * 8
    return int(max(8, min(max_tile, t)))


def _compiler_params():
    vmem_limit, _ = _limits()
    return pltpu.CompilerParams(dimension_semantics=("parallel",),
                                vmem_limit_bytes=vmem_limit)


# ------------------------------ in-kernel helpers ----------------------------

def _layernorm(x, g_ref, b_ref, eps=1e-5):
    """LayerNorm over the last axis of f32 x; gamma/beta are (1, D) refs."""
    mu = jnp.mean(x, axis=-1, keepdims=True)
    var = jnp.mean(jnp.square(x - mu), axis=-1, keepdims=True)
    xn = (x - mu) * jax.lax.rsqrt(var + eps)
    return xn * g_ref[...].astype(jnp.float32) + b_ref[...].astype(jnp.float32)


def _gelu(x):
    # TODO(synk): PyTorch nn.GELU() defaults to exact erf; tanh approximation here.
    return 0.5 * x * (1.0 + jnp.tanh(0.7978845608028654
                                     * (x + 0.044715 * x * x * x)))


def _swap_leading(x3):
    """(a, b, d) -> (b, a, d), keeping the minor (lane) dim fixed."""
    if hasattr(pltpu, "einshape"):
        return pltpu.einshape("abd->bad", x3)   # lane-layout-aware transpose
    return jnp.swapaxes(x3, 0, 1)


def _mha(q, k, v, heads, dim_head):
    """Multi-head softmax attention on lane-dense (Nq, H*Dh)/(Nk, H*Dh) slabs.

    Heads are moved to a leading (batch) axis and all heads run through one
    batched MXU einsum pair — no per-head lane slices, no lane concatenate.
    The softmax scale is already folded into q (via the q-projection weights).
    """
    nq, nk = q.shape[0], k.shape[0]
    qh = _swap_leading(q.reshape(nq, heads, dim_head))      # (H, Nq, Dh)
    kh = _swap_leading(k.reshape(nk, heads, dim_head))      # (H, Nk, Dh)
    vh = _swap_leading(v.reshape(nk, heads, dim_head))      # (H, Nk, Dh)
    s = jnp.einsum("hqd,hkd->hqk", qh, kh,
                   preferred_element_type=jnp.float32)      # (H, Nq, Nk)
    m = jnp.max(s, axis=-1, keepdims=True)
    p = jnp.exp(s - m)
    l = jnp.sum(p, axis=-1, keepdims=True)
    p = p * pl.reciprocal(l, approx=True)                   # EUP, not VALU divide
    o = jnp.einsum("hqk,hkd->hqd", p, vh,
                   preferred_element_type=jnp.float32)      # (H, Nq, Dh)
    return _swap_leading(o).reshape(nq, heads * dim_head)   # (Nq, H*Dh) lane-dense


# --------------------------------- kernels -----------------------------------

def _self_attn_kernel(x_ref, g_ref, b_ref, wqkv_ref, wo_ref, bo_ref, o_ref,
                      *, heads, dim_head):
    """LN -> QKV proj -> MHA -> out proj -> +bias -> +residual, fully fused."""
    # TODO(synk): for long sequences add a KV-tile grid axis with flash-style
    # online softmax (m/l/acc scratch + pl.when init/finalize).
    x = x_ref[0].astype(jnp.float32)                        # (N, D)
    xn = _layernorm(x, g_ref, b_ref).astype(wqkv_ref.dtype)
    q = jnp.dot(xn, wqkv_ref[0], preferred_element_type=jnp.float32)
    k = jnp.dot(xn, wqkv_ref[1], preferred_element_type=jnp.float32)
    v = jnp.dot(xn, wqkv_ref[2], preferred_element_type=jnp.float32)
    att = _mha(q, k, v, heads, dim_head)                    # (N, inner) f32
    out = jnp.dot(att.astype(wo_ref.dtype), wo_ref[...],
                  preferred_element_type=jnp.float32)
    out = out + bo_ref[...].astype(jnp.float32) + x         # +bias, +residual
    o_ref[0] = out.astype(o_ref.dtype)


def _cross_attn_kernel(q1_ref, kv_ref, gq_ref, bq_ref, gkv_ref, bkv_ref,
                       wq_ref, wkv_ref, wo_ref, bo_ref, o_ref,
                       *, heads, dim_head):
    """LN(q)/LN(kv) -> Q/KV proj -> cross MHA -> out proj -> +bias -> +res."""
    xq = q1_ref[0].astype(jnp.float32)                      # (Nq, D)
    xkv = kv_ref[0].astype(jnp.float32)                     # (Nk, D)
    qn = _layernorm(xq, gq_ref, bq_ref).astype(wq_ref.dtype)
    kvn = _layernorm(xkv, gkv_ref, bkv_ref).astype(wkv_ref.dtype)
    q = jnp.dot(qn, wq_ref[...], preferred_element_type=jnp.float32)
    k = jnp.dot(kvn, wkv_ref[0], preferred_element_type=jnp.float32)
    v = jnp.dot(kvn, wkv_ref[1], preferred_element_type=jnp.float32)
    att = _mha(q, k, v, heads, dim_head)                    # (Nq, inner) f32
    out = jnp.dot(att.astype(wo_ref.dtype), wo_ref[...],
                  preferred_element_type=jnp.float32)
    out = out + bo_ref[...].astype(jnp.float32) + xq        # +bias, +residual
    o_ref[0] = out.astype(o_ref.dtype)


def _ff_kernel(x_ref, g_ref, b_ref, w1_ref, b1_ref, w2_ref, b2_ref, o_ref):
    """LN -> W1+b1 -> GELU -> W2+b2 -> +residual; hidden stays in VMEM."""
    x = x_ref[...].astype(jnp.float32)                      # (rt, D)
    xn = _layernorm(x, g_ref, b_ref).astype(w1_ref.dtype)
    h = jnp.dot(xn, w1_ref[...], preferred_element_type=jnp.float32)
    h = _gelu(h + b1_ref[...].astype(jnp.float32))
    out = jnp.dot(h.astype(w2_ref.dtype), w2_ref[...],
                  preferred_element_type=jnp.float32)
    out = out + b2_ref[...].astype(jnp.float32) + x
    o_ref[...] = out.astype(o_ref.dtype)


# --------------------------------- wrappers -----------------------------------

def self_attn_block(x, p, heads, dim_head):
    """PreNorm(Attention)(x) + x; one fused pallas_call, grid over batch."""
    B, N, D = x.shape
    inner = heads * dim_head
    return pl.pallas_call(
        functools.partial(_self_attn_kernel, heads=heads, dim_head=dim_head),
        out_shape=jax.ShapeDtypeStruct((B, N, D), x.dtype),
        grid=(B,),
        in_specs=[pl.BlockSpec((1, N, D), lambda b: (b, 0, 0)),
                  pl.BlockSpec((1, D), lambda b: (0, 0)),
                  pl.BlockSpec((1, D), lambda b: (0, 0)),
                  pl.BlockSpec((3, D, inner), lambda b: (0, 0, 0)),
                  pl.BlockSpec((inner, D), lambda b: (0, 0)),
                  pl.BlockSpec((1, D), lambda b: (0, 0))],
        out_specs=pl.BlockSpec((1, N, D), lambda b: (b, 0, 0)),
        compiler_params=_compiler_params(),
    )(x, p['ln_g'], p['ln_b'], p['w_qkv3'], p['w_out'], p['b_out'])


def cross_attn_block(q1, kv, p, heads, dim_head):
    """Cross_Attention(q1, kv) + q1; one fused pallas_call, grid over batch."""
    B, Nq, D = q1.shape
    Nk = kv.shape[1]
    inner = heads * dim_head
    return pl.pallas_call(
        functools.partial(_cross_attn_kernel, heads=heads, dim_head=dim_head),
        out_shape=jax.ShapeDtypeStruct((B, Nq, D), q1.dtype),
        grid=(B,),
        in_specs=[pl.BlockSpec((1, Nq, D), lambda b: (b, 0, 0)),
                  pl.BlockSpec((1, Nk, D), lambda b: (b, 0, 0)),
                  pl.BlockSpec((1, D), lambda b: (0, 0)),
                  pl.BlockSpec((1, D), lambda b: (0, 0)),
                  pl.BlockSpec((1, D), lambda b: (0, 0)),
                  pl.BlockSpec((1, D), lambda b: (0, 0)),
                  pl.BlockSpec((D, inner), lambda b: (0, 0)),
                  pl.BlockSpec((2, D, inner), lambda b: (0, 0, 0)),
                  pl.BlockSpec((inner, D), lambda b: (0, 0)),
                  pl.BlockSpec((1, D), lambda b: (0, 0))],
        out_specs=pl.BlockSpec((1, Nq, D), lambda b: (b, 0, 0)),
        compiler_params=_compiler_params(),
    )(q1, kv, p['ln_q_g'], p['ln_q_b'], p['ln_kv_g'], p['ln_kv_b'],
      p['w_q'], p['w_kv2'], p['w_out'], p['b_out'])


def ff_block(x, p):
    """PreNorm(FeedForward)(x) + x; one fused, row-tiled pallas_call."""
    # TODO(synk): at realistic dims (D>=1024, mlp_dim>=4096) single-buffer the
    # constant weight blocks (pipeline_mode=pl.Buffered(1)) and/or tile the
    # contraction with an f32 VMEM accumulator to stay under v7x's 64 MiB VMEM.
    B, N, D = x.shape
    M = B * N
    mlp = p['w1'].shape[1]
    _, max_tile = _limits()
    rt = _row_tile(M, max_tile)
    out = pl.pallas_call(
        _ff_kernel,
        out_shape=jax.ShapeDtypeStruct((M, D), x.dtype),
        grid=(pl.cdiv(M, rt),),
        in_specs=[pl.BlockSpec((rt, D), lambda i: (i, 0)),
                  pl.BlockSpec((1, D), lambda i: (0, 0)),
                  pl.BlockSpec((1, D), lambda i: (0, 0)),
                  pl.BlockSpec((D, mlp), lambda i: (0, 0)),
                  pl.BlockSpec((1, mlp), lambda i: (0, 0)),
                  pl.BlockSpec((mlp, D), lambda i: (0, 0)),
                  pl.BlockSpec((1, D), lambda i: (0, 0))],
        out_specs=pl.BlockSpec((rt, D), lambda i: (i, 0)),
        compiler_params=_compiler_params(),
    )(x.reshape(M, D), p['ln_g'], p['ln_b'], p['w1'], p['b1'], p['w2'], p['b2'])
    return out.reshape(B, N, D)


# -------------------------------- model glue ----------------------------------

def cross_transformer(q1, kv, params, *, heads, dim_head):
    """Forward pass of Cross_Transformer (dropout p=0.0 -> identity)."""
    kv = kv + params['pos_embedding']                      # (1, words, dim) broadcasts
    for lp in params['layers']:
        # kwargs name='yuanbeiming', name_didi='chendiancheng' are ignored.
        kv = self_attn_block(kv, lp['attn'], heads, dim_head)         # attn(kv)+kv
        kv = ff_block(kv, lp['ff_1'])                                  # ff_1(kv)+kv
        q1 = cross_attn_block(q1, kv, lp['c_attn'], heads, dim_head)   # c_attn+q1
        q1 = ff_block(q1, lp['ff'])                                    # ff(q1)+q1
    return q1


# -------------------------------- parameters ----------------------------------

def init_params(key, words, dim, depth, heads, dim_head, mlp_dim):
    """Random parameters in a PyTorch-like layout (packed qkv/kv, 1-D biases)."""
    inner = heads * dim_head
    cnt = [0]

    def nk():
        cnt[0] += 1
        return jax.random.fold_in(key, cnt[0])

    def w(shape):
        return jax.random.normal(nk(), shape, jnp.float32) * 0.02

    ones = lambda: jnp.ones((dim,), jnp.float32)
    zeros = lambda n=dim: jnp.zeros((n,), jnp.float32)

    params = {'pos_embedding': jax.random.normal(nk(), (1, words, dim),
                                                 jnp.float32)}
    layers = []
    for _ in range(depth):
        layers.append({
            'attn': {'ln_g': ones(), 'ln_b': zeros(),
                     'w_qkv': w((dim, 3 * inner)),
                     'w_out': w((inner, dim)), 'b_out': zeros()},
            'ff_1': {'ln_g': ones(), 'ln_b': zeros(),
                     'w1': w((dim, mlp_dim)), 'b1': zeros(mlp_dim),
                     'w2': w((mlp_dim, dim)), 'b2': zeros()},
            'c_attn': {'ln_q_g': ones(), 'ln_q_b': zeros(),
                       'ln_kv_g': ones(), 'ln_kv_b': zeros(),
                       'w_q': w((dim, inner)), 'w_kv': w((dim, 2 * inner)),
                       'w_out': w((inner, dim)), 'b_out': zeros()},
            'ff': {'ln_g': ones(), 'ln_b': zeros(),
                   'w1': w((dim, mlp_dim)), 'b1': zeros(mlp_dim),
                   'w2': w((mlp_dim, dim)), 'b2': zeros()},
        })
    params['layers'] = layers
    return params


def prepare_params(params, heads, dim_head):
    """One-time offline re-layout for the kernels:
       * softmax scale folded into the q-projection weights (zero runtime cost),
       * packed qkv / kv weights split along a LEADING axis (free ref views in
         the kernel, never mid-vreg lane slices),
       * 1-D LN / bias params reshaped to (1, D) rows."""
    scale = dim_head ** -0.5
    row = lambda v: v.reshape(1, -1)

    def prep_ff(f):
        return {'ln_g': row(f['ln_g']), 'ln_b': row(f['ln_b']),
                'w1': f['w1'], 'b1': row(f['b1']),
                'w2': f['w2'], 'b2': row(f['b2'])}

    out = {'pos_embedding': params['pos_embedding'], 'layers': []}
    for lp in params['layers']:
        a, c = lp['attn'], lp['c_attn']
        wq, wk, wv = jnp.split(a['w_qkv'], 3, axis=1)
        wck, wcv = jnp.split(c['w_kv'], 2, axis=1)
        out['layers'].append({
            'attn': {'ln_g': row(a['ln_g']), 'ln_b': row(a['ln_b']),
                     'w_qkv3': jnp.stack([wq * scale, wk, wv], axis=0),
                     'w_out': a['w_out'], 'b_out': row(a['b_out'])},
            'ff_1': prep_ff(lp['ff_1']),
            'c_attn': {'ln_q_g': row(c['ln_q_g']), 'ln_q_b': row(c['ln_q_b']),
                       'ln_kv_g': row(c['ln_kv_g']), 'ln_kv_b': row(c['ln_kv_b']),
                       'w_q': c['w_q'] * scale,
                       'w_kv2': jnp.stack([wck, wcv], axis=0),
                       'w_out': c['w_out'], 'b_out': row(c['b_out'])},
            'ff': prep_ff(lp['ff']),
        })
    return out


# ----------------------------------- main --------------------------------------

if __name__ == "__main__":
    key = jax.random.PRNGKey(0)
    B, words, dim, depth, heads, dim_head, mlp_dim = 2, 8, 32, 2, 4, 8, 64
    nq = 8                                     # query sequence length

    k_q, k_kv, k_p = jax.random.split(key, 3)
    q_1 = jax.random.normal(k_q, (B, nq, dim), jnp.float32)
    kv = jax.random.normal(k_kv, (B, words, dim), jnp.float32)

    raw_params = init_params(k_p, words, dim, depth, heads, dim_head, mlp_dim)
    params = prepare_params(raw_params, heads, dim_head)   # offline re-layout

    run = jax.jit(functools.partial(cross_transformer,
                                    heads=heads, dim_head=dim_head))
    out = run(q_1, kv, params)
    jax.block_until_ready(out)
    assert out.shape == (B, nq, dim)
    print("KERNEL_OK")
</pallas_src>

<mosaic_0001>
module attributes {stable_mosaic.version = 11 : i64} {
  func.func @_ff_kernel(%arg0: i32, %arg1: memref<8x32xf32, #tpu.memory_space<vmem>>, %arg2: memref<1x32xf32, #tpu.memory_space<vmem>>, %arg3: memref<1x32xf32, #tpu.memory_space<vmem>>, %arg4: memref<32x64xf32, #tpu.memory_space<vmem>>, %arg5: memref<1x64xf32, #tpu.memory_space<vmem>>, %arg6: memref<64x32xf32, #tpu.memory_space<vmem>>, %arg7: memref<1x32xf32, #tpu.memory_space<vmem>>, %arg8: memref<8x32xf32, #tpu.memory_space<vmem>>) attributes {dimension_semantics = [#tpu.dimension_semantics<parallel>], iteration_bounds = array<i64: 2>, scalar_prefetch = 0 : i64, scratch_operands = 0 : i64, tpu.core_type = #tpu.core_type<tc>, window_params = [{transform_indices = @transform_0, window_bounds = array<i64: 8, 32>}, {pipeline_mode = #tpu.pipeline_mode<synchronous>, transform_indices = @transform_1, window_bounds = array<i64: 1, 32>}, {pipeline_mode = #tpu.pipeline_mode<synchronous>, transform_indices = @transform_2, window_bounds = array<i64: 1, 32>}, {pipeline_mode = #tpu.pipeline_mode<synchronous>, transform_indices = @transform_3, window_bounds = array<i64: 32, 64>}, {pipeline_mode = #tpu.pipeline_mode<synchronous>, transform_indices = @transform_4, window_bounds = array<i64: 1, 64>}, {pipeline_mode = #tpu.pipeline_mode<synchronous>, transform_indices = @transform_5, window_bounds = array<i64: 64, 32>}, {pipeline_mode = #tpu.pipeline_mode<synchronous>, transform_indices = @transform_6, window_bounds = array<i64: 1, 32>}, {transform_indices = @transform_7, window_bounds = array<i64: 8, 32>}]} {
    %c0 = arith.constant 0 : index
    %c0_0 = arith.constant 0 : index
    %0 = vector.load %arg1[%c0, %c0_0] : memref<8x32xf32, #tpu.memory_space<vmem>>, vector<8x32xf32>
    %cst = arith.constant dense<0.000000e+00> : vector<8xf32>
    %1 = vector.multi_reduction <add>, %0, %cst [1] : vector<8x32xf32> to vector<8xf32>
    %2 = vector.shape_cast %1 : vector<8xf32> to vector<8x1xf32>
    %cst_1 = arith.constant 3.200000e+01 : f32
    %3 = vector.broadcast %cst_1 : f32 to vector<8x1xf32>
    %4 = arith.divf %2, %3 : vector<8x1xf32>
    %5 = vector.broadcast %4 : vector<8x1xf32> to vector<8x32xf32>
    %6 = arith.subf %0, %5 : vector<8x32xf32>
    %7 = arith.mulf %6, %6 : vector<8x32xf32>
    %cst_2 = arith.constant dense<0.000000e+00> : vector<8xf32>
    %8 = vector.multi_reduction <add>, %7, %cst_2 [1] : vector<8x32xf32> to vector<8xf32>
    %9 = vector.shape_cast %8 : vector<8xf32> to vector<8x1xf32>
    %cst_3 = arith.constant 3.200000e+01 : f32
    %10 = vector.broadcast %cst_3 : f32 to vector<8x1xf32>
    %11 = arith.divf %9, %10 : vector<8x1xf32>
    %12 = vector.broadcast %4 : vector<8x1xf32> to vector<8x32xf32>
    %13 = arith.subf %0, %12 : vector<8x32xf32>
    %cst_4 = arith.constant 9.99999974E-6 : f32
    %14 = vector.broadcast %cst_4 : f32 to vector<8x1xf32>
    %15 = arith.addf %11, %14 : vector<8x1xf32>
    %16 = math.rsqrt %15 : vector<8x1xf32>
    %17 = vector.broadcast %16 : vector<8x1xf32> to vector<8x32xf32>
    %18 = arith.mulf %13, %17 : vector<8x32xf32>
    %c0_5 = arith.constant 0 : index
    %c0_6 = arith.constant 0 : index
    %19 = vector.load %arg2[%c0_5, %c0_6] : memref<1x32xf32, #tpu.memory_space<vmem>>, vector<1x32xf32>
    %20 = vector.broadcast %19 : vector<1x32xf32> to vector<8x32xf32>
    %21 = arith.mulf %18, %20 : vector<8x32xf32>
    %c0_7 = arith.constant 0 : index
    %c0_8 = arith.constant 0 : index
    %22 = vector.load %arg3[%c0_7, %c0_8] : memref<1x32xf32, #tpu.memory_space<vmem>>, vector<1x32xf32>
    %23 = vector.broadcast %22 : vector<1x32xf32> to vector<8x32xf32>
    %24 = arith.addf %21, %23 : vector<8x32xf32>
    %c0_9 = arith.constant 0 : index
    %c0_10 = arith.constant 0 : index
    %25 = vector.load %arg4[%c0_9, %c0_10] : memref<32x64xf32, #tpu.memory_space<vmem>>, vector<32x64xf32>
    %cst_11 = arith.constant dense<0.000000e+00> : vector<8x64xf32>
    %26 = tpu.matmul %24, %25, %cst_11 {dimension_numbers = #tpu.dot_dimension_numbers<[1], [0], [0], [1], [0, 0, 1, 1], [], []>} : vector<8x32xf32>, vector<32x64xf32>, vector<8x64xf32> -> vector<8x64xf32>
    %c0_12 = arith.constant 0 : index
    %c0_13 = arith.constant 0 : index
    %27 = vector.load %arg5[%c0_12, %c0_13] : memref<1x64xf32, #tpu.memory_space<vmem>>, vector<1x64xf32>
    %28 = vector.broadcast %27 : vector<1x64xf32> to vector<8x64xf32>
    %29 = arith.addf %26, %28 : vector<8x64xf32>
    %cst_14 = arith.constant 5.000000e-01 : f32
    %30 = vector.broadcast %cst_14 : f32 to vector<8x64xf32>
    %31 = arith.mulf %30, %29 : vector<8x64xf32>
    %cst_15 = arith.constant 4.471500e-02 : f32
    %32 = vector.broadcast %cst_15 : f32 to vector<8x64xf32>
    %33 = arith.mulf %32, %29 : vector<8x64xf32>
    %34 = arith.mulf %33, %29 : vector<8x64xf32>
    %35 = arith.mulf %34, %29 : vector<8x64xf32>
    %36 = arith.addf %29, %35 : vector<8x64xf32>
    %cst_16 = arith.constant 0.797884583 : f32
    %37 = vector.broadcast %cst_16 : f32 to vector<8x64xf32>
    %38 = arith.mulf %37, %36 : vector<8x64xf32>
    %39 = math.tanh %38 : vector<8x64xf32>
    %cst_17 = arith.constant 1.000000e+00 : f32
    %40 = vector.broadcast %cst_17 : f32 to vector<8x64xf32>
    %41 = arith.addf %40, %39 : vector<8x64xf32>
    %42 = arith.mulf %31, %41 : vector<8x64xf32>
    %c0_18 = arith.constant 0 : index
    %c0_19 = arith.constant 0 : index
    %43 = vector.load %arg6[%c0_18, %c0_19] : memref<64x32xf32, #tpu.memory_space<vmem>>, vector<64x32xf32>
    %cst_20 = arith.constant dense<0.000000e+00> : vector<8x32xf32>
    %44 = tpu.matmul %42, %43, %cst_20 {dimension_numbers = #tpu.dot_dimension_numbers<[1], [0], [0], [1], [0, 0, 1, 1], [], []>} : vector<8x64xf32>, vector<64x32xf32>, vector<8x32xf32> -> vector<8x32xf32>
    %c0_21 = arith.constant 0 : index
    %c0_22 = arith.constant 0 : index
    %45 = vector.load %arg7[%c0_21, %c0_22] : memref<1x32xf32, #tpu.memory_space<vmem>>, vector<1x32xf32>
    %46 = vector.broadcast %45 : vector<1x32xf32> to vector<8x32xf32>
    %47 = arith.addf %44, %46 : vector<8x32xf32>
    %48 = arith.addf %47, %0 : vector<8x32xf32>
    %c0_23 = arith.constant 0 : index
    %c0_24 = arith.constant 0 : index
    %49 = vector.load %arg8[%c0_23, %c0_24] : memref<8x32xf32, #tpu.memory_space<vmem>>, vector<8x32xf32>
    tpu.vector_store %arg8[%c0_23, %c0_24], %48 {strides = array<i32>} : memref<8x32xf32, #tpu.memory_space<vmem>>, vector<8x32xf32>,
    return
  }
  func.func @transform_0(%arg0: i32) -> (i32, i32) {
    %c0_i32 = arith.constant 0 : i32
    %c0_i32_0 = arith.constant 0 : i32
    return %arg0, %c0_i32 : i32, i32
  }
  func.func @transform_1(%arg0: i32) -> (i32, i32) {
    %c0_i32 = arith.constant 0 : i32
    %c0_i32_0 = arith.constant 0 : i32
    %c0_i32_1 = arith.constant 0 : i32
    return %c0_i32, %c0_i32_0 : i32, i32
  }
  func.func @transform_2(%arg0: i32) -> (i32, i32) {
    %c0_i32 = arith.constant 0 : i32
    %c0_i32_0 = arith.constant 0 : i32
    %c0_i32_1 = arith.constant 0 : i32
    return %c0_i32, %c0_i32_0 : i32, i32
  }
  func.func @transform_3(%arg0: i32) -> (i32, i32) {
    %c0_i32 = arith.constant 0 : i32
    %c0_i32_0 = arith.constant 0 : i32
    %c0_i32_1 = arith.constant 0 : i32
    return %c0_i32, %c0_i32_0 : i32, i32
  }
  func.func @transform_4(%arg0: i32) -> (i32, i32) {
    %c0_i32 = arith.constant 0 : i32
    %c0_i32_0 = arith.constant 0 : i32
    %c0_i32_1 = arith.constant 0 : i32
    return %c0_i32, %c0_i32_0 : i32, i32
  }
  func.func @transform_5(%arg0: i32) -> (i32, i32) {
    %c0_i32 = arith.constant 0 : i32
    %c0_i32_0 = arith.constant 0 : i32
    %c0_i32_1 = arith.constant 0 : i32
    return %c0_i32, %c0_i32_0 : i32, i32
  }
  func.func @transform_6(%arg0: i32) -> (i32, i32) {
    %c0_i32 = arith.constant 0 : i32
    %c0_i32_0 = arith.constant 0 : i32
    %c0_i32_1 = arith.constant 0 : i32
    return %c0_i32, %c0_i32_0 : i32, i32
  }
  func.func @transform_7(%arg0: i32) -> (i32, i32) {
    %c0_i32 = arith.constant 0 : i32
    %c0_i32_0 = arith.constant 0 : i32
    return %arg0, %c0_i32 : i32, i32
  }
}

module attributes {stable_mosaic.version = 11 : i64} {
  func.func @_self_attn_kernel(%arg0: i32, %arg1: memref<1x8x32xf32, #tpu.memory_space<vmem>>, %arg2: memref<1x32xf32, #tpu.memory_space<vmem>>, %arg3: memref<1x32xf32, #tpu.memory_space<vmem>>, %arg4: memref<3x32x32xf32, #tpu.memory_space<vmem>>, %arg5: memref<32x32xf32, #tpu.memory_space<vmem>>, %arg6: memref<1x32xf32, #tpu.memory_space<vmem>>, %arg7: memref<1x8x32xf32, #tpu.memory_space<vmem>>) attributes {dimension_semantics = [#tpu.dimension_semantics<parallel>], iteration_bounds = array<i64: 2>, scalar_prefetch = 0 : i64, scratch_operands = 0 : i64, tpu.core_type = #tpu.core_type<tc>, window_params = [{transform_indices = @transform_0, window_bounds = array<i64: 1, 8, 32>}, {pipeline_mode = #tpu.pipeline_mode<synchronous>, transform_indices = @transform_1, window_bounds = array<i64: 1, 32>}, {pipeline_mode = #tpu.pipeline_mode<synchronous>, transform_indices = @transform_2, window_bounds = array<i64: 1, 32>}, {pipeline_mode = #tpu.pipeline_mode<synchronous>, transform_indices = @transform_3, window_bounds = array<i64: 3, 32, 32>}, {pipeline_mode = #tpu.pipeline_mode<synchronous>, transform_indices = @transform_4, window_bounds = array<i64: 32, 32>}, {pipeline_mode = #tpu.pipeline_mode<synchronous>, transform_indices = @transform_5, window_bounds = array<i64: 1, 32>}, {transform_indices = @transform_6, window_bounds = array<i64: 1, 8, 32>}]} {
    %c0 = arith.constant 0 : index
    %c0_0 = arith.constant 0 : index
    %c0_1 = arith.constant 0 : index
    %0 = vector.load %arg1[%c0, %c0_0, %c0_1] : memref<1x8x32xf32, #tpu.memory_space<vmem>>, vector<1x8x32xf32>
    %1 = vector.shape_cast %0 : vector<1x8x32xf32> to vector<8x32xf32>
    %cst = arith.constant dense<0.000000e+00> : vector<8xf32>
    %2 = vector.multi_reduction <add>, %1, %cst [1] : vector<8x32xf32> to vector<8xf32>
    %3 = vector.shape_cast %2 : vector<8xf32> to vector<8x1xf32>
    %cst_2 = arith.constant 3.200000e+01 : f32
    %4 = vector.broadcast %cst_2 : f32 to vector<8x1xf32>
    %5 = arith.divf %3, %4 : vector<8x1xf32>
    %6 = vector.broadcast %5 : vector<8x1xf32> to vector<8x32xf32>
    %7 = arith.subf %1, %6 : vector<8x32xf32>
    %8 = arith.mulf %7, %7 : vector<8x32xf32>
    %cst_3 = arith.constant dense<0.000000e+00> : vector<8xf32>
    %9 = vector.multi_reduction <add>, %8, %cst_3 [1] : vector<8x32xf32> to vector<8xf32>
    %10 = vector.shape_cast %9 : vector<8xf32> to vector<8x1xf32>
    %cst_4 = arith.constant 3.200000e+01 : f32
    %11 = vector.broadcast %cst_4 : f32 to vector<8x1xf32>
    %12 = arith.divf %10, %11 : vector<8x1xf32>
    %13 = vector.broadcast %5 : vector<8x1xf32> to vector<8x32xf32>
    %14 = arith.subf %1, %13 : vector<8x32xf32>
    %cst_5 = arith.constant 9.99999974E-6 : f32
    %15 = vector.broadcast %cst_5 : f32 to vector<8x1xf32>
    %16 = arith.addf %12, %15 : vector<8x1xf32>
    %17 = math.rsqrt %16 : vector<8x1xf32>
    %18 = vector.broadcast %17 : vector<8x1xf32> to vector<8x32xf32>
    %19 = arith.mulf %14, %18 : vector<8x32xf32>
    %c0_6 = arith.constant 0 : index
    %c0_7 = arith.constant 0 : index
    %20 = vector.load %arg2[%c0_6, %c0_7] : memref<1x32xf32, #tpu.memory_space<vmem>>, vector<1x32xf32>
    %21 = vector.broadcast %20 : vector<1x32xf32> to vector<8x32xf32>
    %22 = arith.mulf %19, %21 : vector<8x32xf32>
    %c0_8 = arith.constant 0 : index
    %c0_9 = arith.constant 0 : index
    %23 = vector.load %arg3[%c0_8, %c0_9] : memref<1x32xf32, #tpu.memory_space<vmem>>, vector<1x32xf32>
    %24 = vector.broadcast %23 : vector<1x32xf32> to vector<8x32xf32>
    %25 = arith.addf %22, %24 : vector<8x32xf32>
    %c0_10 = arith.constant 0 : index
    %c0_11 = arith.constant 0 : index
    %c0_12 = arith.constant 0 : index
    %26 = vector.load %arg4[%c0_10, %c0_11, %c0_12] : memref<3x32x32xf32, #tpu.memory_space<vmem>>, vector<1x32x32xf32>
    %27 = vector.shape_cast %26 : vector<1x32x32xf32> to vector<32x32xf32>
    %cst_13 = arith.constant dense<0.000000e+00> : vector<8x32xf32>
    %28 = tpu.matmul %25, %27, %cst_13 {dimension_numbers = #tpu.dot_dimension_numbers<[1], [0], [0], [1], [0, 0, 1, 1], [], []>} : vector<8x32xf32>, vector<32x32xf32>, vector<8x32xf32> -> vector<8x32xf32>
    %c1 = arith.constant 1 : index
    %c0_14 = arith.constant 0 : index
    %c0_15 = arith.constant 0 : index
    %29 = vector.load %arg4[%c1, %c0_14, %c0_15] : memref<3x32x32xf32, #tpu.memory_space<vmem>>, vector<1x32x32xf32>
    %30 = vector.shape_cast %29 : vector<1x32x32xf32> to vector<32x32xf32>
    %cst_16 = arith.constant dense<0.000000e+00> : vector<8x32xf32>
    %31 = tpu.matmul %25, %30, %cst_16 {dimension_numbers = #tpu.dot_dimension_numbers<[1], [0], [0], [1], [0, 0, 1, 1], [], []>} : vector<8x32xf32>, vector<32x32xf32>, vector<8x32xf32> -> vector<8x32xf32>
    %c2 = arith.constant 2 : index
    %c0_17 = arith.constant 0 : index
    %c0_18 = arith.constant 0 : index
    %32 = vector.load %arg4[%c2, %c0_17, %c0_18] : memref<3x32x32xf32, #tpu.memory_space<vmem>>, vector<1x32x32xf32>
    %33 = vector.shape_cast %32 : vector<1x32x32xf32> to vector<32x32xf32>
    %cst_19 = arith.constant dense<0.000000e+00> : vector<8x32xf32>
    %34 = tpu.matmul %25, %33, %cst_19 {dimension_numbers = #tpu.dot_dimension_numbers<[1], [0], [0], [1], [0, 0, 1, 1], [], []>} : vector<8x32xf32>, vector<32x32xf32>, vector<8x32xf32> -> vector<8x32xf32>
    %35 = vector.shape_cast %28 : vector<8x32xf32> to vector<8x4x8xf32>
    %36 = tpu.transpose %35, [1, 0, 2] : vector<8x4x8xf32> -> vector<4x8x8xf32>
    %37 = vector.shape_cast %31 : vector<8x32xf32> to vector<8x4x8xf32>
    %38 = tpu.transpose %37, [1, 0, 2] : vector<8x4x8xf32> -> vector<4x8x8xf32>
    %39 = vector.shape_cast %34 : vector<8x32xf32> to vector<8x4x8xf32>
    %40 = tpu.transpose %39, [1, 0, 2] : vector<8x4x8xf32> -> vector<4x8x8xf32>
    "tpu.trace_start"() <{level = 10 : i32, message = "hqd,hkd->hqk"}> : () -> ()
    %cst_20 = arith.constant dense<0.000000e+00> : vector<4x8x8xf32>
    %41 = tpu.matmul %36, %38, %cst_20 {dimension_numbers = #tpu.dot_dimension_numbers<[2], [2], [1], [1], [0, 0, 0, 1, 1, 1], [0], [0]>} : vector<4x8x8xf32>, vector<4x8x8xf32>, vector<4x8x8xf32> -> vector<4x8x8xf32>
    "tpu.trace_stop"() : () -> ()
    %cst_21 = arith.constant dense<0xFF800000> : vector<4x8xf32>
    %42 = vector.multi_reduction <maximumf>, %41, %cst_21 [2] : vector<4x8x8xf32> to vector<4x8xf32>
    %43 = vector.shape_cast %42 : vector<4x8xf32> to vector<4x8x1xf32>
    %44 = vector.broadcast %43 : vector<4x8x1xf32> to vector<4x8x8xf32>
    %45 = arith.subf %41, %44 : vector<4x8x8xf32>
    %46 = math.exp %45 : vector<4x8x8xf32>
    %cst_22 = arith.constant dense<0.000000e+00> : vector<4x8xf32>
    %47 = vector.multi_reduction <add>, %46, %cst_22 [2] : vector<4x8x8xf32> to vector<4x8xf32>
    %48 = vector.shape_cast %47 : vector<4x8xf32> to vector<4x8x1xf32>
    %49 = tpu.reciprocal %48 {approx = true} : vector<4x8x1xf32> -> vector<4x8x1xf32>
    %50 = vector.broadcast %49 : vector<4x8x1xf32> to vector<4x8x8xf32>
    %51 = arith.mulf %46, %50 : vector<4x8x8xf32>
    "tpu.trace_start"() <{level = 10 : i32, message = "hqk,hkd->hqd"}> : () -> ()
    %cst_23 = arith.constant dense<0.000000e+00> : vector<4x8x8xf32>
    %52 = tpu.matmul %51, %40, %cst_23 {dimension_numbers = #tpu.dot_dimension_numbers<[2], [1], [1], [2], [0, 0, 0, 1, 1, 2], [0], [0]>} : vector<4x8x8xf32>, vector<4x8x8xf32>, vector<4x8x8xf32> -> vector<4x8x8xf32>
    "tpu.trace_stop"() : () -> ()
    %53 = tpu.transpose %52, [1, 0, 2] : vector<4x8x8xf32> -> vector<8x4x8xf32>
    %54 = vector.shape_cast %53 : vector<8x4x8xf32> to vector<8x32xf32>
    %c0_24 = arith.constant 0 : index
    %c0_25 = arith.constant 0 : index
    %55 = vector.load %arg5[%c0_24, %c0_25] : memref<32x32xf32, #tpu.memory_space<vmem>>, vector<32x32xf32>
    %cst_26 = arith.constant dense<0.000000e+00> : vector<8x32xf32>
    %56 = tpu.matmul %54, %55, %cst_26 {dimension_numbers = #tpu.dot_dimension_numbers<[1], [0], [0], [1], [0, 0, 1, 1], [], []>} : vector<8x32xf32>, vector<32x32xf32>, vector<8x32xf32> -> vector<8x32xf32>
    %c0_27 = arith.constant 0 : index
    %c0_28 = arith.constant 0 : index
    %57 = vector.load %arg6[%c0_27, %c0_28] : memref<1x32xf32, #tpu.memory_space<vmem>>, vector<1x32xf32>
    %58 = vector.broadcast %57 : vector<1x32xf32> to vector<8x32xf32>
    %59 = arith.addf %56, %58 : vector<8x32xf32>
    %60 = arith.addf %59, %1 : vector<8x32xf32>
    %c0_29 = arith.constant 0 : index
    %c0_30 = arith.constant 0 : index
    %c0_31 = arith.constant 0 : index
    %61 = vector.load %arg7[%c0_29, %c0_30, %c0_31] : memref<1x8x32xf32, #tpu.memory_space<vmem>>, vector<1x8x32xf32>
    %62 = vector.shape_cast %61 : vector<1x8x32xf32> to vector<8x32xf32>
    %63 = vector.shape_cast %60 : vector<8x32xf32> to vector<1x8x32xf32>
    tpu.vector_store %arg7[%c0_29, %c0_30, %c0_31], %63 {strides = array<i32>} : memref<1x8x32xf32, #tpu.memory_space<vmem>>, vector<1x8x32xf32>,
    return
  }
  func.func @transform_0(%arg0: i32) -> (i32, i32, i32) {
    %c0_i32 = arith.constant 0 : i32
    %c0_i32_0 = arith.constant 0 : i32
    %c0_i32_1 = arith.constant 0 : i32
    return %arg0, %c0_i32, %c0_i32_0 : i32, i32, i32
  }
  func.func @transform_1(%arg0: i32) -> (i32, i32) {
    %c0_i32 = arith.constant 0 : i32
    %c0_i32_0 = arith.constant 0 : i32
    %c0_i32_1 = arith.constant 0 : i32
    return %c0_i32, %c0_i32_0 : i32, i32
  }
  func.func @transform_2(%arg0: i32) -> (i32, i32) {
    %c0_i32 = arith.constant 0 : i32
    %c0_i32_0 = arith.constant 0 : i32
    %c0_i32_1 = arith.constant 0 : i32
    return %c0_i32, %c0_i32_0 : i32, i32
  }
  func.func @transform_3(%arg0: i32) -> (i32, i32, i32) {
    %c0_i32 = arith.constant 0 : i32
    %c0_i32_0 = arith.constant 0 : i32
    %c0_i32_1 = arith.constant 0 : i32
    %c0_i32_2 = arith.constant 0 : i32
    return %c0_i32, %c0_i32_0, %c0_i32_1 : i32, i32, i32
  }
  func.func @transform_4(%arg0: i32) -> (i32, i32) {
    %c0_i32 = arith.constant 0 : i32
    %c0_i32_0 = arith.constant 0 : i32
    %c0_i32_1 = arith.constant 0 : i32
    return %c0_i32, %c0_i32_0 : i32, i32
  }
  func.func @transform_5(%arg0: i32) -> (i32, i32) {
    %c0_i32 = arith.constant 0 : i32
    %c0_i32_0 = arith.constant 0 : i32
    %c0_i32_1 = arith.constant 0 : i32
    return %c0_i32, %c0_i32_0 : i32, i32
  }
  func.func @transform_6(%arg0: i32) -> (i32, i32, i32) {
    %c0_i32 = arith.constant 0 : i32
    %c0_i32_0 = arith.constant 0 : i32
    %c0_i32_1 = arith.constant 0 : i32
    return %arg0, %c0_i32, %c0_i32_0 : i32, i32, i32
  }
}

module attributes {stable_mosaic.version = 11 : i64} {
  func.func @_ff_kernel(%arg0: i32, %arg1: memref<8x32xf32, #tpu.memory_space<vmem>>, %arg2: memref<1x32xf32, #tpu.memory_space<vmem>>, %arg3: memref<1x32xf32, #tpu.memory_space<vmem>>, %arg4: memref<32x64xf32, #tpu.memory_space<vmem>>, %arg5: memref<1x64xf32, #tpu.memory_space<vmem>>, %arg6: memref<64x32xf32, #tpu.memory_space<vmem>>, %arg7: memref<1x32xf32, #tpu.memory_space<vmem>>, %arg8: memref<8x32xf32, #tpu.memory_space<vmem>>) attributes {dimension_semantics = [#tpu.dimension_semantics<parallel>], iteration_bounds = array<i64: 2>, scalar_prefetch = 0 : i64, scratch_operands = 0 : i64, tpu.core_type = #tpu.core_type<tc>, window_params = [{transform_indices = @transform_0, window_bounds = array<i64: 8, 32>}, {pipeline_mode = #tpu.pipeline_mode<synchronous>, transform_indices = @transform_1, window_bounds = array<i64: 1, 32>}, {pipeline_mode = #tpu.pipeline_mode<synchronous>, transform_indices = @transform_2, window_bounds = array<i64: 1, 32>}, {pipeline_mode = #tpu.pipeline_mode<synchronous>, transform_indices = @transform_3, window_bounds = array<i64: 32, 64>}, {pipeline_mode = #tpu.pipeline_mode<synchronous>, transform_indices = @transform_4, window_bounds = array<i64: 1, 64>}, {pipeline_mode = #tpu.pipeline_mode<synchronous>, transform_indices = @transform_5, window_bounds = array<i64: 64, 32>}, {pipeline_mode = #tpu.pipeline_mode<synchronous>, transform_indices = @transform_6, window_bounds = array<i64: 1, 32>}, {transform_indices = @transform_7, window_bounds = array<i64: 8, 32>}]} {
    %c0 = arith.constant 0 : index
    %c0_0 = arith.constant 0 : index
    %0 = vector.load %arg1[%c0, %c0_0] : memref<8x32xf32, #tpu.memory_space<vmem>>, vector<8x32xf32>
    %cst = arith.constant dense<0.000000e+00> : vector<8xf32>
    %1 = vector.multi_reduction <add>, %0, %cst [1] : vector<8x32xf32> to vector<8xf32>
    %2 = vector.shape_cast %1 : vector<8xf32> to vector<8x1xf32>
    %cst_1 = arith.constant 3.200000e+01 : f32
    %3 = vector.broadcast %cst_1 : f32 to vector<8x1xf32>
    %4 = arith.divf %2, %3 : vector<8x1xf32>
    %5 = vector.broadcast %4 : vector<8x1xf32> to vector<8x32xf32>
    %6 = arith.subf %0, %5 : vector<8x32xf32>
    %7 = arith.mulf %6, %6 : vector<8x32xf32>
    %cst_2 = arith.constant dense<0.000000e+00> : vector<8xf32>
    %8 = vector.multi_reduction <add>, %7, %cst_2 [1] : vector<8x32xf32> to vector<8xf32>
    %9 = vector.shape_cast %8 : vector<8xf32> to vector<8x1xf32>
    %cst_3 = arith.constant 3.200000e+01 : f32
    %10 = vector.broadcast %cst_3 : f32 to vector<8x1xf32>
    %11 = arith.divf %9, %10 : vector<8x1xf32>
    %12 = vector.broadcast %4 : vector<8x1xf32> to vector<8x32xf32>
    %13 = arith.subf %0, %12 : vector<8x32xf32>
    %cst_4 = arith.constant 9.99999974E-6 : f32
    %14 = vector.broadcast %cst_4 : f32 to vector<8x1xf32>
    %15 = arith.addf %11, %14 : vector<8x1xf32>
    %16 = math.rsqrt %15 : vector<8x1xf32>
    %17 = vector.broadcast %16 : vector<8x1xf32> to vector<8x32xf32>
    %18 = arith.mulf %13, %17 : vector<8x32xf32>
    %c0_5 = arith.constant 0 : index
    %c0_6 = arith.constant 0 : index
    %19 = vector.load %arg2[%c0_5, %c0_6] : memref<1x32xf32, #tpu.memory_space<vmem>>, vector<1x32xf32>
    %20 = vector.broadcast %19 : vector<1x32xf32> to vector<8x32xf32>
    %21 = arith.mulf %18, %20 : vector<8x32xf32>
    %c0_7 = arith.constant 0 : index
    %c0_8 = arith.constant 0 : index
    %22 = vector.load %arg3[%c0_7, %c0_8] : memref<1x32xf32, #tpu.memory_space<vmem>>, vector<1x32xf32>
    %23 = vector.broadcast %22 : vector<1x32xf32> to vector<8x32xf32>
    %24 = arith.addf %21, %23 : vector<8x32xf32>
    %c0_9 = arith.constant 0 : index
    %c0_10 = arith.constant 0 : index
    %25 = vector.load %arg4[%c0_9, %c0_10] : memref<32x64xf32, #tpu.memory_space<vmem>>, vector<32x64xf32>
    %cst_11 = arith.constant dense<0.000000e+00> : vector<8x64xf32>
    %26 = tpu.matmul %24, %25, %cst_11 {dimension_numbers = #tpu.dot_dimension_numbers<[1], [0], [0], [1], [0, 0, 1, 1], [], []>} : vector<8x32xf32>, vector<32x64xf32>, vector<8x64xf32> -> vector<8x64xf32>
    %c0_12 = arith.constant 0 : index
    %c0_13 = arith.constant 0 : index
    %27 = vector.load %arg5[%c0_12, %c0_13] : memref<1x64xf32, #tpu.memory_space<vmem>>, vector<1x64xf32>
    %28 = vector.broadcast %27 : vector<1x64xf32> to vector<8x64xf32>
    %29 = arith.addf %26, %28 : vector<8x64xf32>
    %cst_14 = arith.constant 5.000000e-01 : f32
    %30 = vector.broadcast %cst_14 : f32 to vector<8x64xf32>
    %31 = arith.mulf %30, %29 : vector<8x64xf32>
    %cst_15 = arith.constant 4.471500e-02 : f32
    %32 = vector.broadcast %cst_15 : f32 to vector<8x64xf32>
    %33 = arith.mulf %32, %29 : vector<8x64xf32>
    %34 = arith.mulf %33, %29 : vector<8x64xf32>
    %35 = arith.mulf %34, %29 : vector<8x64xf32>
    %36 = arith.addf %29, %35 : vector<8x64xf32>
    %cst_16 = arith.constant 0.797884583 : f32
    %37 = vector.broadcast %cst_16 : f32 to vector<8x64xf32>
    %38 = arith.mulf %37, %36 : vector<8x64xf32>
    %39 = math.tanh %38 : vector<8x64xf32>
    %cst_17 = arith.constant 1.000000e+00 : f32
    %40 = vector.broadcast %cst_17 : f32 to vector<8x64xf32>
    %41 = arith.addf %40, %39 : vector<8x64xf32>
    %42 = arith.mulf %31, %41 : vector<8x64xf32>
    %c0_18 = arith.constant 0 : index
    %c0_19 = arith.constant 0 : index
    %43 = vector.load %arg6[%c0_18, %c0_19] : memref<64x32xf32, #tpu.memory_space<vmem>>, vector<64x32xf32>
    %cst_20 = arith.constant dense<0.000000e+00> : vector<8x32xf32>
    %44 = tpu.matmul %42, %43, %cst_20 {dimension_numbers = #tpu.dot_dimension_numbers<[1], [0], [0], [1], [0, 0, 1, 1], [], []>} : vector<8x64xf32>, vector<64x32xf32>, vector<8x32xf32> -> vector<8x32xf32>
    %c0_21 = arith.constant 0 : index
    %c0_22 = arith.constant 0 : index
    %45 = vector.load %arg7[%c0_21, %c0_22] : memref<1x32xf32, #tpu.memory_space<vmem>>, vector<1x32xf32>
    %46 = vector.broadcast %45 : vector<1x32xf32> to vector<8x32xf32>
    %47 = arith.addf %44, %46 : vector<8x32xf32>
    %48 = arith.addf %47, %0 : vector<8x32xf32>
    %c0_23 = arith.constant 0 : index
    %c0_24 = arith.constant 0 : index
    %49 = vector.load %arg8[%c0_23, %c0_24] : memref<8x32xf32, #tpu.memory_space<vmem>>, vector<8x32xf32>
    tpu.vector_store %arg8[%c0_23, %c0_24], %48 {strides = array<i32>} : memref<8x32xf32, #tpu.memory_space<vmem>>, vector<8x32xf32>,
    return
  }
  func.func @transform_0(%arg0: i32) -> (i32, i32) {
    %c0_i32 = arith.constant 0 : i32
    %c0_i32_0 = arith.constant 0 : i32
    return %arg0, %c0_i32 : i32, i32
  }
  func.func @transform_1(%arg0: i32) -> (i32, i32) {
    %c0_i32 = arith.constant 0 : i32
    %c0_i32_0 = arith.constant 0 : i32
    %c0_i32_1 = arith.constant 0 : i32
    return %c0_i32, %c0_i32_0 : i32, i32
  }
  func.func @transform_2(%arg0: i32) -> (i32, i32) {
    %c0_i32 = arith.constant 0 : i32
    %c0_i32_0 = arith.constant 0 : i32
    %c0_i32_1 = arith.constant 0 : i32
    return %c0_i32, %c0_i32_0 : i32, i32
  }
  func.func @transform_3(%arg0: i32) -> (i32, i32) {
    %c0_i32 = arith.constant 0 : i32
    %c0_i32_0 = arith.constant 0 : i32
    %c0_i32_1 = arith.constant 0 : i32
    return %c0_i32, %c0_i32_0 : i32, i32
  }
  func.func @transform_4(%arg0: i32) -> (i32, i32) {
    %c0_i32 = arith.constant 0 : i32
    %c0_i32_0 = arith.constant 0 : i32
    %c0_i32_1 = arith.constant 0 : i32
    return %c0_i32, %c0_i32_0 : i32, i32
  }
  func.func @transform_5(%arg0: i32) -> (i32, i32) {
    %c0_i32 = arith.constant 0 : i32
    %c0_i32_0 = arith.constant 0 : i32
    %c0_i32_1 = arith.constant 0 : i32
    return %c0_i32, %c0_i32_0 : i32, i32
  }
  func.func @transform_6(%arg0: i32) -> (i32, i32) {
    %c0_i32 = arith.constant 0 : i32
    %c0_i32_0 = arith.constant 0 : i32
    %c0_i32_1 = arith.constant 0 : i32
    return %c0_i32, %c0_i32_0 : i32, i32
  }
  func.func @transform_7(%arg0: i32) -> (i32, i32) {
    %c0_i32 = arith.constant 0 : i32
    %c0_i32_0 = arith.constant 0 : i32
    return %arg0, %c0_i32 : i32, i32
  }
}

module attributes {stable_mosaic.version = 11 : i64} {
  func.func @_cross_attn_kernel(%arg0: i32, %arg1: memref<1x8x32xf32, #tpu.memory_space<vmem>>, %arg2: memref<1x8x32xf32, #tpu.memory_space<vmem>>, %arg3: memref<1x32xf32, #tpu.memory_space<vmem>>, %arg4: memref<1x32xf32, #tpu.memory_space<vmem>>, %arg5: memref<1x32xf32, #tpu.memory_space<vmem>>, %arg6: memref<1x32xf32, #tpu.memory_space<vmem>>, %arg7: memref<32x32xf32, #tpu.memory_space<vmem>>, %arg8: memref<2x32x32xf32, #tpu.memory_space<vmem>>, %arg9: memref<32x32xf32, #tpu.memory_space<vmem>>, %arg10: memref<1x32xf32, #tpu.memory_space<vmem>>, %arg11: memref<1x8x32xf32, #tpu.memory_space<vmem>>) attributes {dimension_semantics = [#tpu.dimension_semantics<parallel>], iteration_bounds = array<i64: 2>, scalar_prefetch = 0 : i64, scratch_operands = 0 : i64, tpu.core_type = #tpu.core_type<tc>, window_params = [{transform_indices = @transform_0, window_bounds = array<i64: 1, 8, 32>}, {transform_indices = @transform_1, window_bounds = array<i64: 1, 8, 32>}, {pipeline_mode = #tpu.pipeline_mode<synchronous>, transform_indices = @transform_2, window_bounds = array<i64: 1, 32>}, {pipeline_mode = #tpu.pipeline_mode<synchronous>, transform_indices = @transform_3, window_bounds = array<i64: 1, 32>}, {pipeline_mode = #tpu.pipeline_mode<synchronous>, transform_indices = @transform_4, window_bounds = array<i64: 1, 32>}, {pipeline_mode = #tpu.pipeline_mode<synchronous>, transform_indices = @transform_5, window_bounds = array<i64: 1, 32>}, {pipeline_mode = #tpu.pipeline_mode<synchronous>, transform_indices = @transform_6, window_bounds = array<i64: 32, 32>}, {pipeline_mode = #tpu.pipeline_mode<synchronous>, transform_indices = @transform_7, window_bounds = array<i64: 2, 32, 32>}, {pipeline_mode = #tpu.pipeline_mode<synchronous>, transform_indices = @transform_8, window_bounds = array<i64: 32, 32>}, {pipeline_mode = #tpu.pipeline_mode<synchronous>, transform_indices = @transform_9, window_bounds = array<i64: 1, 32>}, {transform_indices = @transform_10, window_bounds = array<i64: 1, 8, 32>}]} {
    %c0 = arith.constant 0 : index
    %c0_0 = arith.constant 0 : index
    %c0_1 = arith.constant 0 : index
    %0 = vector.load %arg1[%c0, %c0_0, %c0_1] : memref<1x8x32xf32, #tpu.memory_space<vmem>>, vector<1x8x32xf32>
    %1 = vector.shape_cast %0 : vector<1x8x32xf32> to vector<8x32xf32>
    %c0_2 = arith.constant 0 : index
    %c0_3 = arith.constant 0 : index
    %c0_4 = arith.constant 0 : index
    %2 = vector.load %arg2[%c0_2, %c0_3, %c0_4] : memref<1x8x32xf32, #tpu.memory_space<vmem>>, vector<1x8x32xf32>
    %3 = vector.shape_cast %2 : vector<1x8x32xf32> to vector<8x32xf32>
    %cst = arith.constant dense<0.000000e+00> : vector<8xf32>
    %4 = vector.multi_reduction <add>, %1, %cst [1] : vector<8x32xf32> to vector<8xf32>
    %5 = vector.shape_cast %4 : vector<8xf32> to vector<8x1xf32>
    %cst_5 = arith.constant 3.200000e+01 : f32
    %6 = vector.broadcast %cst_5 : f32 to vector<8x1xf32>
    %7 = arith.divf %5, %6 : vector<8x1xf32>
    %8 = vector.broadcast %7 : vector<8x1xf32> to vector<8x32xf32>
    %9 = arith.subf %1, %8 : vector<8x32xf32>
    %10 = arith.mulf %9, %9 : vector<8x32xf32>
    %cst_6 = arith.constant dense<0.000000e+00> : vector<8xf32>
    %11 = vector.multi_reduction <add>, %10, %cst_6 [1] : vector<8x32xf32> to vector<8xf32>
    %12 = vector.shape_cast %11 : vector<8xf32> to vector<8x1xf32>
    %cst_7 = arith.constant 3.200000e+01 : f32
    %13 = vector.broadcast %cst_7 : f32 to vector<8x1xf32>
    %14 = arith.divf %12, %13 : vector<8x1xf32>
    %15 = vector.broadcast %7 : vector<8x1xf32> to vector<8x32xf32>
    %16 = arith.subf %1, %15 : vector<8x32xf32>
    %cst_8 = arith.constant 9.99999974E-6 : f32
    %17 = vector.broadcast %cst_8 : f32 to vector<8x1xf32>
    %18 = arith.addf %14, %17 : vector<8x1xf32>
    %19 = math.rsqrt %18 : vector<8x1xf32>
    %20 = vector.broadcast %19 : vector<8x1xf32> to vector<8x32xf32>
    %21 = arith.mulf %16, %20 : vector<8x32xf32>
    %c0_9 = arith.constant 0 : index
    %c0_10 = arith.constant 0 : index
    %22 = vector.load %arg3[%c0_9, %c0_10] : memref<1x32xf32, #tpu.memory_space<vmem>>, vector<1x32xf32>
    %23 = vector.broadcast %22 : vector<1x32xf32> to vector<8x32xf32>
    %24 = arith.mulf %21, %23 : vector<8x32xf32>
    %c0_11 = arith.constant 0 : index
    %c0_12 = arith.constant 0 : index
    %25 = vector.load %arg4[%c0_11, %c0_12] : memref<1x32xf32, #tpu.memory_space<vmem>>, vector<1x32xf32>
    %26 = vector.broadcast %25 : vector<1x32xf32> to vector<8x32xf32>
    %27 = arith.addf %24, %26 : vector<8x32xf32>
    %cst_13 = arith.constant dense<0.000000e+00> : vector<8xf32>
    %28 = vector.multi_reduction <add>, %3, %cst_13 [1] : vector<8x32xf32> to vector<8xf32>
    %29 = vector.shape_cast %28 : vector<8xf32> to vector<8x1xf32>
    %cst_14 = arith.constant 3.200000e+01 : f32
    %30 = vector.broadcast %cst_14 : f32 to vector<8x1xf32>
    %31 = arith.divf %29, %30 : vector<8x1xf32>
    %32 = vector.broadcast %31 : vector<8x1xf32> to vector<8x32xf32>
    %33 = arith.subf %3, %32 : vector<8x32xf32>
    %34 = arith.mulf %33, %33 : vector<8x32xf32>
    %cst_15 = arith.constant dense<0.000000e+00> : vector<8xf32>
    %35 = vector.multi_reduction <add>, %34, %cst_15 [1] : vector<8x32xf32> to vector<8xf32>
    %36 = vector.shape_cast %35 : vector<8xf32> to vector<8x1xf32>
    %cst_16 = arith.constant 3.200000e+01 : f32
    %37 = vector.broadcast %cst_16 : f32 to vector<8x1xf32>
    %38 = arith.divf %36, %37 : vector<8x1xf32>
    %39 = vector.broadcast %31 : vector<8x1xf32> to vector<8x32xf32>
    %40 = arith.subf %3, %39 : vector<8x32xf32>
    %cst_17 = arith.constant 9.99999974E-6 : f32
    %41 = vector.broadcast %cst_17 : f32 to vector<8x1xf32>
    %42 = arith.addf %38, %41 : vector<8x1xf32>
    %43 = math.rsqrt %42 : vector<8x1xf32>
    %44 = vector.broadcast %43 : vector<8x1xf32> to vector<8x32xf32>
    %45 = arith.mulf %40, %44 : vector<8x32xf32>
    %c0_18 = arith.constant 0 : index
    %c0_19 = arith.constant 0 : index
    %46 = vector.load %arg5[%c0_18, %c0_19] : memref<1x32xf32, #tpu.memory_space<vmem>>, vector<1x32xf32>
    %47 = vector.broadcast %46 : vector<1x32xf32> to vector<8x32xf32>
    %48 = arith.mulf %45, %47 : vector<8x32xf32>
    %c0_20 = arith.constant 0 : index
    %c0_21 = arith.constant 0 : index
    %49 = vector.load %arg6[%c0_20, %c0_21] : memref<1x32xf32, #tpu.memory_space<vmem>>, vector<1x32xf32>
    %50 = vector.broadcast %49 : vector<1x32xf32> to vector<8x32xf32>
    %51 = arith.addf %48, %50 : vector<8x32xf32>
    %c0_22 = arith.constant 0 : index
    %c0_23 = arith.constant 0 : index
    %52 = vector.load %arg7[%c0_22, %c0_23] : memref<32x32xf32, #tpu.memory_space<vmem>>, vector<32x32xf32>
    %cst_24 = arith.constant dense<0.000000e+00> : vector<8x32xf32>
    %53 = tpu.matmul %27, %52, %cst_24 {dimension_numbers = #tpu.dot_dimension_numbers<[1], [0], [0], [1], [0, 0, 1, 1], [], []>} : vector<8x32xf32>, vector<32x32xf32>, vector<8x32xf32> -> vector<8x32xf32>
    %c0_25 = arith.constant 0 : index
    %c0_26 = arith.constant 0 : index
    %c0_27 = arith.constant 0 : index
    %54 = vector.load %arg8[%c0_25, %c0_26, %c0_27] : memref<2x32x32xf32, #tpu.memory_space<vmem>>, vector<1x32x32xf32>
    %55 = vector.shape_cast %54 : vector<1x32x32xf32> to vector<32x32xf32>
    %cst_28 = arith.constant dense<0.000000e+00> : vector<8x32xf32>
    %56 = tpu.matmul %51, %55, %cst_28 {dimension_numbers = #tpu.dot_dimension_numbers<[1], [0], [0], [1], [0, 0, 1, 1], [], []>} : vector<8x32xf32>, vector<32x32xf32>, vector<8x32xf32> -> vector<8x32xf32>
    %c1 = arith.constant 1 : index
    %c0_29 = arith.constant 0 : index
    %c0_30 = arith.constant 0 : index
    %57 = vector.load %arg8[%c1, %c0_29, %c0_30] : memref<2x32x32xf32, #tpu.memory_space<vmem>>, vector<1x32x32xf32>
    %58 = vector.shape_cast %57 : vector<1x32x32xf32> to vector<32x32xf32>
    %cst_31 = arith.constant dense<0.000000e+00> : vector<8x32xf32>
    %59 = tpu.matmul %51, %58, %cst_31 {dimension_numbers = #tpu.dot_dimension_numbers<[1], [0], [0], [1], [0, 0, 1, 1], [], []>} : vector<8x32xf32>, vector<32x32xf32>, vector<8x32xf32> -> vector<8x32xf32>
    %60 = vector.shape_cast %53 : vector<8x32xf32> to vector<8x4x8xf32>
    %61 = tpu.transpose %60, [1, 0, 2] : vector<8x4x8xf32> -> vector<4x8x8xf32>
    %62 = vector.shape_cast %56 : vector<8x32xf32> to vector<8x4x8xf32>
    %63 = tpu.transpose %62, [1, 0, 2] : vector<8x4x8xf32> -> vector<4x8x8xf32>
    %64 = vector.shape_cast %59 : vector<8x32xf32> to vector<8x4x8xf32>
    %65 = tpu.transpose %64, [1, 0, 2] : vector<8x4x8xf32> -> vector<4x8x8xf32>
    "tpu.trace_start"() <{level = 10 : i32, message = "hqd,hkd->hqk"}> : () -> ()
    %cst_32 = arith.constant dense<0.000000e+00> : vector<4x8x8xf32>
    %66 = tpu.matmul %61, %63, %cst_32 {dimension_numbers = #tpu.dot_dimension_numbers<[2], [2], [1], [1], [0, 0, 0, 1, 1, 1], [0], [0]>} : vector<4x8x8xf32>, vector<4x8x8xf32>, vector<4x8x8xf32> -> vector<4x8x8xf32>
    "tpu.trace_stop"() : () -> ()
    %cst_33 = arith.constant dense<0xFF800000> : vector<4x8xf32>
    %67 = vector.multi_reduction <maximumf>, %66, %cst_33 [2] : vector<4x8x8xf32> to vector<4x8xf32>
    %68 = vector.shape_cast %67 : vector<4x8xf32> to vector<4x8x1xf32>
    %69 = vector.broadcast %68 : vector<4x8x1xf32> to vector<4x8x8xf32>
    %70 = arith.subf %66, %69 : vector<4x8x8xf32>
    %71 = math.exp %70 : vector<4x8x8xf32>
    %cst_34 = arith.constant dense<0.000000e+00> : vector<4x8xf32>
    %72 = vector.multi_reduction <add>, %71, %cst_34 [2] : vector<4x8x8xf32> to vector<4x8xf32>
    %73 = vector.shape_cast %72 : vector<4x8xf32> to vector<4x8x1xf32>
    %74 = tpu.reciprocal %73 {approx = true} : vector<4x8x1xf32> -> vector<4x8x1xf32>
    %75 = vector.broadcast %74 : vector<4x8x1xf32> to vector<4x8x8xf32>
    %76 = arith.mulf %71, %75 : vector<4x8x8xf32>
    "tpu.trace_start"() <{level = 10 : i32, message = "hqk,hkd->hqd"}> : () -> ()
    %cst_35 = arith.constant dense<0.000000e+00> : vector<4x8x8xf32>
    %77 = tpu.matmul %76, %65, %cst_35 {dimension_numbers = #tpu.dot_dimension_numbers<[2], [1], [1], [2], [0, 0, 0, 1, 1, 2], [0], [0]>} : vector<4x8x8xf32>, vector<4x8x8xf32>, vector<4x8x8xf32> -> vector<4x8x8xf32>
    "tpu.trace_stop"() : () -> ()
    %78 = tpu.transpose %77, [1, 0, 2] : vector<4x8x8xf32> -> vector<8x4x8xf32>
    %79 = vector.shape_cast %78 : vector<8x4x8xf32> to vector<8x32xf32>
    %c0_36 = arith.constant 0 : index
    %c0_37 = arith.constant 0 : index
    %80 = vector.load %arg9[%c0_36, %c0_37] : memref<32x32xf32, #tpu.memory_space<vmem>>, vector<32x32xf32>
    %cst_38 = arith.constant dense<0.000000e+00> : vector<8x32xf32>
    %81 = tpu.matmul %79, %80, %cst_38 {dimension_numbers = #tpu.dot_dimension_numbers<[1], [0], [0], [1], [0, 0, 1, 1], [], []>} : vector<8x32xf32>, vector<32x32xf32>, vector<8x32xf32> -> vector<8x32xf32>
    %c0_39 = arith.constant 0 : index
    %c0_40 = arith.constant 0 : index
    %82 = vector.load %arg10[%c0_39, %c0_40] : memref<1x32xf32, #tpu.memory_space<vmem>>, vector<1x32xf32>
    %83 = vector.broadcast %82 : vector<1x32xf32> to vector<8x32xf32>
    %84 = arith.addf %81, %83 : vector<8x32xf32>
    %85 = arith.addf %84, %1 : vector<8x32xf32>
    %c0_41 = arith.constant 0 : index
    %c0_42 = arith.constant 0 : index
    %c0_43 = arith.constant 0 : index
    %86 = vector.load %arg11[%c0_41, %c0_42, %c0_43] : memref<1x8x32xf32, #tpu.memory_space<vmem>>, vector<1x8x32xf32>
    %87 = vector.shape_cast %86 : vector<1x8x32xf32> to vector<8x32xf32>
    %88 = vector.shape_cast %85 : vector<8x32xf32> to vector<1x8x32xf32>
    tpu.vector_store %arg11[%c0_41, %c0_42, %c0_43], %88 {strides = array<i32>} : memref<1x8x32xf32, #tpu.memory_space<vmem>>, vector<1x8x32xf32>,
    return
  }
  func.func @transform_0(%arg0: i32) -> (i32, i32, i32) {
    %c0_i32 = arith.constant 0 : i32
    %c0_i32_0 = arith.constant 0 : i32
    %c0_i32_1 = arith.constant 0 : i32
    return %arg0, %c0_i32, %c0_i32_0 : i32, i32, i32
  }
  func.func @transform_1(%arg0: i32) -> (i32, i32, i32) {
    %c0_i32 = arith.constant 0 : i32
    %c0_i32_0 = arith.constant 0 : i32
    %c0_i32_1 = arith.constant 0 : i32
    return %arg0, %c0_i32, %c0_i32_0 : i32, i32, i32
  }
  func.func @transform_2(%arg0: i32) -> (i32, i32) {
    %c0_i32 = arith.constant 0 : i32
    %c0_i32_0 = arith.constant 0 : i32
    %c0_i32_1 = arith.constant 0 : i32
    return %c0_i32, %c0_i32_0 : i32, i32
  }
  func.func @transform_3(%arg0: i32) -> (i32, i32) {
    %c0_i32 = arith.constant 0 : i32
    %c0_i32_0 = arith.constant 0 : i32
    %c0_i32_1 = arith.constant 0 : i32
    return %c0_i32, %c0_i32_0 : i32, i32
  }
  func.func @transform_4(%arg0: i32) -> (i32, i32) {
    %c0_i32 = arith.constant 0 : i32
    %c0_i32_0 = arith.constant 0 : i32
    %c0_i32_1 = arith.constant 0 : i32
    return %c0_i32, %c0_i32_0 : i32, i32
  }
  func.func @transform_5(%arg0: i32) -> (i32, i32) {
    %c0_i32 = arith.constant 0 : i32
    %c0_i32_0 = arith.constant 0 : i32
    %c0_i32_1 = arith.constant 0 : i32
    return %c0_i32, %c0_i32_0 : i32, i32
  }
  func.func @transform_6(%arg0: i32) -> (i32, i32) {
    %c0_i32 = arith.constant 0 : i32
    %c0_i32_0 = arith.constant 0 : i32
    %c0_i32_1 = arith.constant 0 : i32
    return %c0_i32, %c0_i32_0 : i32, i32
  }
  func.func @transform_7(%arg0: i32) -> (i32, i32, i32) {
    %c0_i32 = arith.constant 0 : i32
    %c0_i32_0 = arith.constant 0 : i32
    %c0_i32_1 = arith.constant 0 : i32
    %c0_i32_2 = arith.constant 0 : i32
    return %c0_i32, %c0_i32_0, %c0_i32_1 : i32, i32, i32
  }
  func.func @transform_8(%arg0: i32) -> (i32, i32) {
    %c0_i32 = arith.constant 0 : i32
    %c0_i32_0 = arith.constant 0 : i32
    %c0_i32_1 = arith.constant 0 : i32
    return %c0_i32, %c0_i32_0 : i32, i32
  }
  func.func @transform_9(%arg0: i32) -> (i32, i32) {
    %c0_i32 = arith.constant 0 : i32
    %c0_i32_0 = arith.constant 0 : i32
    %c0_i32_1 = arith.constant 0 : i32
    return %c0_i32, %c0_i32_0 : i32, i32
  }
  func.func @transform_10(%arg0: i32) -> (i32, i32, i32) {
    %c0_i32 = arith.constant 0 : i32
    %c0_i32_0 = arith.constant 0 : i32
    %c0_i32_1 = arith.constant 0 : i32
    return %arg0, %c0_i32, %c0_i32_0 : i32, i32, i32
  }
}

</mosaic_0001>

<llo_original>
// kernel: cross_transformer.9
$region0: #{cross_transformer.9}
  #allocation0 [shape = 'u32[]', space=smem, size = 0x4, offset = 0x4, fixed_abs, tag = 'smem constant byte address 0x4 - core index']
  #allocation1 [shape = 'u32[144,128]{1,0:T(1,128)}', space=vmem, size = 0x12000, scoped, tag = 'internal scratch']
  %s0 = inlined_call_operand.vmem [shape: f32[16,32], index: 0, kind: input, shape index: {}]
  %s1 = inlined_call_operand.vmem [shape: f32[1,32], index: 1, kind: input, shape index: {}]
  %s2 = inlined_call_operand.vmem [shape: f32[1,32], index: 2, kind: input, shape index: {}]
  %s3 = inlined_call_operand.vmem [shape: f32[32,64], index: 3, kind: input, shape index: {}]
  %s4 = inlined_call_operand.vmem [shape: f32[1,64], index: 4, kind: input, shape index: {}]
  %s5 = inlined_call_operand.vmem [shape: f32[64,32], index: 5, kind: input, shape index: {}]
  %s6 = inlined_call_operand.vmem [shape: f32[1,32], index: 6, kind: input, shape index: {}]
  %s7 = inlined_call_operand.vmem [shape: f32[16,32], index: 7, kind: output, shape index: {}]
  %s8 = sld [smem:[#allocation0]]
  $region61: #{cross_transformer.9} parent=0
    _
  %s10 = ssub.s32 1, %s8
  %s11 = scalar_select 0, %s10, %s8
  loop: start=0, step=1, limit=4
  $region2: #{cross_transformer.9} parent=0 // loop_pre_header
    _
  $region3: #{cross_transformer.9} parent=0 // loop_header
    %s13 = sphi 0, %s17
    %p14 = scmp.ge.s32.totalorder %s13, 4
    %s23 = sphi 0, %s25
    %s26 = sphi 0, %s23
    %s27 = sphi 0, %s26
    %s43 = sphi 0, %s27
    %s47 = sphi 0, %s47
    %s49 = sphi 0, %s47
    %s50 = sphi 0, %s49
    %s64 = sphi 0, %s50
    %s68 = sphi 0, %s68
    %s70 = sphi 0, %s68
    %s71 = sphi 0, %s70
    %s85 = sphi 0, %s71
    %s89 = sphi 0, %s89
    %s91 = sphi 0, %s89
    %s92 = sphi 0, %s91
    %s106 = sphi 0, %s92
    %s110 = sphi 0, %s110
    %s112 = sphi 0, %s110
    %s113 = sphi 0, %s112
    %s127 = sphi 0, %s113
    %s131 = sphi 0, %s131
    %s133 = sphi 0, %s131
    %s134 = sphi 0, %s133
    %s148 = sphi 0, %s134
    %s152 = sphi 0, %s152
    %s154 = sphi 0, %s152
    %s155 = sphi 0, %s154
    %s169 = sphi 0, %s155
    %s175 = sphi 0, %s177
    %s178 = sphi 0, %s175
    %s179 = sphi 0, %s178
    %s195 = sphi 0, %s179
  $region4: #{cross_transformer.9} parent=0 // loop_header_branch
    %16 = sbr.rel (%p14) target = $region8
  $region5: #{cross_transformer.9} parent=0 // loop_body
    %s18 = ssub.s32 %s13, 1
    %s19 = ssub.s32 %s13, 2
    %s20 = sadd.s32 %s13, 1
    %s21 = ssub.s32 %s13, %s20
    %p22 = scmp.eq.s32.totalorder %s21, 0
    %s24 = sadd.s32 %s23, 1
    %s25 = scalar_select %p22, %s23, %s24
    %p28 = pneg %p22
    %p29 = scmp.eq.s32.totalorder %s13, 1
    %p30 = por %p28, %p29
    %p31 = scmp.ne.s32.totalorder %s23, %s26
    %p32 = scmp.eq.s32.totalorder %s13, 0
    %p33 = por %p31, %p32
    %p34 = scmp.ne.s32.totalorder %s23, %s26
    %p35 = scmp.eq.s32.totalorder %s18, 1
    %p36 = por %p34, %p35
    %p37 = scmp.ne.s32.totalorder %s26, %s27
    %p38 = scmp.eq.s32.totalorder %s18, 0
    %p39 = por %p37, %p38
    %p40 = scmp.ne.s32.totalorder %s26, %s27
    %p41 = scmp.eq.s32.totalorder %s19, 1
    %p42 = por %p40, %p41
    %p44 = scmp.ne.s32.totalorder %s27, %s43
    %p45 = scmp.eq.s32.totalorder %s19, 0
    %p46 = por %p44, %p45
    %s48 = sadd.s32 %s47, 1
    %p51 = scmp.eq.s32.totalorder %s13, 1
    %p52 = scmp.ne.s32.totalorder %s47, %s49
    %p53 = scmp.eq.s32.totalorder %s13, 0
    %p54 = por %p52, %p53
    %p55 = scmp.ne.s32.totalorder %s47, %s49
    %p56 = scmp.eq.s32.totalorder %s18, 1
    %p57 = por %p55, %p56
    %p58 = scmp.ne.s32.totalorder %s49, %s50
    %p59 = scmp.eq.s32.totalorder %s18, 0
    %p60 = por %p58, %p59
    %p61 = scmp.ne.s32.totalorder %s49, %s50
    %p62 = scmp.eq.s32.totalorder %s19, 1
    %p63 = por %p61, %p62
    %p65 = scmp.ne.s32.totalorder %s50, %s64
    %p66 = scmp.eq.s32.totalorder %s19, 0
    %p67 = por %p65, %p66
    %s69 = sadd.s32 %s68, 1
    %p72 = scmp.eq.s32.totalorder %s13, 1
    %p73 = scmp.ne.s32.totalorder %s68, %s70
    %p74 = scmp.eq.s32.totalorder %s13, 0
    %p75 = por %p73, %p74
    %p76 = scmp.ne.s32.totalorder %s68, %s70
    %p77 = scmp.eq.s32.totalorder %s18, 1
    %p78 = por %p76, %p77
    %p79 = scmp.ne.s32.totalorder %s70, %s71
    %p80 = scmp.eq.s32.totalorder %s18, 0
    %p81 = por %p79, %p80
    %p82 = scmp.ne.s32.totalorder %s70, %s71
    %p83 = scmp.eq.s32.totalorder %s19, 1
    %p84 = por %p82, %p83
    %p86 = scmp.ne.s32.totalorder %s71, %s85
    %p87 = scmp.eq.s32.totalorder %s19, 0
    %p88 = por %p86, %p87
    %s90 = sadd.s32 %s89, 1
    %p93 = scmp.eq.s32.totalorder %s13, 1
    %p94 = scmp.ne.s32.totalorder %s89, %s91
    %p95 = scmp.eq.s32.totalorder %s13, 0
    %p96 = por %p94, %p95
    %p97 = scmp.ne.s32.totalorder %s89, %s91
    %p98 = scmp.eq.s32.totalorder %s18, 1
    %p99 = por %p97, %p98
    %p100 = scmp.ne.s32.totalorder %s91, %s92
    %p101 = scmp.eq.s32.totalorder %s18, 0
    %p102 = por %p100, %p101
    %p103 = scmp.ne.s32.totalorder %s91, %s92
    %p104 = scmp.eq.s32.totalorder %s19, 1
    %p105 = por %p103, %p104
    %p107 = scmp.ne.s32.totalorder %s92, %s106
    %p108 = scmp.eq.s32.totalorder %s19, 0
    %p109 = por %p107, %p108
    %s111 = sadd.s32 %s110, 1
    %p114 = scmp.eq.s32.totalorder %s13, 1
    %p115 = scmp.ne.s32.totalorder %s110, %s112
    %p116 = scmp.eq.s32.totalorder %s13, 0
    %p117 = por %p115, %p116
    %p118 = scmp.ne.s32.totalorder %s110, %s112
    %p119 = scmp.eq.s32.totalorder %s18, 1
    %p120 = por %p118, %p119
    %p121 = scmp.ne.s32.totalorder %s112, %s113
    %p122 = scmp.eq.s32.totalorder %s18, 0
    %p123 = por %p121, %p122
    %p124 = scmp.ne.s32.totalorder %s112, %s113
    %p125 = scmp.eq.s32.totalorder %s19, 1
    %p126 = por %p124, %p125
    %p128 = scmp.ne.s32.totalorder %s113, %s127
    %p129 = scmp.eq.s32.totalorder %s19, 0
    %p130 = por %p128, %p129
    %s132 = sadd.s32 %s131, 1
    %p135 = scmp.eq.s32.totalorder %s13, 1
    %p136 = scmp.ne.s32.totalorder %s131, %s133
    %p137 = scmp.eq.s32.totalorder %s13, 0
    %p138 = por %p136, %p137
    %p139 = scmp.ne.s32.totalorder %s131, %s133
    %p140 = scmp.eq.s32.totalorder %s18, 1
    %p141 = por %p139, %p140
    %p142 = scmp.ne.s32.totalorder %s133, %s134
    %p143 = scmp.eq.s32.totalorder %s18, 0
    %p144 = por %p142, %p143
    %p145 = scmp.ne.s32.totalorder %s133, %s134
    %p146 = scmp.eq.s32.totalorder %s19, 1
    %p147 = por %p145, %p146
    %p149 = scmp.ne.s32.totalorder %s134, %s148
    %p150 = scmp.eq.s32.totalorder %s19, 0
    %p151 = por %p149, %p150
    %s153 = sadd.s32 %s152, 1
    %p156 = scmp.eq.s32.totalorder %s13, 1
    %p157 = scmp.ne.s32.totalorder %s152, %s154
    %p158 = scmp.eq.s32.totalorder %s13, 0
    %p159 = por %p157, %p158
    %p160 = scmp.ne.s32.totalorder %s152, %s154
    %p161 = scmp.eq.s32.totalorder %s18, 1
    %p162 = por %p160, %p161
    %p163 = scmp.ne.s32.totalorder %s154, %s155
    %p164 = scmp.eq.s32.totalorder %s18, 0
    %p165 = por %p163, %p164
    %p166 = scmp.ne.s32.totalorder %s154, %s155
    %p167 = scmp.eq.s32.totalorder %s19, 1
    %p168 = por %p166, %p167
    %p170 = scmp.ne.s32.totalorder %s155, %s169
    %p171 = scmp.eq.s32.totalorder %s19, 0
    %p172 = por %p170, %p171
    %s173 = ssub.s32 %s13, %s20
    %p174 = scmp.eq.s32.totalorder %s173, 0
    %s176 = sadd.s32 %s175, 1
    %s177 = scalar_select %p174, %s175, %s176
    %p180 = pneg %p174
    %p181 = scmp.eq.s32.totalorder %s13, 1
    %p182 = por %p180, %p181
    %p183 = scmp.ne.s32.totalorder %s175, %s178
    %p184 = scmp.eq.s32.totalorder %s13, 0
    %p185 = por %p183, %p184
    %p186 = scmp.ne.s32.totalorder %s175, %s178
    %p187 = scmp.eq.s32.totalorder %s18, 1
    %p188 = por %p186, %p187
    %p189 = scmp.ne.s32.totalorder %s178, %s179
    %p190 = scmp.eq.s32.totalorder %s18, 0
    %p191 = por %p189, %p190
    %p192 = scmp.ne.s32.totalorder %s178, %s179
    %p193 = scmp.eq.s32.totalorder %s19, 1
    %p194 = por %p192, %p193
    %p196 = scmp.ne.s32.totalorder %s179, %s195
    %p197 = scmp.eq.s32.totalorder %s19, 0
    %p198 = por %p196, %p197
    %p199 = scmp.le.s32.totalorder 1, %s13
    %p200 = scmp.lt.s32.totalorder %s13, 3
    %p201 = pnand %p199, %p200
    %p202 = pneg %p201
    // Predicated region
    $region9: #{cross_transformer.9} parent=5 // pred_check
      _
    $region10: #{cross_transformer.9} parent=5 // pred_check_branch
      %204 = sbr.rel (%p201) target = $region12
    $region11: #{cross_transformer.9} parent=5 // pred_region
      %s205 = ssub.s32 %s13, 1
      // Predicated region
      $region13: #{cross_transformer.9} parent=11 // pred_check
        %p206 = pneg %p60
      $region14: #{cross_transformer.9} parent=11 // pred_check_branch
        %208 = sbr.rel (%p206) target = $region16
      $region15: #{cross_transformer.9} parent=11 // pred_region
        _
      $region16: #{cross_transformer.9} parent=11 // pred_fallthru
        _
      // Predicated region
      $region17: #{cross_transformer.9} parent=11 // pred_check
        %p209 = pneg %p81
      $region18: #{cross_transformer.9} parent=11 // pred_check_branch
        %211 = sbr.rel (%p209) target = $region20
      $region19: #{cross_transformer.9} parent=11 // pred_region
        _
      $region20: #{cross_transformer.9} parent=11 // pred_fallthru
        _
      // Predicated region
      $region21: #{cross_transformer.9} parent=11 // pred_check
        %p212 = pneg %p102
      $region22: #{cross_transformer.9} parent=11 // pred_check_branch
        %214 = sbr.rel (%p212) target = $region24
      $region23: #{cross_transformer.9} parent=11 // pred_region
        _
      $region24: #{cross_transformer.9} parent=11 // pred_fallthru
        _
      // Predicated region
      $region25: #{cross_transformer.9} parent=11 // pred_check
        %p215 = pneg %p123
      $region26: #{cross_transformer.9} parent=11 // pred_check_branch
        %217 = sbr.rel (%p215) target = $region28
      $region27: #{cross_transformer.9} parent=11 // pred_region
        _
      $region28: #{cross_transformer.9} parent=11 // pred_fallthru
        _
      // Predicated region
      $region29: #{cross_transformer.9} parent=11 // pred_check
        %p218 = pneg %p144
      $region30: #{cross_transformer.9} parent=11 // pred_check_branch
        %220 = sbr.rel (%p218) target = $region32
      $region31: #{cross_transformer.9} parent=11 // pred_region
        _
      $region32: #{cross_transformer.9} parent=11 // pred_fallthru
        _
      // Predicated region
      $region33: #{cross_transformer.9} parent=11 // pred_check
        %p221 = pneg %p165
      $region34: #{cross_transformer.9} parent=11 // pred_check_branch
        %223 = sbr.rel (%p221) target = $region36
      $region35: #{cross_transformer.9} parent=11 // pred_region
        _
      $region36: #{cross_transformer.9} parent=11 // pred_fallthru
        _
    $region12: #{cross_transformer.9} parent=5 // pred_fallthru
      _
    %p224 = scmp.lt.s32.totalorder %s13, 2
    // Predicated region
    $region37: #{cross_transformer.9} parent=5 // pred_check
      %p225 = pneg %p224
    $region38: #{cross_transformer.9} parent=5 // pred_check_branch
      %227 = sbr.rel (%p225) target = $region40
    $region39: #{cross_transformer.9} parent=5 // pred_region
      // Predicated region
      $region41: #{cross_transformer.9} parent=39 // pred_check
        %p228 = pneg %p33
      $region42: #{cross_transformer.9} parent=39 // pred_check_branch
        %230 = sbr.rel (%p228) target = $region44
      $region43: #{cross_transformer.9} parent=39 // pred_region
        %p231 = scmp.lt.s32.totalorder %s13, 1
        %s232 = scalar_select %p231, %s13, 1
        %s233 = smul.addr %s232, 8
        %s234 = scalar_lea.vmem %s0, %s233
      $region44: #{cross_transformer.9} parent=39 // pred_fallthru
        _
    $region40: #{cross_transformer.9} parent=5 // pred_fallthru
      _
    %p235 = scmp.le.s32.totalorder 1, %s13
    %p236 = scmp.lt.s32.totalorder %s13, 3
    %p237 = pnand %p235, %p236
    %p238 = pneg %p237
    // Predicated region
    $region45: #{cross_transformer.9} parent=5 // pred_check
      _
    $region46: #{cross_transformer.9} parent=5 // pred_check_branch
      %240 = sbr.rel (%p237) target = $region48
    $region47: #{cross_transformer.9} parent=5 // pred_region
      %s241 = ssub.s32 %s13, 1
      %p242 = scmp.lt.s32.totalorder %s18, 1
      %s243 = scalar_select %p242, %s18, 1
      %s244 = smul.addr %s243, 8
      %s245 = scalar_lea.vmem %s0, %s244
      %p246 = pneg %p39
      %p247 = pneg %p36
      %p248 = pneg %p60
      %p249 = pneg %p57
      %p250 = pneg %p81
      %p251 = pneg %p78
      %p252 = pneg %p102
      %p253 = pneg %p99
      %p254 = pneg %p123
      %p255 = pneg %p120
      %p256 = pneg %p144
      %p257 = pneg %p141
      %p258 = pneg %p165
      %p259 = pneg %p162
      %p260 = pneg %p191
      %p261 = pneg %p188
      %p262 = scmp.lt.s32.totalorder %s18, 1
      %s263 = scalar_select %p262, %s18, 1
      %s264 = smul.addr %s263, 8
      %s265 = scalar_lea.vmem %s7, %s264
      %p266 = scmp.lt.s32.totalorder %s18, 1
      %s267 = scalar_select %p266, %s18, 1
      %s268 = smul.addr %s267, 8
      %s269 = scalar_lea.vmem %s0, %s268
      %p270 = scmp.lt.s32.totalorder %s18, 1
      %s271 = scalar_select %p270, %s18, 1
      %s272 = smul.addr %s271, 8
      %s273 = scalar_lea.vmem %s7, %s272
      %v274 = vld [vmem:[%s269] sm:$0xff]
      %vm275 = vcmask 261120
      %v276 = vsel %vm275, %v274, 0.0
      %277 = vadd.xlane.f32.xlu0 %v276
      %v278 = vpop.xlane.xlu0 %277
      %v279 = vrcp.pop 32.0
      %v280 = vmul.f32 %v278, %v279
      %v281 = vsub.f32 %v274, %v280
      %v282 = vmul.f32 %v281, %v281
      %v283 = vsel %vm275, %v282, 0.0
      %284 = vadd.xlane.f32.xlu0 %v283
      %v285 = vpop.xlane.xlu0 %284
      %v286 = vmul.f32 %v285, %v279
      %v287 = vadd.f32 %v286, 1e-05
      %v288 = vrsqrt.pop %v287
      %v289 = vmul.f32 %v281, %v288
      %v290 = vld [vmem:[%s1] sm:$0x1]
      %v292 = vlaneseq
      %v293 = vshrl.u32 %v292, 7
      %v294 = vsub.s32 0, %v293
      %v295 = vrot.slane %v290, %v294
      %v297 = vmul.f32 %v289, %v295
      %v298 = vld [vmem:[%s2] sm:$0x1]
      %v300 = vlaneseq
      %v301 = vshrl.u32 %v300, 7
      %v302 = vsub.s32 0, %v301
      %v303 = vrot.slane %v298, %v302
      %v305 = vadd.f32 %v297, %v303
      %v306 = vld [vmem:[%s3] sm:$0xff]
      %v307 = vld [vmem:[%s3 + $0x8] sm:$0xff]
      %v308 = vld [vmem:[%s3 + $0x10] sm:$0xff]
      %v309 = vld [vmem:[%s3 + $0x18] sm:$0xff]
      %v310 = vld [vmem:[%s4] sm:$0x1]
      %v312 = vlaneseq
      %v313 = vshrl.u32 %v312, 7
      %v314 = vsub.s32 0, %v313
      %v315 = vrot.slane %v310, %v314
      %v318 = vsel %vm275, %v305, 0
      %320 = vmatprep.subr.mxu0 0.0
      %321 = vmatpush1.msra.mxu0 %v306
      %322 = vmatprep.subr.mxu0 0.0
      %323 = vmatpush1.msra.mxu0 %v307
      %324 = vmatprep.subr.mxu0 0.0
      %325 = vmatpush1.msra.mxu0 %v308
      %326 = vmatprep.subr.mxu0 0.0
      %327 = vmatpush1.msra.mxu0 %v309
      %328 = vmatprep.subr.mxu0 0.0
      %329 = vmatpush1.msra.mxu0 0.0
      %330 = vmatprep.subr.mxu0 0.0
      %331 = vmatpush1.msra.mxu0 0.0
      %332 = vmatprep.subr.mxu0 0.0
      %333 = vmatpush1.msra.mxu0 0.0
      %334 = vmatprep.subr.mxu0 0.0
      %335 = vmatpush1.msra.mxu0 0.0
      %336 = vmatprep.subr.mxu0 0.0
      %337 = vmatpush1.msra.mxu0 0.0
      %338 = vmatprep.subr.mxu0 0.0
      %339 = vmatpush1.msra.mxu0 0.0
      %340 = vmatprep.subr.mxu0 0.0
      %341 = vmatpush1.msra.mxu0 0.0
      %342 = vmatprep.subr.mxu0 0.0
      %343 = vmatpush1.msra.mxu0 0.0
      %344 = vmatprep.subr.mxu0 0.0
      %345 = vmatpush1.msra.mxu0 0.0
      %346 = vmatprep.subr.mxu0 0.0
      %347 = vmatpush1.msra.mxu0 0.0
      %348 = vmatprep.subr.mxu0 0.0
      %349 = vmatpush1.msra.mxu0 0.0
      %350 = vmatprep.subr.mxu0 0.0
      %351 = vmatpush1.msra.mxu0 0.0
      %352 = vmatprep.subr.mxu0 0.0
      %353 = vmatpush1.msra.mxu0 0.0
      %354 = vmatprep.subr.mxu0 0.0
      %355 = vmatpush1.msra.mxu0 0.0
      %356 = vmatprep.subr.mxu0 0.0
      %357 = vmatpush1.msra.mxu0 0.0
      %358 = vmatprep.subr.mxu0 0.0
      %359 = vmatpush1.msra.mxu0 0.0
      %360 = vmatprep.subr.mxu0 0.0
      %361 = vmatpush1.msra.mxu0 0.0
      %362 = vmatprep.subr.mxu0 0.0
      %363 = vmatpush1.msra.mxu0 0.0
      %364 = vmatprep.subr.mxu0 0.0
      %365 = vmatpush1.msra.mxu0 0.0
      %366 = vmatprep.subr.mxu0 0.0
      %367 = vmatpush1.msra.mxu0 0.0
      %368 = vmatprep.subr.mxu0 0.0
      %369 = vmatpush1.msra.mxu0 0.0
      %370 = vmatprep.subr.mxu0 0.0
      %371 = vmatpush1.msra.mxu0 0.0
      %372 = vmatprep.subr.mxu0 0.0
      %373 = vmatpush1.msra.mxu0 0.0
      %374 = vmatprep.subr.mxu0 0.0
      %375 = vmatpush1.msra.mxu0 0.0
      %376 = vmatprep.subr.mxu0 0.0
      %377 = vmatpush1.msra.mxu0 0.0
      %378 = vmatprep.subr.mxu0 0.0
      %379 = vmatpush1.msra.mxu0 0.0
      %380 = vmatprep.subr.mxu0 0.0
      %381 = vmatpush1.msra.mxu0 0.0
      %382 = vmatprep.subr.mxu0 0.0
      %383 = vmatpush1.msra.mxu0 0.0
      %384 = vmatprep.mubr.f32.mxu0 0.0
      %385 = vmatmul.mubr.f32.gmra.mrb[0].mxu0 %v318
      %v386 = vpop.f32.mrb[0].mxu0
      %v387 = vadd.f32 %v315, %v386
      %v388 = vpop.f32.mrb[0].mxu0
      %389 = vdwg.mxu0
      %v390 = vmul.f32 %v387, 0.5
      %v391 = vmul.f32 %v387, 0.044715
      %v392 = vmul.f32 %v391, %v387
      %v393 = vmul.f32 %v392, %v387
      %v394 = vadd.f32 %v387, %v393
      %v395 = vmul.f32 %v394, 0.7978846
      %v396 = vtanh.pop %v395
      %v397 = vadd.f32 %v396, 1.0
      %v398 = vmul.f32 %v390, %v397
      %v399 = vld [vmem:[%s5] sm:$0xff]
      %v400 = vld [vmem:[%s5 + $0x8] sm:$0xff]
      %v401 = vld [vmem:[%s5 + $0x10] sm:$0xff]
      %v402 = vld [vmem:[%s5 + $0x18] sm:$0xff]
      %v403 = vld [vmem:[%s5 + $0x20] sm:$0xff]
      %v404 = vld [vmem:[%s5 + $0x28] sm:$0xff]
      %v405 = vld [vmem:[%s5 + $0x30] sm:$0xff]
      %v406 = vld [vmem:[%s5 + $0x38] sm:$0xff]
      %v407 = vld [vmem:[%s6] sm:$0x1]
      %v409 = vlaneseq
      %v410 = vshrl.u32 %v409, 7
      %v411 = vsub.s32 0, %v410
      %v412 = vrot.slane %v407, %v411
      %vm414 = vcmask 523264
      %v416 = vsel %vm414, %v398, 0
      %418 = vmatprep.subr.mxu0 0.0
      %419 = vmatpush1.msra.mxu0 %v399
      %420 = vmatprep.subr.mxu0 0.0
      %421 = vmatpush1.msra.mxu0 %v400
      %422 = vmatprep.subr.mxu0 0.0
      %423 = vmatpush1.msra.mxu0 %v401
      %424 = vmatprep.subr.mxu0 0.0
      %425 = vmatpush1.msra.mxu0 %v402
      %426 = vmatprep.subr.mxu0 0.0
      %427 = vmatpush1.msra.mxu0 %v403
      %428 = vmatprep.subr.mxu0 0.0
      %429 = vmatpush1.msra.mxu0 %v404
      %430 = vmatprep.subr.mxu0 0.0
      %431 = vmatpush1.msra.mxu0 %v405
      %432 = vmatprep.subr.mxu0 0.0
      %433 = vmatpush1.msra.mxu0 %v406
      %434 = vmatprep.subr.mxu0 0.0
      %435 = vmatpush1.msra.mxu0 0.0
      %436 = vmatprep.subr.mxu0 0.0
      %437 = vmatpush1.msra.mxu0 0.0
      %438 = vmatprep.subr.mxu0 0.0
      %439 = vmatpush1.msra.mxu0 0.0
      %440 = vmatprep.subr.mxu0 0.0
      %441 = vmatpush1.msra.mxu0 0.0
      %442 = vmatprep.subr.mxu0 0.0
      %443 = vmatpush1.msra.mxu0 0.0
      %444 = vmatprep.subr.mxu0 0.0
      %445 = vmatpush1.msra.mxu0 0.0
      %446 = vmatprep.subr.mxu0 0.0
      %447 = vmatpush1.msra.mxu0 0.0
      %448 = vmatprep.subr.mxu0 0.0
      %449 = vmatpush1.msra.mxu0 0.0
      %450 = vmatprep.subr.mxu0 0.0
      %451 = vmatpush1.msra.mxu0 0.0
      %452 = vmatprep.subr.mxu0 0.0
      %453 = vmatpush1.msra.mxu0 0.0
      %454 = vmatprep.subr.mxu0 0.0
      %455 = vmatpush1.msra.mxu0 0.0
      %456 = vmatprep.subr.mxu0 0.0
      %457 = vmatpush1.msra.mxu0 0.0
      %458 = vmatprep.subr.mxu0 0.0
      %459 = vmatpush1.msra.mxu0 0.0
      %460 = vmatprep.subr.mxu0 0.0
      %461 = vmatpush1.msra.mxu0 0.0
      %462 = vmatprep.subr.mxu0 0.0
      %463 = vmatpush1.msra.mxu0 0.0
      %464 = vmatprep.subr.mxu0 0.0
      %465 = vmatpush1.msra.mxu0 0.0
      %466 = vmatprep.subr.mxu0 0.0
      %467 = vmatpush1.msra.mxu0 0.0
      %468 = vmatprep.subr.mxu0 0.0
      %469 = vmatpush1.msra.mxu0 0.0
      %470 = vmatprep.subr.mxu0 0.0
      %471 = vmatpush1.msra.mxu0 0.0
      %472 = vmatprep.subr.mxu0 0.0
      %473 = vmatpush1.msra.mxu0 0.0
      %474 = vmatprep.subr.mxu0 0.0
      %475 = vmatpush1.msra.mxu0 0.0
      %476 = vmatprep.subr.mxu0 0.0
      %477 = vmatpush1.msra.mxu0 0.0
      %478 = vmatprep.subr.mxu0 0.0
      %479 = vmatpush1.msra.mxu0 0.0
      %480 = vmatprep.subr.mxu0 0.0
      %481 = vmatpush1.msra.mxu0 0.0
      %482 = vmatprep.mubr.f32.mxu0 0.0
      %483 = vmatmul.mubr.f32.gmra.mrb[0].mxu0 %v416
      %v484 = vpop.f32.mrb[0].mxu0
      %v485 = vadd.f32 %v412, %v484
      %v486 = vpop.f32.mrb[0].mxu0
      %487 = vdwg.mxu0
      %v488 = vadd.f32 %v485, %v274
      %489 = vst.msk [vmem:[%s273] sm:$0xff] %vm275, %v488
      %p490 = scmp.lt.s32.totalorder %s18, 1
      %s491 = scalar_select %p490, %s18, 1
      %s492 = smul.addr %s491, 8
      %s493 = scalar_lea.vmem %s7, %s492
      // Predicated region
      $region49: #{cross_transformer.9} parent=47 // pred_check
        %p494 = pneg %p188
      $region50: #{cross_transformer.9} parent=47 // pred_check_branch
        %496 = sbr.rel (%p494) target = $region52
      $region51: #{cross_transformer.9} parent=47 // pred_region
        _
      $region52: #{cross_transformer.9} parent=47 // pred_fallthru
        _
    $region48: #{cross_transformer.9} parent=5 // pred_fallthru
      _
    %p497 = scmp.le.s32.totalorder 2, %s13
    // Predicated region
    $region53: #{cross_transformer.9} parent=5 // pred_check
      %p498 = pneg %p497
    $region54: #{cross_transformer.9} parent=5 // pred_check_branch
      %500 = sbr.rel (%p498) target = $region56
    $region55: #{cross_transformer.9} parent=5 // pred_region
      %s501 = ssub.s32 %s13, 2
      // Predicated region
      $region57: #{cross_transformer.9} parent=55 // pred_check
        %p502 = pneg %p194
      $region58: #{cross_transformer.9} parent=55 // pred_check_branch
        %504 = sbr.rel (%p502) target = $region60
      $region59: #{cross_transformer.9} parent=55 // pred_region
        %p505 = scmp.lt.s32.totalorder %s19, 1
        %s506 = scalar_select %p505, %s19, 1
        %s507 = smul.addr %s506, 8
        %s508 = scalar_lea.vmem %s7, %s507
      $region60: #{cross_transformer.9} parent=55 // pred_fallthru
        _
    $region56: #{cross_transformer.9} parent=5 // pred_fallthru
      _
  $region6: #{cross_transformer.9} parent=0 // loop_footer
    %s17 = sadd.s32 1, %s13
  $region7: #{cross_transformer.9} parent=0 // loop_footer_branch
    %12 = sbr.rel target = $region3
  $region8: #{cross_transformer.9} parent=0 // loop_exit
    _

// kernel: cross_transformer.8
$region0: #{cross_transformer.8}
  #allocation0 [shape = 'u32[]', space=smem, size = 0x4, offset = 0x4, fixed_abs, tag = 'smem constant byte address 0x4 - core index']
  #allocation1 [shape = 'u32[144,128]{1,0:T(1,128)}', space=vmem, size = 0x12000, scoped, tag = 'internal scratch']
  %s0 = inlined_call_operand.vmem [shape: f32[2,8,32], index: 0, kind: input, shape index: {}]
  %s1 = inlined_call_operand.vmem [shape: f32[1,32], index: 1, kind: input, shape index: {}]
  %s2 = inlined_call_operand.vmem [shape: f32[1,32], index: 2, kind: input, shape index: {}]
  %s3 = inlined_call_operand.vmem [shape: f32[3,32,32], index: 3, kind: input, shape index: {}]
  %s4 = inlined_call_operand.vmem [shape: f32[32,32], index: 4, kind: input, shape index: {}]
  %s5 = inlined_call_operand.vmem [shape: f32[1,32], index: 5, kind: input, shape index: {}]
  %s6 = inlined_call_operand.vmem [shape: f32[2,8,32], index: 6, kind: output, shape index: {}]
  %s7 = sld [smem:[#allocation0]]
  $region57: #{cross_transformer.8} parent=0
    _
  %s9 = ssub.s32 1, %s7
  %s10 = scalar_select 0, %s9, %s7
  loop: start=0, step=1, limit=4
  $region2: #{cross_transformer.8} parent=0 // loop_pre_header
    _
  $region3: #{cross_transformer.8} parent=0 // loop_header
    %s12 = sphi 0, %s16
    %p13 = scmp.ge.s32.totalorder %s12, 4
    %s22 = sphi 0, %s24
    %s25 = sphi 0, %s22
    %s26 = sphi 0, %s25
    %s42 = sphi 0, %s26
    %s46 = sphi 0, %s46
    %s48 = sphi 0, %s46
    %s49 = sphi 0, %s48
    %s63 = sphi 0, %s49
    %s67 = sphi 0, %s67
    %s69 = sphi 0, %s67
    %s70 = sphi 0, %s69
    %s84 = sphi 0, %s70
    %s88 = sphi 0, %s88
    %s90 = sphi 0, %s88
    %s91 = sphi 0, %s90
    %s105 = sphi 0, %s91
    %s109 = sphi 0, %s109
    %s111 = sphi 0, %s109
    %s112 = sphi 0, %s111
    %s126 = sphi 0, %s112
    %s130 = sphi 0, %s130
    %s132 = sphi 0, %s130
    %s133 = sphi 0, %s132
    %s147 = sphi 0, %s133
    %s153 = sphi 0, %s155
    %s156 = sphi 0, %s153
    %s157 = sphi 0, %s156
    %s173 = sphi 0, %s157
  $region4: #{cross_transformer.8} parent=0 // loop_header_branch
    %15 = sbr.rel (%p13) target = $region8
  $region5: #{cross_transformer.8} parent=0 // loop_body
    %s17 = ssub.s32 %s12, 1
    %s18 = ssub.s32 %s12, 2
    %s19 = sadd.s32 %s12, 1
    %s20 = ssub.s32 %s12, %s19
    %p21 = scmp.eq.s32.totalorder %s20, 0
    %s23 = sadd.s32 %s22, 1
    %s24 = scalar_select %p21, %s22, %s23
    %p27 = pneg %p21
    %p28 = scmp.eq.s32.totalorder %s12, 1
    %p29 = por %p27, %p28
    %p30 = scmp.ne.s32.totalorder %s22, %s25
    %p31 = scmp.eq.s32.totalorder %s12, 0
    %p32 = por %p30, %p31
    %p33 = scmp.ne.s32.totalorder %s22, %s25
    %p34 = scmp.eq.s32.totalorder %s17, 1
    %p35 = por %p33, %p34
    %p36 = scmp.ne.s32.totalorder %s25, %s26
    %p37 = scmp.eq.s32.totalorder %s17, 0
    %p38 = por %p36, %p37
    %p39 = scmp.ne.s32.totalorder %s25, %s26
    %p40 = scmp.eq.s32.totalorder %s18, 1
    %p41 = por %p39, %p40
    %p43 = scmp.ne.s32.totalorder %s26, %s42
    %p44 = scmp.eq.s32.totalorder %s18, 0
    %p45 = por %p43, %p44
    %s47 = sadd.s32 %s46, 1
    %p50 = scmp.eq.s32.totalorder %s12, 1
    %p51 = scmp.ne.s32.totalorder %s46, %s48
    %p52 = scmp.eq.s32.totalorder %s12, 0
    %p53 = por %p51, %p52
    %p54 = scmp.ne.s32.totalorder %s46, %s48
    %p55 = scmp.eq.s32.totalorder %s17, 1
    %p56 = por %p54, %p55
    %p57 = scmp.ne.s32.totalorder %s48, %s49
    %p58 = scmp.eq.s32.totalorder %s17, 0
    %p59 = por %p57, %p58
    %p60 = scmp.ne.s32.totalorder %s48, %s49
    %p61 = scmp.eq.s32.totalorder %s18, 1
    %p62 = por %p60, %p61
    %p64 = scmp.ne.s32.totalorder %s49, %s63
    %p65 = scmp.eq.s32.totalorder %s18, 0
    %p66 = por %p64, %p65
    %s68 = sadd.s32 %s67, 1
    %p71 = scmp.eq.s32.totalorder %s12, 1
    %p72 = scmp.ne.s32.totalorder %s67, %s69
    %p73 = scmp.eq.s32.totalorder %s12, 0
    %p74 = por %p72, %p73
    %p75 = scmp.ne.s32.totalorder %s67, %s69
    %p76 = scmp.eq.s32.totalorder %s17, 1
    %p77 = por %p75, %p76
    %p78 = scmp.ne.s32.totalorder %s69, %s70
    %p79 = scmp.eq.s32.totalorder %s17, 0
    %p80 = por %p78, %p79
    %p81 = scmp.ne.s32.totalorder %s69, %s70
    %p82 = scmp.eq.s32.totalorder %s18, 1
    %p83 = por %p81, %p82
    %p85 = scmp.ne.s32.totalorder %s70, %s84
    %p86 = scmp.eq.s32.totalorder %s18, 0
    %p87 = por %p85, %p86
    %s89 = sadd.s32 %s88, 1
    %p92 = scmp.eq.s32.totalorder %s12, 1
    %p93 = scmp.ne.s32.totalorder %s88, %s90
    %p94 = scmp.eq.s32.totalorder %s12, 0
    %p95 = por %p93, %p94
    %p96 = scmp.ne.s32.totalorder %s88, %s90
    %p97 = scmp.eq.s32.totalorder %s17, 1
    %p98 = por %p96, %p97
    %p99 = scmp.ne.s32.totalorder %s90, %s91
    %p100 = scmp.eq.s32.totalorder %s17, 0
    %p101 = por %p99, %p100
    %p102 = scmp.ne.s32.totalorder %s90, %s91
    %p103 = scmp.eq.s32.totalorder %s18, 1
    %p104 = por %p102, %p103
    %p106 = scmp.ne.s32.totalorder %s91, %s105
    %p107 = scmp.eq.s32.totalorder %s18, 0
    %p108 = por %p106, %p107
    %s110 = sadd.s32 %s109, 1
    %p113 = scmp.eq.s32.totalorder %s12, 1
    %p114 = scmp.ne.s32.totalorder %s109, %s111
    %p115 = scmp.eq.s32.totalorder %s12, 0
    %p116 = por %p114, %p115
    %p117 = scmp.ne.s32.totalorder %s109, %s111
    %p118 = scmp.eq.s32.totalorder %s17, 1
    %p119 = por %p117, %p118
    %p120 = scmp.ne.s32.totalorder %s111, %s112
    %p121 = scmp.eq.s32.totalorder %s17, 0
    %p122 = por %p120, %p121
    %p123 = scmp.ne.s32.totalorder %s111, %s112
    %p124 = scmp.eq.s32.totalorder %s18, 1
    %p125 = por %p123, %p124
    %p127 = scmp.ne.s32.totalorder %s112, %s126
    %p128 = scmp.eq.s32.totalorder %s18, 0
    %p129 = por %p127, %p128
    %s131 = sadd.s32 %s130, 1
    %p134 = scmp.eq.s32.totalorder %s12, 1
    %p135 = scmp.ne.s32.totalorder %s130, %s132
    %p136 = scmp.eq.s32.totalorder %s12, 0
    %p137 = por %p135, %p136
    %p138 = scmp.ne.s32.totalorder %s130, %s132
    %p139 = scmp.eq.s32.totalorder %s17, 1
    %p140 = por %p138, %p139
    %p141 = scmp.ne.s32.totalorder %s132, %s133
    %p142 = scmp.eq.s32.totalorder %s17, 0
    %p143 = por %p141, %p142
    %p144 = scmp.ne.s32.totalorder %s132, %s133
    %p145 = scmp.eq.s32.totalorder %s18, 1
    %p146 = por %p144, %p145
    %p148 = scmp.ne.s32.totalorder %s133, %s147
    %p149 = scmp.eq.s32.totalorder %s18, 0
    %p150 = por %p148, %p149
    %s151 = ssub.s32 %s12, %s19
    %p152 = scmp.eq.s32.totalorder %s151, 0
    %s154 = sadd.s32 %s153, 1
    %s155 = scalar_select %p152, %s153, %s154
    %p158 = pneg %p152
    %p159 = scmp.eq.s32.totalorder %s12, 1
    %p160 = por %p158, %p159
    %p161 = scmp.ne.s32.totalorder %s153, %s156
    %p162 = scmp.eq.s32.totalorder %s12, 0
    %p163 = por %p161, %p162
    %p164 = scmp.ne.s32.totalorder %s153, %s156
    %p165 = scmp.eq.s32.totalorder %s17, 1
    %p166 = por %p164, %p165
    %p167 = scmp.ne.s32.totalorder %s156, %s157
    %p168 = scmp.eq.s32.totalorder %s17, 0
    %p169 = por %p167, %p168
    %p170 = scmp.ne.s32.totalorder %s156, %s157
    %p171 = scmp.eq.s32.totalorder %s18, 1
    %p172 = por %p170, %p171
    %p174 = scmp.ne.s32.totalorder %s157, %s173
    %p175 = scmp.eq.s32.totalorder %s18, 0
    %p176 = por %p174, %p175
    %p177 = scmp.le.s32.totalorder 1, %s12
    %p178 = scmp.lt.s32.totalorder %s12, 3
    %p179 = pnand %p177, %p178
    %p180 = pneg %p179
    // Predicated region
    $region9: #{cross_transformer.8} parent=5 // pred_check
      _
    $region10: #{cross_transformer.8} parent=5 // pred_check_branch
      %182 = sbr.rel (%p179) target = $region12
    $region11: #{cross_transformer.8} parent=5 // pred_region
      %s183 = ssub.s32 %s12, 1
      // Predicated region
      $region13: #{cross_transformer.8} parent=11 // pred_check
        %p184 = pneg %p59
      $region14: #{cross_transformer.8} parent=11 // pred_check_branch
        %186 = sbr.rel (%p184) target = $region16
      $region15: #{cross_transformer.8} parent=11 // pred_region
        _
      $region16: #{cross_transformer.8} parent=11 // pred_fallthru
        _
      // Predicated region
      $region17: #{cross_transformer.8} parent=11 // pred_check
        %p187 = pneg %p80
      $region18: #{cross_transformer.8} parent=11 // pred_check_branch
        %189 = sbr.rel (%p187) target = $region20
      $region19: #{cross_transformer.8} parent=11 // pred_region
        _
      $region20: #{cross_transformer.8} parent=11 // pred_fallthru
        _
      // Predicated region
      $region21: #{cross_transformer.8} parent=11 // pred_check
        %p190 = pneg %p101
      $region22: #{cross_transformer.8} parent=11 // pred_check_branch
        %192 = sbr.rel (%p190) target = $region24
      $region23: #{cross_transformer.8} parent=11 // pred_region
        _
      $region24: #{cross_transformer.8} parent=11 // pred_fallthru
        _
      // Predicated region
      $region25: #{cross_transformer.8} parent=11 // pred_check
        %p193 = pneg %p122
      $region26: #{cross_transformer.8} parent=11 // pred_check_branch
        %195 = sbr.rel (%p193) target = $region28
      $region27: #{cross_transformer.8} parent=11 // pred_region
        _
      $region28: #{cross_transformer.8} parent=11 // pred_fallthru
        _
      // Predicated region
      $region29: #{cross_transformer.8} parent=11 // pred_check
        %p196 = pneg %p143
      $region30: #{cross_transformer.8} parent=11 // pred_check_branch
        %198 = sbr.rel (%p196) target = $region32
      $region31: #{cross_transformer.8} parent=11 // pred_region
        _
      $region32: #{cross_transformer.8} parent=11 // pred_fallthru
        _
    $region12: #{cross_transformer.8} parent=5 // pred_fallthru
      _
    %p199 = scmp.lt.s32.totalorder %s12, 2
    // Predicated region
    $region33: #{cross_transformer.8} parent=5 // pred_check
      %p200 = pneg %p199
    $region34: #{cross_transformer.8} parent=5 // pred_check_branch
      %202 = sbr.rel (%p200) target = $region36
    $region35: #{cross_transformer.8} parent=5 // pred_region
      // Predicated region
      $region37: #{cross_transformer.8} parent=35 // pred_check
        %p203 = pneg %p32
      $region38: #{cross_transformer.8} parent=35 // pred_check_branch
        %205 = sbr.rel (%p203) target = $region40
      $region39: #{cross_transformer.8} parent=35 // pred_region
        %p206 = scmp.lt.s32.totalorder %s12, 1
        %s207 = scalar_select %p206, %s12, 1
        %s208 = smul.addr %s207, 8
        %s209 = scalar_lea.vmem %s0, %s208
      $region40: #{cross_transformer.8} parent=35 // pred_fallthru
        _
    $region36: #{cross_transformer.8} parent=5 // pred_fallthru
      _
    %p210 = scmp.le.s32.totalorder 1, %s12
    %p211 = scmp.lt.s32.totalorder %s12, 3
    %p212 = pnand %p210, %p211
    %p213 = pneg %p212
    // Predicated region
    $region41: #{cross_transformer.8} parent=5 // pred_check
      _
    $region42: #{cross_transformer.8} parent=5 // pred_check_branch
      %215 = sbr.rel (%p212) target = $region44
    $region43: #{cross_transformer.8} parent=5 // pred_region
      %s216 = ssub.s32 %s12, 1
      %p217 = scmp.lt.s32.totalorder %s17, 1
      %s218 = scalar_select %p217, %s17, 1
      %s219 = smul.addr %s218, 8
      %s220 = scalar_lea.vmem %s0, %s219
      %p221 = pneg %p38
      %p222 = pneg %p35
      %p223 = pneg %p59
      %p224 = pneg %p56
      %p225 = pneg %p80
      %p226 = pneg %p77
      %p227 = pneg %p101
      %p228 = pneg %p98
      %p229 = pneg %p122
      %p230 = pneg %p119
      %p231 = pneg %p143
      %p232 = pneg %p140
      %p233 = pneg %p169
      %p234 = pneg %p166
      %p235 = scmp.lt.s32.totalorder %s17, 1
      %s236 = scalar_select %p235, %s17, 1
      %s237 = smul.addr %s236, 8
      %s238 = scalar_lea.vmem %s6, %s237
      %p239 = scmp.lt.s32.totalorder %s17, 1
      %s240 = scalar_select %p239, %s17, 1
      %s241 = smul.addr %s240, 8
      %s242 = scalar_lea.vmem %s0, %s241
      %p243 = scmp.lt.s32.totalorder %s17, 1
      %s244 = scalar_select %p243, %s17, 1
      %s245 = smul.addr %s244, 8
      %s246 = scalar_lea.vmem %s6, %s245
      %v247 = vld [vmem:[%s242] sm:$0xff]
      %vm248 = vcmask 261120
      %v249 = vsel %vm248, %v247, 0.0
      %250 = vadd.xlane.f32.xlu0 %v249
      %v251 = vpop.xlane.xlu0 %250
      %v252 = vrcp.pop 32.0
      %v253 = vmul.f32 %v251, %v252
      %v254 = vsub.f32 %v247, %v253
      %v255 = vmul.f32 %v254, %v254
      %v256 = vsel %vm248, %v255, 0.0
      %257 = vadd.xlane.f32.xlu0 %v256
      %v258 = vpop.xlane.xlu0 %257
      %v259 = vmul.f32 %v258, %v252
      %v260 = vadd.f32 %v259, 1e-05
      %v261 = vrsqrt.pop %v260
      %v262 = vmul.f32 %v254, %v261
      %v263 = vld [vmem:[%s1] sm:$0x1]
      %v265 = vlaneseq
      %v266 = vshrl.u32 %v265, 7
      %v267 = vsub.s32 0, %v266
      %v268 = vrot.slane %v263, %v267
      %v270 = vmul.f32 %v262, %v268
      %v271 = vld [vmem:[%s2] sm:$0x1]
      %v273 = vlaneseq
      %v274 = vshrl.u32 %v273, 7
      %v275 = vsub.s32 0, %v274
      %v276 = vrot.slane %v271, %v275
      %v278 = vadd.f32 %v270, %v276
      %v279 = vld [vmem:[%s3] sm:$0xff]
      %v280 = vld [vmem:[%s3 + $0x8] sm:$0xff]
      %v281 = vld [vmem:[%s3 + $0x10] sm:$0xff]
      %v282 = vld [vmem:[%s3 + $0x18] sm:$0xff]
      %v284 = vsel %vm248, %v278, 0
      %286 = vmatprep.subr.mxu0 0.0
      %287 = vmatpush1.msra.mxu0 %v279
      %288 = vmatprep.subr.mxu0 0.0
      %289 = vmatpush1.msra.mxu0 %v280
      %290 = vmatprep.subr.mxu0 0.0
      %291 = vmatpush1.msra.mxu0 %v281
      %292 = vmatprep.subr.mxu0 0.0
      %293 = vmatpush1.msra.mxu0 %v282
      %294 = vmatprep.subr.mxu0 0.0
      %295 = vmatpush1.msra.mxu0 0.0
      %296 = vmatprep.subr.mxu0 0.0
      %297 = vmatpush1.msra.mxu0 0.0
      %298 = vmatprep.subr.mxu0 0.0
      %299 = vmatpush1.msra.mxu0 0.0
      %300 = vmatprep.subr.mxu0 0.0
      %301 = vmatpush1.msra.mxu0 0.0
      %302 = vmatprep.subr.mxu0 0.0
      %303 = vmatpush1.msra.mxu0 0.0
      %304 = vmatprep.subr.mxu0 0.0
      %305 = vmatpush1.msra.mxu0 0.0
      %306 = vmatprep.subr.mxu0 0.0
      %307 = vmatpush1.msra.mxu0 0.0
      %308 = vmatprep.subr.mxu0 0.0
      %309 = vmatpush1.msra.mxu0 0.0
      %310 = vmatprep.subr.mxu0 0.0
      %311 = vmatpush1.msra.mxu0 0.0
      %312 = vmatprep.subr.mxu0 0.0
      %313 = vmatpush1.msra.mxu0 0.0
      %314 = vmatprep.subr.mxu0 0.0
      %315 = vmatpush1.msra.mxu0 0.0
      %316 = vmatprep.subr.mxu0 0.0
      %317 = vmatpush1.msra.mxu0 0.0
      %318 = vmatprep.subr.mxu0 0.0
      %319 = vmatpush1.msra.mxu0 0.0
      %320 = vmatprep.subr.mxu0 0.0
      %321 = vmatpush1.msra.mxu0 0.0
      %322 = vmatprep.subr.mxu0 0.0
      %323 = vmatpush1.msra.mxu0 0.0
      %324 = vmatprep.subr.mxu0 0.0
      %325 = vmatpush1.msra.mxu0 0.0
      %326 = vmatprep.subr.mxu0 0.0
      %327 = vmatpush1.msra.mxu0 0.0
      %328 = vmatprep.subr.mxu0 0.0
      %329 = vmatpush1.msra.mxu0 0.0
      %330 = vmatprep.subr.mxu0 0.0
      %331 = vmatpush1.msra.mxu0 0.0
      %332 = vmatprep.subr.mxu0 0.0
      %333 = vmatpush1.msra.mxu0 0.0
      %334 = vmatprep.subr.mxu0 0.0
      %335 = vmatpush1.msra.mxu0 0.0
      %336 = vmatprep.subr.mxu0 0.0
      %337 = vmatpush1.msra.mxu0 0.0
      %338 = vmatprep.subr.mxu0 0.0
      %339 = vmatpush1.msra.mxu0 0.0
      %340 = vmatprep.subr.mxu0 0.0
      %341 = vmatpush1.msra.mxu0 0.0
      %342 = vmatprep.subr.mxu0 0.0
      %343 = vmatpush1.msra.mxu0 0.0
      %344 = vmatprep.subr.mxu0 0.0
      %345 = vmatpush1.msra.mxu0 0.0
      %346 = vmatprep.subr.mxu0 0.0
      %347 = vmatpush1.msra.mxu0 0.0
      %348 = vmatprep.subr.mxu0 0.0
      %349 = vmatpush1.msra.mxu0 0.0
      %350 = vmatprep.mubr.f32.mxu0 0.0
      %351 = vmatmul.mubr.f32.gmra.mrb[0].mxu0 %v284
      %v352 = vpop.f32.mrb[0].mxu0
      %v353 = vadd.f32 0.0, %v352
      %v354 = vpop.f32.mrb[0].mxu0
      %355 = vdwg.mxu0
      %s356 = scalar_lea.vmem %s3, 32
      %v357 = vld [vmem:[%s356] sm:$0xff]
      %v358 = vld [vmem:[%s356 + $0x8] sm:$0xff]
      %v359 = vld [vmem:[%s356 + $0x10] sm:$0xff]
      %v360 = vld [vmem:[%s356 + $0x18] sm:$0xff]
      %361 = vmatprep.subr.mxu0 0.0
      %362 = vmatpush1.msra.mxu0 %v357
      %363 = vmatprep.subr.mxu0 0.0
      %364 = vmatpush1.msra.mxu0 %v358
      %365 = vmatprep.subr.mxu0 0.0
      %366 = vmatpush1.msra.mxu0 %v359
      %367 = vmatprep.subr.mxu0 0.0
      %368 = vmatpush1.msra.mxu0 %v360
      %369 = vmatprep.subr.mxu0 0.0
      %370 = vmatpush1.msra.mxu0 0.0
      %371 = vmatprep.subr.mxu0 0.0
      %372 = vmatpush1.msra.mxu0 0.0
      %373 = vmatprep.subr.mxu0 0.0
      %374 = vmatpush1.msra.mxu0 0.0
      %375 = vmatprep.subr.mxu0 0.0
      %376 = vmatpush1.msra.mxu0 0.0
      %377 = vmatprep.subr.mxu0 0.0
      %378 = vmatpush1.msra.mxu0 0.0
      %379 = vmatprep.subr.mxu0 0.0
      %380 = vmatpush1.msra.mxu0 0.0
      %381 = vmatprep.subr.mxu0 0.0
      %382 = vmatpush1.msra.mxu0 0.0
      %383 = vmatprep.subr.mxu0 0.0
      %384 = vmatpush1.msra.mxu0 0.0
      %385 = vmatprep.subr.mxu0 0.0
      %386 = vmatpush1.msra.mxu0 0.0
      %387 = vmatprep.subr.mxu0 0.0
      %388 = vmatpush1.msra.mxu0 0.0
      %389 = vmatprep.subr.mxu0 0.0
      %390 = vmatpush1.msra.mxu0 0.0
      %391 = vmatprep.subr.mxu0 0.0
      %392 = vmatpush1.msra.mxu0 0.0
      %393 = vmatprep.subr.mxu0 0.0
      %394 = vmatpush1.msra.mxu0 0.0
      %395 = vmatprep.subr.mxu0 0.0
      %396 = vmatpush1.msra.mxu0 0.0
      %397 = vmatprep.subr.mxu0 0.0
      %398 = vmatpush1.msra.mxu0 0.0
      %399 = vmatprep.subr.mxu0 0.0
      %400 = vmatpush1.msra.mxu0 0.0
      %401 = vmatprep.subr.mxu0 0.0
      %402 = vmatpush1.msra.mxu0 0.0
      %403 = vmatprep.subr.mxu0 0.0
      %404 = vmatpush1.msra.mxu0 0.0
      %405 = vmatprep.subr.mxu0 0.0
      %406 = vmatpush1.msra.mxu0 0.0
      %407 = vmatprep.subr.mxu0 0.0
      %408 = vmatpush1.msra.mxu0 0.0
      %409 = vmatprep.subr.mxu0 0.0
      %410 = vmatpush1.msra.mxu0 0.0
      %411 = vmatprep.subr.mxu0 0.0
      %412 = vmatpush1.msra.mxu0 0.0
      %413 = vmatprep.subr.mxu0 0.0
      %414 = vmatpush1.msra.mxu0 0.0
      %415 = vmatprep.subr.mxu0 0.0
      %416 = vmatpush1.msra.mxu0 0.0
      %417 = vmatprep.subr.mxu0 0.0
      %418 = vmatpush1.msra.mxu0 0.0
      %419 = vmatprep.subr.mxu0 0.0
      %420 = vmatpush1.msra.mxu0 0.0
      %421 = vmatprep.subr.mxu0 0.0
      %422 = vmatpush1.msra.mxu0 0.0
      %423 = vmatprep.subr.mxu0 0.0
      %424 = vmatpush1.msra.mxu0 0.0
      %425 = vmatprep.mubr.f32.mxu0 0.0
      %426 = vmatmul.mubr.f32.gmra.mrb[0].mxu0 %v284
      %v427 = vpop.f32.mrb[0].mxu0
      %v428 = vadd.f32 0.0, %v427
      %v429 = vpop.f32.mrb[0].mxu0
      %430 = vdwg.mxu0
      %s431 = scalar_lea.vmem %s3, 64
      %v432 = vld [vmem:[%s431] sm:$0xff]
      %v433 = vld [vmem:[%s431 + $0x8] sm:$0xff]
      %v434 = vld [vmem:[%s431 + $0x10] sm:$0xff]
      %v435 = vld [vmem:[%s431 + $0x18] sm:$0xff]
      %436 = vmatprep.subr.mxu0 0.0
      %437 = vmatpush1.msra.mxu0 %v432
      %438 = vmatprep.subr.mxu0 0.0
      %439 = vmatpush1.msra.mxu0 %v433
      %440 = vmatprep.subr.mxu0 0.0
      %441 = vmatpush1.msra.mxu0 %v434
      %442 = vmatprep.subr.mxu0 0.0
      %443 = vmatpush1.msra.mxu0 %v435
      %444 = vmatprep.subr.mxu0 0.0
      %445 = vmatpush1.msra.mxu0 0.0
      %446 = vmatprep.subr.mxu0 0.0
      %447 = vmatpush1.msra.mxu0 0.0
      %448 = vmatprep.subr.mxu0 0.0
      %449 = vmatpush1.msra.mxu0 0.0
      %450 = vmatprep.subr.mxu0 0.0
      %451 = vmatpush1.msra.mxu0 0.0
      %452 = vmatprep.subr.mxu0 0.0
      %453 = vmatpush1.msra.mxu0 0.0
      %454 = vmatprep.subr.mxu0 0.0
      %455 = vmatpush1.msra.mxu0 0.0
      %456 = vmatprep.subr.mxu0 0.0
      %457 = vmatpush1.msra.mxu0 0.0
      %458 = vmatprep.subr.mxu0 0.0
      %459 = vmatpush1.msra.mxu0 0.0
      %460 = vmatprep.subr.mxu0 0.0
      %461 = vmatpush1.msra.mxu0 0.0
      %462 = vmatprep.subr.mxu0 0.0
      %463 = vmatpush1.msra.mxu0 0.0
      %464 = vmatprep.subr.mxu0 0.0
      %465 = vmatpush1.msra.mxu0 0.0
      %466 = vmatprep.subr.mxu0 0.0
      %467 = vmatpush1.msra.mxu0 0.0
      %468 = vmatprep.subr.mxu0 0.0
      %469 = vmatpush1.msra.mxu0 0.0
      %470 = vmatprep.subr.mxu0 0.0
      %471 = vmatpush1.msra.mxu0 0.0
      %472 = vmatprep.subr.mxu0 0.0
      %473 = vmatpush1.msra.mxu0 0.0
      %474 = vmatprep.subr.mxu0 0.0
      %475 = vmatpush1.msra.mxu0 0.0
      %476 = vmatprep.subr.mxu0 0.0
      %477 = vmatpush1.msra.mxu0 0.0
      %478 = vmatprep.subr.mxu0 0.0
      %479 = vmatpush1.msra.mxu0 0.0
      %480 = vmatprep.subr.mxu0 0.0
      %481 = vmatpush1.msra.mxu0 0.0
      %482 = vmatprep.subr.mxu0 0.0
      %483 = vmatpush1.msra.mxu0 0.0
      %484 = vmatprep.subr.mxu0 0.0
      %485 = vmatpush1.msra.mxu0 0.0
      %486 = vmatprep.subr.mxu0 0.0
      %487 = vmatpush1.msra.mxu0 0.0
      %488 = vmatprep.subr.mxu0 0.0
      %489 = vmatpush1.msra.mxu0 0.0
      %490 = vmatprep.subr.mxu0 0.0
      %491 = vmatpush1.msra.mxu0 0.0
      %492 = vmatprep.subr.mxu0 0.0
      %493 = vmatpush1.msra.mxu0 0.0
      %494 = vmatprep.subr.mxu0 0.0
      %495 = vmatpush1.msra.mxu0 0.0
      %496 = vmatprep.subr.mxu0 0.0
      %497 = vmatpush1.msra.mxu0 0.0
      %498 = vmatprep.subr.mxu0 0.0
      %499 = vmatpush1.msra.mxu0 0.0
      %500 = vmatprep.mubr.f32.mxu0 0.0
      %501 = vmatmul.mubr.f32.gmra.mrb[0].mxu0 %v284
      %v502 = vpop.f32.mrb[0].mxu0
      %v503 = vadd.f32 0.0, %v502
      %v504 = vpop.f32.mrb[0].mxu0
      %505 = vdwg.mxu0
      %507 = vrot.lane.b32.xlu0 %v353, 120
      %v508 = vpop.permute.xlu0 %507
      %510 = vrot.lane.b32.xlu0 %v353, 112
      %v511 = vpop.permute.xlu0 %510
      %513 = vrot.lane.b32.xlu0 %v353, 104
      %v514 = vpop.permute.xlu0 %513
      %v516 = vcombine.low %v353, %v511
      %v517 = vcombine.high %v353, %v511
      %v519 = vunpack.c.l.s4 1983009808
      %v520 = vunpack.c.0.s8 %v519
      %v521 = vlaneseq
      %v522 = vshrl.u32 %v521, 7
      %v523 = vsub.s32 %v520, %v522
      %v524 = vrot.slane %v516, %v523
      %v526 = vunpack.c.l.s4 1983009808
      %v527 = vunpack.c.0.s8 %v526
      %v528 = vlaneseq
      %v529 = vshrl.u32 %v528, 7
      %v530 = vsub.s32 %v527, %v529
      %v531 = vrot.slane %v517, %v530
      %v532 = vcombine.low %v508, %v514
      %v533 = vcombine.high %v508, %v514
      %v535 = vunpack.c.l.s4 1983009808
      %v536 = vunpack.c.0.s8 %v535
      %v537 = vlaneseq
      %v538 = vshrl.u32 %v537, 7
      %v539 = vsub.s32 %v536, %v538
      %v540 = vrot.slane %v532, %v539
      %v542 = vunpack.c.l.s4 1983009808
      %v543 = vunpack.c.0.s8 %v542
      %v544 = vlaneseq
      %v545 = vshrl.u32 %v544, 7
      %v546 = vsub.s32 %v543, %v545
      %v547 = vrot.slane %v533, %v546
      %v548 = vcombine.low %v524, %v540
      %v549 = vcombine.high %v524, %v540
      %v551 = vunpack.c.l.s4 1934713408
      %v552 = vunpack.c.0.s8 %v551
      %v553 = vlaneseq
      %v554 = vshrl.u32 %v553, 7
      %v555 = vsub.s32 %v552, %v554
      %v556 = vrot.slane %v548, %v555
      %v558 = vunpack.c.l.s4 1934713408
      %v559 = vunpack.c.0.s8 %v558
      %v560 = vlaneseq
      %v561 = vshrl.u32 %v560, 7
      %v562 = vsub.s32 %v559, %v561
      %v563 = vrot.slane %v549, %v562
      %v564 = vcombine.low %v531, %v547
      %v565 = vcombine.high %v531, %v547
      %v567 = vunpack.c.l.s4 1934713408
      %v568 = vunpack.c.0.s8 %v567
      %v569 = vlaneseq
      %v570 = vshrl.u32 %v569, 7
      %v571 = vsub.s32 %v568, %v570
      %v572 = vrot.slane %v564, %v571
      %v574 = vunpack.c.l.s4 1934713408
      %v575 = vunpack.c.0.s8 %v574
      %v576 = vlaneseq
      %v577 = vshrl.u32 %v576, 7
      %v578 = vsub.s32 %v575, %v577
      %v579 = vrot.slane %v565, %v578
      %v580 = vcombine.high %v556, 0.0
      %v581 = vcombine.high %v563, 0.0
      %v582 = vcombine.high %v572, 0.0
      %v583 = vcombine.high %v579, 0.0
      %v584 = vcombine.low %v556, %v563
      %v586 = vunpack.c.l.s4 1983009808
      %v587 = vunpack.c.0.s8 %v586
      %v588 = vlaneseq
      %v589 = vshrl.u32 %v588, 7
      %v590 = vsub.s32 %v587, %v589
      %v591 = vrot.slane %v584, %v590
      %v592 = vcombine.low %v580, %v581
      %v594 = vunpack.c.l.s4 1983009808
      %v595 = vunpack.c.0.s8 %v594
      %v596 = vlaneseq
      %v597 = vshrl.u32 %v596, 7
      %v598 = vsub.s32 %v595, %v597
      %v599 = vrot.slane %v592, %v598
      %v600 = vcombine.low %v572, %v579
      %v602 = vunpack.c.l.s4 1983009808
      %v603 = vunpack.c.0.s8 %v602
      %v604 = vlaneseq
      %v605 = vshrl.u32 %v604, 7
      %v606 = vsub.s32 %v603, %v605
      %v607 = vrot.slane %v600, %v606
      %v608 = vcombine.low %v582, %v583
      %v610 = vunpack.c.l.s4 1983009808
      %v611 = vunpack.c.0.s8 %v610
      %v612 = vlaneseq
      %v613 = vshrl.u32 %v612, 7
      %v614 = vsub.s32 %v611, %v613
      %v615 = vrot.slane %v608, %v614
      %v616 = vcombine.low %v591, %v599
      %v617 = vcombine.high %v591, %v599
      %v619 = vunpack.c.l.s4 1934713408
      %v620 = vunpack.c.0.s8 %v619
      %v621 = vlaneseq
      %v622 = vshrl.u32 %v621, 7
      %v623 = vsub.s32 %v620, %v622
      %v624 = vrot.slane %v616, %v623
      %v626 = vunpack.c.l.s4 1934713408
      %v627 = vunpack.c.0.s8 %v626
      %v628 = vlaneseq
      %v629 = vshrl.u32 %v628, 7
      %v630 = vsub.s32 %v627, %v629
      %v631 = vrot.slane %v617, %v630
      %v632 = vcombine.low %v607, %v615
      %v633 = vcombine.high %v607, %v615
      %v635 = vunpack.c.l.s4 1934713408
      %v636 = vunpack.c.0.s8 %v635
      %v637 = vlaneseq
      %v638 = vshrl.u32 %v637, 7
      %v639 = vsub.s32 %v636, %v638
      %v640 = vrot.slane %v632, %v639
      %v642 = vunpack.c.l.s4 1934713408
      %v643 = vunpack.c.0.s8 %v642
      %v644 = vlaneseq
      %v645 = vshrl.u32 %v644, 7
      %v646 = vsub.s32 %v643, %v645
      %v647 = vrot.slane %v633, %v646
      %v648 = vcombine.low %v624, %v640
      %v649 = vcombine.high %v624, %v640
      %v650 = vcombine.low %v631, %v647
      %v651 = vcombine.high %v631, %v647
      %653 = vrot.lane.b32.xlu0 %v428, 120
      %v654 = vpop.permute.xlu0 %653
      %656 = vrot.lane.b32.xlu0 %v428, 112
      %v657 = vpop.permute.xlu0 %656
      %659 = vrot.lane.b32.xlu0 %v428, 104
      %v660 = vpop.permute.xlu0 %659
      %v662 = vcombine.low %v428, %v657
      %v663 = vcombine.high %v428, %v657
      %v665 = vunpack.c.l.s4 1983009808
      %v666 = vunpack.c.0.s8 %v665
      %v667 = vlaneseq
      %v668 = vshrl.u32 %v667, 7
      %v669 = vsub.s32 %v666, %v668
      %v670 = vrot.slane %v662, %v669
      %v672 = vunpack.c.l.s4 1983009808
      %v673 = vunpack.c.0.s8 %v672
      %v674 = vlaneseq
      %v675 = vshrl.u32 %v674, 7
      %v676 = vsub.s32 %v673, %v675
      %v677 = vrot.slane %v663, %v676
      %v678 = vcombine.low %v654, %v660
      %v679 = vcombine.high %v654, %v660
      %v681 = vunpack.c.l.s4 1983009808
      %v682 = vunpack.c.0.s8 %v681
      %v683 = vlaneseq
      %v684 = vshrl.u32 %v683, 7
      %v685 = vsub.s32 %v682, %v684
      %v686 = vrot.slane %v678, %v685
      %v688 = vunpack.c.l.s4 1983009808
      %v689 = vunpack.c.0.s8 %v688
      %v690 = vlaneseq
      %v691 = vshrl.u32 %v690, 7
      %v692 = vsub.s32 %v689, %v691
      %v693 = vrot.slane %v679, %v692
      %v694 = vcombine.low %v670, %v686
      %v695 = vcombine.high %v670, %v686
      %v697 = vunpack.c.l.s4 1934713408
      %v698 = vunpack.c.0.s8 %v697
      %v699 = vlaneseq
      %v700 = vshrl.u32 %v699, 7
      %v701 = vsub.s32 %v698, %v700
      %v702 = vrot.slane %v694, %v701
      %v704 = vunpack.c.l.s4 1934713408
      %v705 = vunpack.c.0.s8 %v704
      %v706 = vlaneseq
      %v707 = vshrl.u32 %v706, 7
      %v708 = vsub.s32 %v705, %v707
      %v709 = vrot.slane %v695, %v708
      %v710 = vcombine.low %v677, %v693
      %v711 = vcombine.high %v677, %v693
      %v713 = vunpack.c.l.s4 1934713408
      %v714 = vunpack.c.0.s8 %v713
      %v715 = vlaneseq
      %v716 = vshrl.u32 %v715, 7
      %v717 = vsub.s32 %v714, %v716
      %v718 = vrot.slane %v710, %v717
      %v720 = vunpack.c.l.s4 1934713408
      %v721 = vunpack.c.0.s8 %v720
      %v722 = vlaneseq
      %v723 = vshrl.u32 %v722, 7
      %v724 = vsub.s32 %v721, %v723
      %v725 = vrot.slane %v711, %v724
      %v726 = vcombine.high %v702, 0.0
      %v727 = vcombine.high %v709, 0.0
      %v728 = vcombine.high %v718, 0.0
      %v729 = vcombine.high %v725, 0.0
      %v730 = vcombine.low %v702, %v709
      %v732 = vunpack.c.l.s4 1983009808
      %v733 = vunpack.c.0.s8 %v732
      %v734 = vlaneseq
      %v735 = vshrl.u32 %v734, 7
      %v736 = vsub.s32 %v733, %v735
      %v737 = vrot.slane %v730, %v736
      %v738 = vcombine.low %v726, %v727
      %v740 = vunpack.c.l.s4 1983009808
      %v741 = vunpack.c.0.s8 %v740
      %v742 = vlaneseq
      %v743 = vshrl.u32 %v742, 7
      %v744 = vsub.s32 %v741, %v743
      %v745 = vrot.slane %v738, %v744
      %v746 = vcombine.low %v718, %v725
      %v748 = vunpack.c.l.s4 1983009808
      %v749 = vunpack.c.0.s8 %v748
      %v750 = vlaneseq
      %v751 = vshrl.u32 %v750, 7
      %v752 = vsub.s32 %v749, %v751
      %v753 = vrot.slane %v746, %v752
      %v754 = vcombine.low %v728, %v729
      %v756 = vunpack.c.l.s4 1983009808
      %v757 = vunpack.c.0.s8 %v756
      %v758 = vlaneseq
      %v759 = vshrl.u32 %v758, 7
      %v760 = vsub.s32 %v757, %v759
      %v761 = vrot.slane %v754, %v760
      %v762 = vcombine.low %v737, %v745
      %v763 = vcombine.high %v737, %v745
      %v765 = vunpack.c.l.s4 1934713408
      %v766 = vunpack.c.0.s8 %v765
      %v767 = vlaneseq
      %v768 = vshrl.u32 %v767, 7
      %v769 = vsub.s32 %v766, %v768
      %v770 = vrot.slane %v762, %v769
      %v772 = vunpack.c.l.s4 1934713408
      %v773 = vunpack.c.0.s8 %v772
      %v774 = vlaneseq
      %v775 = vshrl.u32 %v774, 7
      %v776 = vsub.s32 %v773, %v775
      %v777 = vrot.slane %v763, %v776
      %v778 = vcombine.low %v753, %v761
      %v779 = vcombine.high %v753, %v761
      %v781 = vunpack.c.l.s4 1934713408
      %v782 = vunpack.c.0.s8 %v781
      %v783 = vlaneseq
      %v784 = vshrl.u32 %v783, 7
      %v785 = vsub.s32 %v782, %v784
      %v786 = vrot.slane %v778, %v785
      %v788 = vunpack.c.l.s4 1934713408
      %v789 = vunpack.c.0.s8 %v788
      %v790 = vlaneseq
      %v791 = vshrl.u32 %v790, 7
      %v792 = vsub.s32 %v789, %v791
      %v793 = vrot.slane %v779, %v792
      %v794 = vcombine.low %v770, %v786
      %v795 = vcombine.high %v770, %v786
      %v796 = vcombine.low %v777, %v793
      %v797 = vcombine.high %v777, %v793
      %799 = vrot.lane.b32.xlu0 %v503, 120
      %v800 = vpop.permute.xlu0 %799
      %802 = vrot.lane.b32.xlu0 %v503, 112
      %v803 = vpop.permute.xlu0 %802
      %805 = vrot.lane.b32.xlu0 %v503, 104
      %v806 = vpop.permute.xlu0 %805
      %v808 = vcombine.low %v503, %v803
      %v809 = vcombine.high %v503, %v803
      %v811 = vunpack.c.l.s4 1983009808
      %v812 = vunpack.c.0.s8 %v811
      %v813 = vlaneseq
      %v814 = vshrl.u32 %v813, 7
      %v815 = vsub.s32 %v812, %v814
      %v816 = vrot.slane %v808, %v815
      %v818 = vunpack.c.l.s4 1983009808
      %v819 = vunpack.c.0.s8 %v818
      %v820 = vlaneseq
      %v821 = vshrl.u32 %v820, 7
      %v822 = vsub.s32 %v819, %v821
      %v823 = vrot.slane %v809, %v822
      %v824 = vcombine.low %v800, %v806
      %v825 = vcombine.high %v800, %v806
      %v827 = vunpack.c.l.s4 1983009808
      %v828 = vunpack.c.0.s8 %v827
      %v829 = vlaneseq
      %v830 = vshrl.u32 %v829, 7
      %v831 = vsub.s32 %v828, %v830
      %v832 = vrot.slane %v824, %v831
      %v834 = vunpack.c.l.s4 1983009808
      %v835 = vunpack.c.0.s8 %v834
      %v836 = vlaneseq
      %v837 = vshrl.u32 %v836, 7
      %v838 = vsub.s32 %v835, %v837
      %v839 = vrot.slane %v825, %v838
      %v840 = vcombine.low %v816, %v832
      %v841 = vcombine.high %v816, %v832
      %v843 = vunpack.c.l.s4 1934713408
      %v844 = vunpack.c.0.s8 %v843
      %v845 = vlaneseq
      %v846 = vshrl.u32 %v845, 7
      %v847 = vsub.s32 %v844, %v846
      %v848 = vrot.slane %v840, %v847
      %v850 = vunpack.c.l.s4 1934713408
      %v851 = vunpack.c.0.s8 %v850
      %v852 = vlaneseq
      %v853 = vshrl.u32 %v852, 7
      %v854 = vsub.s32 %v851, %v853
      %v855 = vrot.slane %v841, %v854
      %v856 = vcombine.low %v823, %v839
      %v857 = vcombine.high %v823, %v839
      %v859 = vunpack.c.l.s4 1934713408
      %v860 = vunpack.c.0.s8 %v859
      %v861 = vlaneseq
      %v862 = vshrl.u32 %v861, 7
      %v863 = vsub.s32 %v860, %v862
      %v864 = vrot.slane %v856, %v863
      %v866 = vunpack.c.l.s4 1934713408
      %v867 = vunpack.c.0.s8 %v866
      %v868 = vlaneseq
      %v869 = vshrl.u32 %v868, 7
      %v870 = vsub.s32 %v867, %v869
      %v871 = vrot.slane %v857, %v870
      %v872 = vcombine.high %v848, 0.0
      %v873 = vcombine.high %v855, 0.0
      %v874 = vcombine.high %v864, 0.0
      %v875 = vcombine.high %v871, 0.0
      %v876 = vcombine.low %v848, %v855
      %v878 = vunpack.c.l.s4 1983009808
      %v879 = vunpack.c.0.s8 %v878
      %v880 = vlaneseq
      %v881 = vshrl.u32 %v880, 7
      %v882 = vsub.s32 %v879, %v881
      %v883 = vrot.slane %v876, %v882
      %v884 = vcombine.low %v872, %v873
      %v886 = vunpack.c.l.s4 1983009808
      %v887 = vunpack.c.0.s8 %v886
      %v888 = vlaneseq
      %v889 = vshrl.u32 %v888, 7
      %v890 = vsub.s32 %v887, %v889
      %v891 = vrot.slane %v884, %v890
      %v892 = vcombine.low %v864, %v871
      %v894 = vunpack.c.l.s4 1983009808
      %v895 = vunpack.c.0.s8 %v894
      %v896 = vlaneseq
      %v897 = vshrl.u32 %v896, 7
      %v898 = vsub.s32 %v895, %v897
      %v899 = vrot.slane %v892, %v898
      %v900 = vcombine.low %v874, %v875
      %v902 = vunpack.c.l.s4 1983009808
      %v903 = vunpack.c.0.s8 %v902
      %v904 = vlaneseq
      %v905 = vshrl.u32 %v904, 7
      %v906 = vsub.s32 %v903, %v905
      %v907 = vrot.slane %v900, %v906
      %v908 = vcombine.low %v883, %v891
      %v909 = vcombine.high %v883, %v891
      %v911 = vunpack.c.l.s4 1934713408
      %v912 = vunpack.c.0.s8 %v911
      %v913 = vlaneseq
      %v914 = vshrl.u32 %v913, 7
      %v915 = vsub.s32 %v912, %v914
      %v916 = vrot.slane %v908, %v915
      %v918 = vunpack.c.l.s4 1934713408
      %v919 = vunpack.c.0.s8 %v918
      %v920 = vlaneseq
      %v921 = vshrl.u32 %v920, 7
      %v922 = vsub.s32 %v919, %v921
      %v923 = vrot.slane %v909, %v922
      %v924 = vcombine.low %v899, %v907
      %v925 = vcombine.high %v899, %v907
      %v927 = vunpack.c.l.s4 1934713408
      %v928 = vunpack.c.0.s8 %v927
      %v929 = vlaneseq
      %v930 = vshrl.u32 %v929, 7
      %v931 = vsub.s32 %v928, %v930
      %v932 = vrot.slane %v924, %v931
      %v934 = vunpack.c.l.s4 1934713408
      %v935 = vunpack.c.0.s8 %v934
      %v936 = vlaneseq
      %v937 = vshrl.u32 %v936, 7
      %v938 = vsub.s32 %v935, %v937
      %v939 = vrot.slane %v925, %v938
      %v940 = vcombine.low %v916, %v932
      %v941 = vcombine.high %v916, %v932
      %v942 = vcombine.low %v923, %v939
      %v943 = vcombine.high %v923, %v939
      %vm944 = vcmask 64512
      %v946 = vsel %vm944, %v648, 0
      %v949 = vsel %vm944, %v794, 0
      %951 = vmatprep.subr.mxu0 0.0
      %952 = vmatpush1.xpose.msra.mxu0 %v949
      %953 = vmatprep.subr.mxu0 0.0
      %954 = vmatpush1.xpose.msra.mxu0 0.0
      %955 = vmatprep.subr.mxu0 0.0
      %956 = vmatpush1.xpose.msra.mxu0 0.0
      %957 = vmatprep.subr.mxu0 0.0
      %958 = vmatpush1.xpose.msra.mxu0 0.0
      %959 = vmatprep.subr.mxu0 0.0
      %960 = vmatpush1.xpose.msra.mxu0 0.0
      %961 = vmatprep.subr.mxu0 0.0
      %962 = vmatpush1.xpose.msra.mxu0 0.0
      %963 = vmatprep.subr.mxu0 0.0
      %964 = vmatpush1.xpose.msra.mxu0 0.0
      %965 = vmatprep.subr.mxu0 0.0
      %966 = vmatpush1.xpose.msra.mxu0 0.0
      %967 = vmatprep.subr.mxu0 0.0
      %968 = vmatpush1.xpose.msra.mxu0 0.0
      %969 = vmatprep.subr.mxu0 0.0
      %970 = vmatpush1.xpose.msra.mxu0 0.0
      %971 = vmatprep.subr.mxu0 0.0
      %972 = vmatpush1.xpose.msra.mxu0 0.0
      %973 = vmatprep.subr.mxu0 0.0
      %974 = vmatpush1.xpose.msra.mxu0 0.0
      %975 = vmatprep.subr.mxu0 0.0
      %976 = vmatpush1.xpose.msra.mxu0 0.0
      %977 = vmatprep.subr.mxu0 0.0
      %978 = vmatpush1.xpose.msra.mxu0 0.0
      %979 = vmatprep.subr.mxu0 0.0
      %980 = vmatpush1.xpose.msra.mxu0 0.0
      %981 = vmatprep.subr.mxu0 0.0
      %982 = vmatpush1.xpose.msra.mxu0 0.0
      %983 = vmatprep.subr.mxu0 0.0
      %984 = vmatpush1.xpose.msra.mxu0 0.0
      %985 = vmatprep.subr.mxu0 0.0
      %986 = vmatpush1.xpose.msra.mxu0 0.0
      %987 = vmatprep.subr.mxu0 0.0
      %988 = vmatpush1.xpose.msra.mxu0 0.0
      %989 = vmatprep.subr.mxu0 0.0
      %990 = vmatpush1.xpose.msra.mxu0 0.0
      %991 = vmatprep.subr.mxu0 0.0
      %992 = vmatpush1.xpose.msra.mxu0 0.0
      %993 = vmatprep.subr.mxu0 0.0
      %994 = vmatpush1.xpose.msra.mxu0 0.0
      %995 = vmatprep.subr.mxu0 0.0
      %996 = vmatpush1.xpose.msra.mxu0 0.0
      %997 = vmatprep.subr.mxu0 0.0
      %998 = vmatpush1.xpose.msra.mxu0 0.0
      %999 = vmatprep.subr.mxu0 0.0
      %1000 = vmatpush1.xpose.msra.mxu0 0.0
      %1001 = vmatprep.subr.mxu0 0.0
      %1002 = vmatpush1.xpose.msra.mxu0 0.0
      %1003 = vmatprep.subr.mxu0 0.0
      %1004 = vmatpush1.xpose.msra.mxu0 0.0
      %1005 = vmatprep.subr.mxu0 0.0
      %1006 = vmatpush1.xpose.msra.mxu0 0.0
      %1007 = vmatprep.subr.mxu0 0.0
      %1008 = vmatpush1.xpose.msra.mxu0 0.0
      %1009 = vmatprep.subr.mxu0 0.0
      %1010 = vmatpush1.xpose.msra.mxu0 0.0
      %1011 = vmatprep.subr.mxu0 0.0
      %1012 = vmatpush1.xpose.msra.mxu0 0.0
      %1013 = vmatprep.subr.mxu0 0.0
      %1014 = vmatpush1.xpose.msra.mxu0 0.0
      %1015 = vmatprep.mubr.f32.mxu0 0.0
      %1016 = vmatmul.mubr.f32.gmra.mrb[0].mxu0 %v946
      %v1017 = vpop.f32.mrb[0].mxu0
      %v1018 = vadd.f32 0.0, %v1017
      %v1019 = vpop.f32.mrb[0].mxu0
      %1020 = vdwg.mxu0
      %v1022 = vsel %vm944, %v649, 0
      %v1025 = vsel %vm944, %v795, 0
      %1027 = vmatprep.subr.mxu0 0.0
      %1028 = vmatpush1.xpose.msra.mxu0 %v1025
      %1029 = vmatprep.subr.mxu0 0.0
      %1030 = vmatpush1.xpose.msra.mxu0 0.0
      %1031 = vmatprep.subr.mxu0 0.0
      %1032 = vmatpush1.xpose.msra.mxu0 0.0
      %1033 = vmatprep.subr.mxu0 0.0
      %1034 = vmatpush1.xpose.msra.mxu0 0.0
      %1035 = vmatprep.subr.mxu0 0.0
      %1036 = vmatpush1.xpose.msra.mxu0 0.0
      %1037 = vmatprep.subr.mxu0 0.0
      %1038 = vmatpush1.xpose.msra.mxu0 0.0
      %1039 = vmatprep.subr.mxu0 0.0
      %1040 = vmatpush1.xpose.msra.mxu0 0.0
      %1041 = vmatprep.subr.mxu0 0.0
      %1042 = vmatpush1.xpose.msra.mxu0 0.0
      %1043 = vmatprep.subr.mxu0 0.0
      %1044 = vmatpush1.xpose.msra.mxu0 0.0
      %1045 = vmatprep.subr.mxu0 0.0
      %1046 = vmatpush1.xpose.msra.mxu0 0.0
      %1047 = vmatprep.subr.mxu0 0.0
      %1048 = vmatpush1.xpose.msra.mxu0 0.0
      %1049 = vmatprep.subr.mxu0 0.0
      %1050 = vmatpush1.xpose.msra.mxu0 0.0
      %1051 = vmatprep.subr.mxu0 0.0
      %1052 = vmatpush1.xpose.msra.mxu0 0.0
      %1053 = vmatprep.subr.mxu0 0.0
      %1054 = vmatpush1.xpose.msra.mxu0 0.0
      %1055 = vmatprep.subr.mxu0 0.0
      %1056 = vmatpush1.xpose.msra.mxu0 0.0
      %1057 = vmatprep.subr.mxu0 0.0
      %1058 = vmatpush1.xpose.msra.mxu0 0.0
      %1059 = vmatprep.subr.mxu0 0.0
      %1060 = vmatpush1.xpose.msra.mxu0 0.0
      %1061 = vmatprep.subr.mxu0 0.0
      %1062 = vmatpush1.xpose.msra.mxu0 0.0
      %1063 = vmatprep.subr.mxu0 0.0
      %1064 = vmatpush1.xpose.msra.mxu0 0.0
      %1065 = vmatprep.subr.mxu0 0.0
      %1066 = vmatpush1.xpose.msra.mxu0 0.0
      %1067 = vmatprep.subr.mxu0 0.0
      %1068 = vmatpush1.xpose.msra.mxu0 0.0
      %1069 = vmatprep.subr.mxu0 0.0
      %1070 = vmatpush1.xpose.msra.mxu0 0.0
      %1071 = vmatprep.subr.mxu0 0.0
      %1072 = vmatpush1.xpose.msra.mxu0 0.0
      %1073 = vmatprep.subr.mxu0 0.0
      %1074 = vmatpush1.xpose.msra.mxu0 0.0
      %1075 = vmatprep.subr.mxu0 0.0
      %1076 = vmatpush1.xpose.msra.mxu0 0.0
      %1077 = vmatprep.subr.mxu0 0.0
      %1078 = vmatpush1.xpose.msra.mxu0 0.0
      %1079 = vmatprep.subr.mxu0 0.0
      %1080 = vmatpush1.xpose.msra.mxu0 0.0
      %1081 = vmatprep.subr.mxu0 0.0
      %1082 = vmatpush1.xpose.msra.mxu0 0.0
      %1083 = vmatprep.subr.mxu0 0.0
      %1084 = vmatpush1.xpose.msra.mxu0 0.0
      %1085 = vmatprep.subr.mxu0 0.0
      %1086 = vmatpush1.xpose.msra.mxu0 0.0
      %1087 = vmatprep.subr.mxu0 0.0
      %1088 = vmatpush1.xpose.msra.mxu0 0.0
      %1089 = vmatprep.subr.mxu0 0.0
      %1090 = vmatpush1.xpose.msra.mxu0 0.0
      %1091 = vmatprep.mubr.f32.mxu0 0.0
      %1092 = vmatmul.mubr.f32.gmra.mrb[0].mxu0 %v1022
      %v1093 = vpop.f32.mrb[0].mxu0
      %v1094 = vadd.f32 0.0, %v1093
      %v1095 = vpop.f32.mrb[0].mxu0
      %1096 = vdwg.mxu0
      %v1098 = vsel %vm944, %v650, 0
      %v1101 = vsel %vm944, %v796, 0
      %1103 = vmatprep.subr.mxu0 0.0
      %1104 = vmatpush1.xpose.msra.mxu0 %v1101
      %1105 = vmatprep.subr.mxu0 0.0
      %1106 = vmatpush1.xpose.msra.mxu0 0.0
      %1107 = vmatprep.subr.mxu0 0.0
      %1108 = vmatpush1.xpose.msra.mxu0 0.0
      %1109 = vmatprep.subr.mxu0 0.0
      %1110 = vmatpush1.xpose.msra.mxu0 0.0
      %1111 = vmatprep.subr.mxu0 0.0
      %1112 = vmatpush1.xpose.msra.mxu0 0.0
      %1113 = vmatprep.subr.mxu0 0.0
      %1114 = vmatpush1.xpose.msra.mxu0 0.0
      %1115 = vmatprep.subr.mxu0 0.0
      %1116 = vmatpush1.xpose.msra.mxu0 0.0
      %1117 = vmatprep.subr.mxu0 0.0
      %1118 = vmatpush1.xpose.msra.mxu0 0.0
      %1119 = vmatprep.subr.mxu0 0.0
      %1120 = vmatpush1.xpose.msra.mxu0 0.0
      %1121 = vmatprep.subr.mxu0 0.0
      %1122 = vmatpush1.xpose.msra.mxu0 0.0
      %1123 = vmatprep.subr.mxu0 0.0
      %1124 = vmatpush1.xpose.msra.mxu0 0.0
      %1125 = vmatprep.subr.mxu0 0.0
      %1126 = vmatpush1.xpose.msra.mxu0 0.0
      %1127 = vmatprep.subr.mxu0 0.0
      %1128 = vmatpush1.xpose.msra.mxu0 0.0
      %1129 = vmatprep.subr.mxu0 0.0
      %1130 = vmatpush1.xpose.msra.mxu0 0.0
      %1131 = vmatprep.subr.mxu0 0.0
      %1132 = vmatpush1.xpose.msra.mxu0 0.0
      %1133 = vmatprep.subr.mxu0 0.0
      %1134 = vmatpush1.xpose.msra.mxu0 0.0
      %1135 = vmatprep.subr.mxu0 0.0
      %1136 = vmatpush1.xpose.msra.mxu0 0.0
      %1137 = vmatprep.subr.mxu0 0.0
      %1138 = vmatpush1.xpose.msra.mxu0 0.0
      %1139 = vmatprep.subr.mxu0 0.0
      %1140 = vmatpush1.xpose.msra.mxu0 0.0
      %1141 = vmatprep.subr.mxu0 0.0
      %1142 = vmatpush1.xpose.msra.mxu0 0.0
      %1143 = vmatprep.subr.mxu0 0.0
      %1144 = vmatpush1.xpose.msra.mxu0 0.0
      %1145 = vmatprep.subr.mxu0 0.0
      %1146 = vmatpush1.xpose.msra.mxu0 0.0
      %1147 = vmatprep.subr.mxu0 0.0
      %1148 = vmatpush1.xpose.msra.mxu0 0.0
      %1149 = vmatprep.subr.mxu0 0.0
      %1150 = vmatpush1.xpose.msra.mxu0 0.0
      %1151 = vmatprep.subr.mxu0 0.0
      %1152 = vmatpush1.xpose.msra.mxu0 0.0
      %1153 = vmatprep.subr.mxu0 0.0
      %1154 = vmatpush1.xpose.msra.mxu0 0.0
      %1155 = vmatprep.subr.mxu0 0.0
      %1156 = vmatpush1.xpose.msra.mxu0 0.0
      %1157 = vmatprep.subr.mxu0 0.0
      %1158 = vmatpush1.xpose.msra.mxu0 0.0
      %1159 = vmatprep.subr.mxu0 0.0
      %1160 = vmatpush1.xpose.msra.mxu0 0.0
      %1161 = vmatprep.subr.mxu0 0.0
      %1162 = vmatpush1.xpose.msra.mxu0 0.0
      %1163 = vmatprep.subr.mxu0 0.0
      %1164 = vmatpush1.xpose.msra.mxu0 0.0
      %1165 = vmatprep.subr.mxu0 0.0
      %1166 = vmatpush1.xpose.msra.mxu0 0.0
      %1167 = vmatprep.mubr.f32.mxu0 0.0
      %1168 = vmatmul.mubr.f32.gmra.mrb[0].mxu0 %v1098
      %v1169 = vpop.f32.mrb[0].mxu0
      %v1170 = vadd.f32 0.0, %v1169
      %v1171 = vpop.f32.mrb[0].mxu0
      %1172 = vdwg.mxu0
      %v1174 = vsel %vm944, %v651, 0
      %v1177 = vsel %vm944, %v797, 0
      %1179 = vmatprep.subr.mxu0 0.0
      %1180 = vmatpush1.xpose.msra.mxu0 %v1177
      %1181 = vmatprep.subr.mxu0 0.0
      %1182 = vmatpush1.xpose.msra.mxu0 0.0
      %1183 = vmatprep.subr.mxu0 0.0
      %1184 = vmatpush1.xpose.msra.mxu0 0.0
      %1185 = vmatprep.subr.mxu0 0.0
      %1186 = vmatpush1.xpose.msra.mxu0 0.0
      %1187 = vmatprep.subr.mxu0 0.0
      %1188 = vmatpush1.xpose.msra.mxu0 0.0
      %1189 = vmatprep.subr.mxu0 0.0
      %1190 = vmatpush1.xpose.msra.mxu0 0.0
      %1191 = vmatprep.subr.mxu0 0.0
      %1192 = vmatpush1.xpose.msra.mxu0 0.0
      %1193 = vmatprep.subr.mxu0 0.0
      %1194 = vmatpush1.xpose.msra.mxu0 0.0
      %1195 = vmatprep.subr.mxu0 0.0
      %1196 = vmatpush1.xpose.msra.mxu0 0.0
      %1197 = vmatprep.subr.mxu0 0.0
      %1198 = vmatpush1.xpose.msra.mxu0 0.0
      %1199 = vmatprep.subr.mxu0 0.0
      %1200 = vmatpush1.xpose.msra.mxu0 0.0
      %1201 = vmatprep.subr.mxu0 0.0
      %1202 = vmatpush1.xpose.msra.mxu0 0.0
      %1203 = vmatprep.subr.mxu0 0.0
      %1204 = vmatpush1.xpose.msra.mxu0 0.0
      %1205 = vmatprep.subr.mxu0 0.0
      %1206 = vmatpush1.xpose.msra.mxu0 0.0
      %1207 = vmatprep.subr.mxu0 0.0
      %1208 = vmatpush1.xpose.msra.mxu0 0.0
      %1209 = vmatprep.subr.mxu0 0.0
      %1210 = vmatpush1.xpose.msra.mxu0 0.0
      %1211 = vmatprep.subr.mxu0 0.0
      %1212 = vmatpush1.xpose.msra.mxu0 0.0
      %1213 = vmatprep.subr.mxu0 0.0
      %1214 = vmatpush1.xpose.msra.mxu0 0.0
      %1215 = vmatprep.subr.mxu0 0.0
      %1216 = vmatpush1.xpose.msra.mxu0 0.0
      %1217 = vmatprep.subr.mxu0 0.0
      %1218 = vmatpush1.xpose.msra.mxu0 0.0
      %1219 = vmatprep.subr.mxu0 0.0
      %1220 = vmatpush1.xpose.msra.mxu0 0.0
      %1221 = vmatprep.subr.mxu0 0.0
      %1222 = vmatpush1.xpose.msra.mxu0 0.0
      %1223 = vmatprep.subr.mxu0 0.0
      %1224 = vmatpush1.xpose.msra.mxu0 0.0
      %1225 = vmatprep.subr.mxu0 0.0
      %1226 = vmatpush1.xpose.msra.mxu0 0.0
      %1227 = vmatprep.subr.mxu0 0.0
      %1228 = vmatpush1.xpose.msra.mxu0 0.0
      %1229 = vmatprep.subr.mxu0 0.0
      %1230 = vmatpush1.xpose.msra.mxu0 0.0
      %1231 = vmatprep.subr.mxu0 0.0
      %1232 = vmatpush1.xpose.msra.mxu0 0.0
      %1233 = vmatprep.subr.mxu0 0.0
      %1234 = vmatpush1.xpose.msra.mxu0 0.0
      %1235 = vmatprep.subr.mxu0 0.0
      %1236 = vmatpush1.xpose.msra.mxu0 0.0
      %1237 = vmatprep.subr.mxu0 0.0
      %1238 = vmatpush1.xpose.msra.mxu0 0.0
      %1239 = vmatprep.subr.mxu0 0.0
      %1240 = vmatpush1.xpose.msra.mxu0 0.0
      %1241 = vmatprep.subr.mxu0 0.0
      %1242 = vmatpush1.xpose.msra.mxu0 0.0
      %1243 = vmatprep.mubr.f32.mxu0 0.0
      %1244 = vmatmul.mubr.f32.gmra.mrb[0].mxu0 %v1174
      %v1245 = vpop.f32.mrb[0].mxu0
      %v1246 = vadd.f32 0.0, %v1245
      %v1247 = vpop.f32.mrb[0].mxu0
      %1248 = vdwg.mxu0
      %v1249 = vsel %vm944, %v1018, -inf
      %1250 = vmax.xlane.f32.xlu0 %v1249
      %v1251 = vpop.xlane.xlu0 %1250
      %v1252 = vsel %vm944, %v1094, -inf
      %1253 = vmax.xlane.f32.xlu0 %v1252
      %v1254 = vpop.xlane.xlu0 %1253
      %v1255 = vsel %vm944, %v1170, -inf
      %1256 = vmax.xlane.f32.xlu0 %v1255
      %v1257 = vpop.xlane.xlu0 %1256
      %v1258 = vsel %vm944, %v1246, -inf
      %1259 = vmax.xlane.f32.xlu0 %v1258
      %v1260 = vpop.xlane.xlu0 %1259
      %v1261 = vsub.f32 %v1018, %v1251
      %v1262 = vsub.f32 %v1094, %v1254
      %v1263 = vsub.f32 %v1170, %v1257
      %v1264 = vsub.f32 %v1246, %v1260
      %v1265 = vmul.f32 %v1261, 1.442695
      %v1266 = vpow.pop %v1265
      %v1267 = vmul.f32 %v1262, 1.442695
      %v1268 = vpow.pop %v1267
      %v1269 = vmul.f32 %v1263, 1.442695
      %v1270 = vpow.pop %v1269
      %v1271 = vmul.f32 %v1264, 1.442695
      %v1272 = vpow.pop %v1271
      %v1273 = vsel %vm944, %v1266, 0.0
      %1274 = vadd.xlane.f32.xlu0 %v1273
      %v1275 = vpop.xlane.xlu0 %1274
      %v1276 = vsel %vm944, %v1268, 0.0
      %1277 = vadd.xlane.f32.xlu0 %v1276
      %v1278 = vpop.xlane.xlu0 %1277
      %v1279 = vsel %vm944, %v1270, 0.0
      %1280 = vadd.xlane.f32.xlu0 %v1279
      %v1281 = vpop.xlane.xlu0 %1280
      %v1282 = vsel %vm944, %v1272, 0.0
      %1283 = vadd.xlane.f32.xlu0 %v1282
      %v1284 = vpop.xlane.xlu0 %1283
      %v1285 = vrcp.pop %v1275
      %v1286 = vrcp.pop %v1278
      %v1287 = vrcp.pop %v1281
      %v1288 = vrcp.pop %v1284
      %v1289 = vmul.f32 %v1266, %v1285
      %v1290 = vmul.f32 %v1268, %v1286
      %v1291 = vmul.f32 %v1270, %v1287
      %v1292 = vmul.f32 %v1272, %v1288
      %v1294 = vsel %vm944, %v1289, 0
      %1296 = vmatprep.subr.mxu0 0.0
      %1297 = vmatpush1.msra.mxu0 %v940
      %1298 = vmatprep.subr.mxu0 0.0
      %1299 = vmatpush1.msra.mxu0 0.0
      %1300 = vmatprep.subr.mxu0 0.0
      %1301 = vmatpush1.msra.mxu0 0.0
      %1302 = vmatprep.subr.mxu0 0.0
      %1303 = vmatpush1.msra.mxu0 0.0
      %1304 = vmatprep.subr.mxu0 0.0
      %1305 = vmatpush1.msra.mxu0 0.0
      %1306 = vmatprep.subr.mxu0 0.0
      %1307 = vmatpush1.msra.mxu0 0.0
      %1308 = vmatprep.subr.mxu0 0.0
      %1309 = vmatpush1.msra.mxu0 0.0
      %1310 = vmatprep.subr.mxu0 0.0
      %1311 = vmatpush1.msra.mxu0 0.0
      %1312 = vmatprep.subr.mxu0 0.0
      %1313 = vmatpush1.msra.mxu0 0.0
      %1314 = vmatprep.subr.mxu0 0.0
      %1315 = vmatpush1.msra.mxu0 0.0
      %1316 = vmatprep.subr.mxu0 0.0
      %1317 = vmatpush1.msra.mxu0 0.0
      %1318 = vmatprep.subr.mxu0 0.0
      %1319 = vmatpush1.msra.mxu0 0.0
      %1320 = vmatprep.subr.mxu0 0.0
      %1321 = vmatpush1.msra.mxu0 0.0
      %1322 = vmatprep.subr.mxu0 0.0
      %1323 = vmatpush1.msra.mxu0 0.0
      %1324 = vmatprep.subr.mxu0 0.0
      %1325 = vmatpush1.msra.mxu0 0.0
      %1326 = vmatprep.subr.mxu0 0.0
      %1327 = vmatpush1.msra.mxu0 0.0
      %1328 = vmatprep.subr.mxu0 0.0
      %1329 = vmatpush1.msra.mxu0 0.0
      %1330 = vmatprep.subr.mxu0 0.0
      %1331 = vmatpush1.msra.mxu0 0.0
      %1332 = vmatprep.subr.mxu0 0.0
      %1333 = vmatpush1.msra.mxu0 0.0
      %1334 = vmatprep.subr.mxu0 0.0
      %1335 = vmatpush1.msra.mxu0 0.0
      %1336 = vmatprep.subr.mxu0 0.0
      %1337 = vmatpush1.msra.mxu0 0.0
      %1338 = vmatprep.subr.mxu0 0.0
      %1339 = vmatpush1.msra.mxu0 0.0
      %1340 = vmatprep.subr.mxu0 0.0
      %1341 = vmatpush1.msra.mxu0 0.0
      %1342 = vmatprep.subr.mxu0 0.0
      %1343 = vmatpush1.msra.mxu0 0.0
      %1344 = vmatprep.subr.mxu0 0.0
      %1345 = vmatpush1.msra.mxu0 0.0
      %1346 = vmatprep.subr.mxu0 0.0
      %1347 = vmatpush1.msra.mxu0 0.0
      %1348 = vmatprep.subr.mxu0 0.0
      %1349 = vmatpush1.msra.mxu0 0.0
      %1350 = vmatprep.subr.mxu0 0.0
      %1351 = vmatpush1.msra.mxu0 0.0
      %1352 = vmatprep.subr.mxu0 0.0
      %1353 = vmatpush1.msra.mxu0 0.0
      %1354 = vmatprep.subr.mxu0 0.0
      %1355 = vmatpush1.msra.mxu0 0.0
      %1356 = vmatprep.subr.mxu0 0.0
      %1357 = vmatpush1.msra.mxu0 0.0
      %1358 = vmatprep.subr.mxu0 0.0
      %1359 = vmatpush1.msra.mxu0 0.0
      %1360 = vmatprep.mubr.f32.mxu0 0.0
      %1361 = vmatmul.mubr.f32.gmra.mrb[0].mxu0 %v1294
      %v1362 = vpop.f32.mrb[0].mxu0
      %v1363 = vadd.f32 0.0, %v1362
      %v1364 = vpop.f32.mrb[0].mxu0
      %1365 = vdwg.mxu0
      %v1367 = vsel %vm944, %v1290, 0
      %1369 = vmatprep.subr.mxu0 0.0
      %1370 = vmatpush1.msra.mxu0 %v941
      %1371 = vmatprep.subr.mxu0 0.0
      %1372 = vmatpush1.msra.mxu0 0.0
      %1373 = vmatprep.subr.mxu0 0.0
      %1374 = vmatpush1.msra.mxu0 0.0
      %1375 = vmatprep.subr.mxu0 0.0
      %1376 = vmatpush1.msra.mxu0 0.0
      %1377 = vmatprep.subr.mxu0 0.0
      %1378 = vmatpush1.msra.mxu0 0.0
      %1379 = vmatprep.subr.mxu0 0.0
      %1380 = vmatpush1.msra.mxu0 0.0
      %1381 = vmatprep.subr.mxu0 0.0
      %1382 = vmatpush1.msra.mxu0 0.0
      %1383 = vmatprep.subr.mxu0 0.0
      %1384 = vmatpush1.msra.mxu0 0.0
      %1385 = vmatprep.subr.mxu0 0.0
      %1386 = vmatpush1.msra.mxu0 0.0
      %1387 = vmatprep.subr.mxu0 0.0
      %1388 = vmatpush1.msra.mxu0 0.0
      %1389 = vmatprep.subr.mxu0 0.0
      %1390 = vmatpush1.msra.mxu0 0.0
      %1391 = vmatprep.subr.mxu0 0.0
      %1392 = vmatpush1.msra.mxu0 0.0
      %1393 = vmatprep.subr.mxu0 0.0
      %1394 = vmatpush1.msra.mxu0 0.0
      %1395 = vmatprep.subr.mxu0 0.0
      %1396 = vmatpush1.msra.mxu0 0.0
      %1397 = vmatprep.subr.mxu0 0.0
      %1398 = vmatpush1.msra.mxu0 0.0
      %1399 = vmatprep.subr.mxu0 0.0
      %1400 = vmatpush1.msra.mxu0 0.0
      %1401 = vmatprep.subr.mxu0 0.0
      %1402 = vmatpush1.msra.mxu0 0.0
      %1403 = vmatprep.subr.mxu0 0.0
      %1404 = vmatpush1.msra.mxu0 0.0
      %1405 = vmatprep.subr.mxu0 0.0
      %1406 = vmatpush1.msra.mxu0 0.0
      %1407 = vmatprep.subr.mxu0 0.0
      %1408 = vmatpush1.msra.mxu0 0.0
      %1409 = vmatprep.subr.mxu0 0.0
      %1410 = vmatpush1.msra.mxu0 0.0
      %1411 = vmatprep.subr.mxu0 0.0
      %1412 = vmatpush1.msra.mxu0 0.0
      %1413 = vmatprep.subr.mxu0 0.0
      %1414 = vmatpush1.msra.mxu0 0.0
      %1415 = vmatprep.subr.mxu0 0.0
      %1416 = vmatpush1.msra.mxu0 0.0
      %1417 = vmatprep.subr.mxu0 0.0
      %1418 = vmatpush1.msra.mxu0 0.0
      %1419 = vmatprep.subr.mxu0 0.0
      %1420 = vmatpush1.msra.mxu0 0.0
      %1421 = vmatprep.subr.mxu0 0.0
      %1422 = vmatpush1.msra.mxu0 0.0
      %1423 = vmatprep.subr.mxu0 0.0
      %1424 = vmatpush1.msra.mxu0 0.0
      %1425 = vmatprep.subr.mxu0 0.0
      %1426 = vmatpush1.msra.mxu0 0.0
      %1427 = vmatprep.subr.mxu0 0.0
      %1428 = vmatpush1.msra.mxu0 0.0
      %1429 = vmatprep.subr.mxu0 0.0
      %1430 = vmatpush1.msra.mxu0 0.0
      %1431 = vmatprep.subr.mxu0 0.0
      %1432 = vmatpush1.msra.mxu0 0.0
      %1433 = vmatprep.mubr.f32.mxu0 0.0
      %1434 = vmatmul.mubr.f32.gmra.mrb[0].mxu0 %v1367
      %v1435 = vpop.f32.mrb[0].mxu0
      %v1436 = vadd.f32 0.0, %v1435
      %v1437 = vpop.f32.mrb[0].mxu0
      %1438 = vdwg.mxu0
      %v1440 = vsel %vm944, %v1291, 0
      %1442 = vmatprep.subr.mxu0 0.0
      %1443 = vmatpush1.msra.mxu0 %v942
      %1444 = vmatprep.subr.mxu0 0.0
      %1445 = vmatpush1.msra.mxu0 0.0
      %1446 = vmatprep.subr.mxu0 0.0
      %1447 = vmatpush1.msra.mxu0 0.0
      %1448 = vmatprep.subr.mxu0 0.0
      %1449 = vmatpush1.msra.mxu0 0.0
      %1450 = vmatprep.subr.mxu0 0.0
      %1451 = vmatpush1.msra.mxu0 0.0
      %1452 = vmatprep.subr.mxu0 0.0
      %1453 = vmatpush1.msra.mxu0 0.0
      %1454 = vmatprep.subr.mxu0 0.0
      %1455 = vmatpush1.msra.mxu0 0.0
      %1456 = vmatprep.subr.mxu0 0.0
      %1457 = vmatpush1.msra.mxu0 0.0
      %1458 = vmatprep.subr.mxu0 0.0
      %1459 = vmatpush1.msra.mxu0 0.0
      %1460 = vmatprep.subr.mxu0 0.0
      %1461 = vmatpush1.msra.mxu0 0.0
      %1462 = vmatprep.subr.mxu0 0.0
      %1463 = vmatpush1.msra.mxu0 0.0
      %1464 = vmatprep.subr.mxu0 0.0
      %1465 = vmatpush1.msra.mxu0 0.0
      %1466 = vmatprep.subr.mxu0 0.0
      %1467 = vmatpush1.msra.mxu0 0.0
      %1468 = vmatprep.subr.mxu0 0.0
      %1469 = vmatpush1.msra.mxu0 0.0
      %1470 = vmatprep.subr.mxu0 0.0
      %1471 = vmatpush1.msra.mxu0 0.0
      %1472 = vmatprep.subr.mxu0 0.0
      %1473 = vmatpush1.msra.mxu0 0.0
      %1474 = vmatprep.subr.mxu0 0.0
      %1475 = vmatpush1.msra.mxu0 0.0
      %1476 = vmatprep.subr.mxu0 0.0
      %1477 = vmatpush1.msra.mxu0 0.0
      %1478 = vmatprep.subr.mxu0 0.0
      %1479 = vmatpush1.msra.mxu0 0.0
      %1480 = vmatprep.subr.mxu0 0.0
      %1481 = vmatpush1.msra.mxu0 0.0
      %1482 = vmatprep.subr.mxu0 0.0
      %1483 = vmatpush1.msra.mxu0 0.0
      %1484 = vmatprep.subr.mxu0 0.0
      %1485 = vmatpush1.msra.mxu0 0.0
      %1486 = vmatprep.subr.mxu0 0.0
      %1487 = vmatpush1.msra.mxu0 0.0
      %1488 = vmatprep.subr.mxu0 0.0
      %1489 = vmatpush1.msra.mxu0 0.0
      %1490 = vmatprep.subr.mxu0 0.0
      %1491 = vmatpush1.msra.mxu0 0.0
      %1492 = vmatprep.subr.mxu0 0.0
      %1493 = vmatpush1.msra.mxu0 0.0
      %1494 = vmatprep.subr.mxu0 0.0
      %1495 = vmatpush1.msra.mxu0 0.0
      %1496 = vmatprep.subr.mxu0 0.0
      %1497 = vmatpush1.msra.mxu0 0.0
      %1498 = vmatprep.subr.mxu0 0.0
      %1499 = vmatpush1.msra.mxu0 0.0
      %1500 = vmatprep.subr.mxu0 0.0
      %1501 = vmatpush1.msra.mxu0 0.0
      %1502 = vmatprep.subr.mxu0 0.0
      %1503 = vmatpush1.msra.mxu0 0.0
      %1504 = vmatprep.subr.mxu0 0.0
      %1505 = vmatpush1.msra.mxu0 0.0
      %1506 = vmatprep.mubr.f32.mxu0 0.0
      %1507 = vmatmul.mubr.f32.gmra.mrb[0].mxu0 %v1440
      %v1508 = vpop.f32.mrb[0].mxu0
      %v1509 = vadd.f32 0.0, %v1508
      %v1510 = vpop.f32.mrb[0].mxu0
      %1511 = vdwg.mxu0
      %v1513 = vsel %vm944, %v1292, 0
      %1515 = vmatprep.subr.mxu0 0.0
      %1516 = vmatpush1.msra.mxu0 %v943
      %1517 = vmatprep.subr.mxu0 0.0
      %1518 = vmatpush1.msra.mxu0 0.0
      %1519 = vmatprep.subr.mxu0 0.0
      %1520 = vmatpush1.msra.mxu0 0.0
      %1521 = vmatprep.subr.mxu0 0.0
      %1522 = vmatpush1.msra.mxu0 0.0
      %1523 = vmatprep.subr.mxu0 0.0
      %1524 = vmatpush1.msra.mxu0 0.0
      %1525 = vmatprep.subr.mxu0 0.0
      %1526 = vmatpush1.msra.mxu0 0.0
      %1527 = vmatprep.subr.mxu0 0.0
      %1528 = vmatpush1.msra.mxu0 0.0
      %1529 = vmatprep.subr.mxu0 0.0
      %1530 = vmatpush1.msra.mxu0 0.0
      %1531 = vmatprep.subr.mxu0 0.0
      %1532 = vmatpush1.msra.mxu0 0.0
      %1533 = vmatprep.subr.mxu0 0.0
      %1534 = vmatpush1.msra.mxu0 0.0
      %1535 = vmatprep.subr.mxu0 0.0
      %1536 = vmatpush1.msra.mxu0 0.0
      %1537 = vmatprep.subr.mxu0 0.0
      %1538 = vmatpush1.msra.mxu0 0.0
      %1539 = vmatprep.subr.mxu0 0.0
      %1540 = vmatpush1.msra.mxu0 0.0
      %1541 = vmatprep.subr.mxu0 0.0
      %1542 = vmatpush1.msra.mxu0 0.0
      %1543 = vmatprep.subr.mxu0 0.0
      %1544 = vmatpush1.msra.mxu0 0.0
      %1545 = vmatprep.subr.mxu0 0.0
      %1546 = vmatpush1.msra.mxu0 0.0
      %1547 = vmatprep.subr.mxu0 0.0
      %1548 = vmatpush1.msra.mxu0 0.0
      %1549 = vmatprep.subr.mxu0 0.0
      %1550 = vmatpush1.msra.mxu0 0.0
      %1551 = vmatprep.subr.mxu0 0.0
      %1552 = vmatpush1.msra.mxu0 0.0
      %1553 = vmatprep.subr.mxu0 0.0
      %1554 = vmatpush1.msra.mxu0 0.0
      %1555 = vmatprep.subr.mxu0 0.0
      %1556 = vmatpush1.msra.mxu0 0.0
      %1557 = vmatprep.subr.mxu0 0.0
      %1558 = vmatpush1.msra.mxu0 0.0
      %1559 = vmatprep.subr.mxu0 0.0
      %1560 = vmatpush1.msra.mxu0 0.0
      %1561 = vmatprep.subr.mxu0 0.0
      %1562 = vmatpush1.msra.mxu0 0.0
      %1563 = vmatprep.subr.mxu0 0.0
      %1564 = vmatpush1.msra.mxu0 0.0
      %1565 = vmatprep.subr.mxu0 0.0
      %1566 = vmatpush1.msra.mxu0 0.0
      %1567 = vmatprep.subr.mxu0 0.0
      %1568 = vmatpush1.msra.mxu0 0.0
      %1569 = vmatprep.subr.mxu0 0.0
      %1570 = vmatpush1.msra.mxu0 0.0
      %1571 = vmatprep.subr.mxu0 0.0
      %1572 = vmatpush1.msra.mxu0 0.0
      %1573 = vmatprep.subr.mxu0 0.0
      %1574 = vmatpush1.msra.mxu0 0.0
      %1575 = vmatprep.subr.mxu0 0.0
      %1576 = vmatpush1.msra.mxu0 0.0
      %1577 = vmatprep.subr.mxu0 0.0
      %1578 = vmatpush1.msra.mxu0 0.0
      %1579 = vmatprep.mubr.f32.mxu0 0.0
      %1580 = vmatmul.mubr.f32.gmra.mrb[0].mxu0 %v1513
      %v1581 = vpop.f32.mrb[0].mxu0
      %v1582 = vadd.f32 0.0, %v1581
      %v1583 = vpop.f32.mrb[0].mxu0
      %1584 = vdwg.mxu0
      %v1585 = vcombine.low %v1363, %v1509
      %v1586 = vcombine.high %v1363, %v1509
      %v1588 = vunpack.c.l.s4 1983009808
      %v1589 = vunpack.c.0.s8 %v1588
      %v1590 = vlaneseq
      %v1591 = vshrl.u32 %v1590, 7
      %v1592 = vsub.s32 %v1589, %v1591
      %v1593 = vrot.slane %v1585, %v1592
      %v1595 = vunpack.c.l.s4 1983009808
      %v1596 = vunpack.c.0.s8 %v1595
      %v1597 = vlaneseq
      %v1598 = vshrl.u32 %v1597, 7
      %v1599 = vsub.s32 %v1596, %v1598
      %v1600 = vrot.slane %v1586, %v1599
      %v1601 = vcombine.low %v1436, %v1582
      %v1602 = vcombine.high %v1436, %v1582
      %v1604 = vunpack.c.l.s4 1983009808
      %v1605 = vunpack.c.0.s8 %v1604
      %v1606 = vlaneseq
      %v1607 = vshrl.u32 %v1606, 7
      %v1608 = vsub.s32 %v1605, %v1607
      %v1609 = vrot.slane %v1601, %v1608
      %v1611 = vunpack.c.l.s4 1983009808
      %v1612 = vunpack.c.0.s8 %v1611
      %v1613 = vlaneseq
      %v1614 = vshrl.u32 %v1613, 7
      %v1615 = vsub.s32 %v1612, %v1614
      %v1616 = vrot.slane %v1602, %v1615
      %v1617 = vcombine.low %v1593, %v1609
      %v1618 = vcombine.high %v1593, %v1609
      %v1620 = vunpack.c.l.s4 1934713408
      %v1621 = vunpack.c.0.s8 %v1620
      %v1622 = vlaneseq
      %v1623 = vshrl.u32 %v1622, 7
      %v1624 = vsub.s32 %v1621, %v1623
      %v1625 = vrot.slane %v1617, %v1624
      %v1627 = vunpack.c.l.s4 1934713408
      %v1628 = vunpack.c.0.s8 %v1627
      %v1629 = vlaneseq
      %v1630 = vshrl.u32 %v1629, 7
      %v1631 = vsub.s32 %v1628, %v1630
      %v1632 = vrot.slane %v1618, %v1631
      %v1633 = vcombine.low %v1600, %v1616
      %v1634 = vcombine.high %v1600, %v1616
      %v1636 = vunpack.c.l.s4 1934713408
      %v1637 = vunpack.c.0.s8 %v1636
      %v1638 = vlaneseq
      %v1639 = vshrl.u32 %v1638, 7
      %v1640 = vsub.s32 %v1637, %v1639
      %v1641 = vrot.slane %v1633, %v1640
      %v1643 = vunpack.c.l.s4 1934713408
      %v1644 = vunpack.c.0.s8 %v1643
      %v1645 = vlaneseq
      %v1646 = vshrl.u32 %v1645, 7
      %v1647 = vsub.s32 %v1644, %v1646
      %v1648 = vrot.slane %v1634, %v1647
      %v1649 = vcombine.high %v1625, 0.0
      %v1650 = vcombine.high %v1632, 0.0
      %v1651 = vcombine.high %v1641, 0.0
      %v1652 = vcombine.high %v1648, 0.0
      %v1653 = vcombine.low %v1625, %v1632
      %v1655 = vunpack.c.l.s4 1983009808
      %v1656 = vunpack.c.0.s8 %v1655
      %v1657 = vlaneseq
      %v1658 = vshrl.u32 %v1657, 7
      %v1659 = vsub.s32 %v1656, %v1658
      %v1660 = vrot.slane %v1653, %v1659
      %v1661 = vcombine.low %v1649, %v1650
      %v1663 = vunpack.c.l.s4 1983009808
      %v1664 = vunpack.c.0.s8 %v1663
      %v1665 = vlaneseq
      %v1666 = vshrl.u32 %v1665, 7
      %v1667 = vsub.s32 %v1664, %v1666
      %v1668 = vrot.slane %v1661, %v1667
      %v1669 = vcombine.low %v1641, %v1648
      %v1671 = vunpack.c.l.s4 1983009808
      %v1672 = vunpack.c.0.s8 %v1671
      %v1673 = vlaneseq
      %v1674 = vshrl.u32 %v1673, 7
      %v1675 = vsub.s32 %v1672, %v1674
      %v1676 = vrot.slane %v1669, %v1675
      %v1677 = vcombine.low %v1651, %v1652
      %v1679 = vunpack.c.l.s4 1983009808
      %v1680 = vunpack.c.0.s8 %v1679
      %v1681 = vlaneseq
      %v1682 = vshrl.u32 %v1681, 7
      %v1683 = vsub.s32 %v1680, %v1682
      %v1684 = vrot.slane %v1677, %v1683
      %v1685 = vcombine.low %v1660, %v1668
      %v1686 = vcombine.high %v1660, %v1668
      %v1688 = vunpack.c.l.s4 1934713408
      %v1689 = vunpack.c.0.s8 %v1688
      %v1690 = vlaneseq
      %v1691 = vshrl.u32 %v1690, 7
      %v1692 = vsub.s32 %v1689, %v1691
      %v1693 = vrot.slane %v1685, %v1692
      %v1695 = vunpack.c.l.s4 1934713408
      %v1696 = vunpack.c.0.s8 %v1695
      %v1697 = vlaneseq
      %v1698 = vshrl.u32 %v1697, 7
      %v1699 = vsub.s32 %v1696, %v1698
      %v1700 = vrot.slane %v1686, %v1699
      %v1701 = vcombine.low %v1676, %v1684
      %v1702 = vcombine.high %v1676, %v1684
      %v1704 = vunpack.c.l.s4 1934713408
      %v1705 = vunpack.c.0.s8 %v1704
      %v1706 = vlaneseq
      %v1707 = vshrl.u32 %v1706, 7
      %v1708 = vsub.s32 %v1705, %v1707
      %v1709 = vrot.slane %v1701, %v1708
      %v1711 = vunpack.c.l.s4 1934713408
      %v1712 = vunpack.c.0.s8 %v1711
      %v1713 = vlaneseq
      %v1714 = vshrl.u32 %v1713, 7
      %v1715 = vsub.s32 %v1712, %v1714
      %v1716 = vrot.slane %v1702, %v1715
      %v1717 = vcombine.low %v1693, %v1709
      %v1718 = vcombine.high %v1693, %v1709
      %v1719 = vcombine.low %v1700, %v1716
      %v1720 = vcombine.high %v1700, %v1716
      %1722 = vrot.lane.b32.xlu0 %v1718, 8
      %v1723 = vpop.permute.xlu0 %1722
      %1726 = vrot.lane.b32.xlu0 %v1719, 16
      %v1727 = vpop.permute.xlu0 %1726
      %1730 = vrot.lane.b32.xlu0 %v1720, 24
      %v1731 = vpop.permute.xlu0 %1730
      %v1733 = vsel %vm944, %v1717, %v1723
      %vm1734 = vcmask 130048
      %v1735 = vsel %vm1734, %v1733, %v1727
      %vm1736 = vcmask 195584
      %v1737 = vsel %vm1736, %v1735, %v1731
      %v1738 = vld [vmem:[%s4] sm:$0xff]
      %v1739 = vld [vmem:[%s4 + $0x8] sm:$0xff]
      %v1740 = vld [vmem:[%s4 + $0x10] sm:$0xff]
      %v1741 = vld [vmem:[%s4 + $0x18] sm:$0xff]
      %v1742 = vld [vmem:[%s5] sm:$0x1]
      %v1744 = vlaneseq
      %v1745 = vshrl.u32 %v1744, 7
      %v1746 = vsub.s32 0, %v1745
      %v1747 = vrot.slane %v1742, %v1746
      %v1750 = vsel %vm248, %v1737, 0
      %1752 = vmatprep.subr.mxu0 0.0
      %1753 = vmatpush1.msra.mxu0 %v1738
      %1754 = vmatprep.subr.mxu0 0.0
      %1755 = vmatpush1.msra.mxu0 %v1739
      %1756 = vmatprep.subr.mxu0 0.0
      %1757 = vmatpush1.msra.mxu0 %v1740
      %1758 = vmatprep.subr.mxu0 0.0
      %1759 = vmatpush1.msra.mxu0 %v1741
      %1760 = vmatprep.subr.mxu0 0.0
      %1761 = vmatpush1.msra.mxu0 0.0
      %1762 = vmatprep.subr.mxu0 0.0
      %1763 = vmatpush1.msra.mxu0 0.0
      %1764 = vmatprep.subr.mxu0 0.0
      %1765 = vmatpush1.msra.mxu0 0.0
      %1766 = vmatprep.subr.mxu0 0.0
      %1767 = vmatpush1.msra.mxu0 0.0
      %1768 = vmatprep.subr.mxu0 0.0
      %1769 = vmatpush1.msra.mxu0 0.0
      %1770 = vmatprep.subr.mxu0 0.0
      %1771 = vmatpush1.msra.mxu0 0.0
      %1772 = vmatprep.subr.mxu0 0.0
      %1773 = vmatpush1.msra.mxu0 0.0
      %1774 = vmatprep.subr.mxu0 0.0
      %1775 = vmatpush1.msra.mxu0 0.0
      %1776 = vmatprep.subr.mxu0 0.0
      %1777 = vmatpush1.msra.mxu0 0.0
      %1778 = vmatprep.subr.mxu0 0.0
      %1779 = vmatpush1.msra.mxu0 0.0
      %1780 = vmatprep.subr.mxu0 0.0
      %1781 = vmatpush1.msra.mxu0 0.0
      %1782 = vmatprep.subr.mxu0 0.0
      %1783 = vmatpush1.msra.mxu0 0.0
      %1784 = vmatprep.subr.mxu0 0.0
      %1785 = vmatpush1.msra.mxu0 0.0
      %1786 = vmatprep.subr.mxu0 0.0
      %1787 = vmatpush1.msra.mxu0 0.0
      %1788 = vmatprep.subr.mxu0 0.0
      %1789 = vmatpush1.msra.mxu0 0.0
      %1790 = vmatprep.subr.mxu0 0.0
      %1791 = vmatpush1.msra.mxu0 0.0
      %1792 = vmatprep.subr.mxu0 0.0
      %1793 = vmatpush1.msra.mxu0 0.0
      %1794 = vmatprep.subr.mxu0 0.0
      %1795 = vmatpush1.msra.mxu0 0.0
      %1796 = vmatprep.subr.mxu0 0.0
      %1797 = vmatpush1.msra.mxu0 0.0
      %1798 = vmatprep.subr.mxu0 0.0
      %1799 = vmatpush1.msra.mxu0 0.0
      %1800 = vmatprep.subr.mxu0 0.0
      %1801 = vmatpush1.msra.mxu0 0.0
      %1802 = vmatprep.subr.mxu0 0.0
      %1803 = vmatpush1.msra.mxu0 0.0
      %1804 = vmatprep.subr.mxu0 0.0
      %1805 = vmatpush1.msra.mxu0 0.0
      %1806 = vmatprep.subr.mxu0 0.0
      %1807 = vmatpush1.msra.mxu0 0.0
      %1808 = vmatprep.subr.mxu0 0.0
      %1809 = vmatpush1.msra.mxu0 0.0
      %1810 = vmatprep.subr.mxu0 0.0
      %1811 = vmatpush1.msra.mxu0 0.0
      %1812 = vmatprep.subr.mxu0 0.0
      %1813 = vmatpush1.msra.mxu0 0.0
      %1814 = vmatprep.subr.mxu0 0.0
      %1815 = vmatpush1.msra.mxu0 0.0
      %1816 = vmatprep.mubr.f32.mxu0 0.0
      %1817 = vmatmul.mubr.f32.gmra.mrb[0].mxu0 %v1750
      %v1818 = vpop.f32.mrb[0].mxu0
      %v1819 = vadd.f32 %v1747, %v1818
      %v1820 = vpop.f32.mrb[0].mxu0
      %1821 = vdwg.mxu0
      %v1822 = vadd.f32 %v1819, %v247
      %1823 = vst.msk [vmem:[%s246] sm:$0xff] %vm248, %v1822
      %p1824 = scmp.lt.s32.totalorder %s17, 1
      %s1825 = scalar_select %p1824, %s17, 1
      %s1826 = smul.addr %s1825, 8
      %s1827 = scalar_lea.vmem %s6, %s1826
      // Predicated region
      $region45: #{cross_transformer.8} parent=43 // pred_check
        %p1828 = pneg %p166
      $region46: #{cross_transformer.8} parent=43 // pred_check_branch
        %1830 = sbr.rel (%p1828) target = $region48
      $region47: #{cross_transformer.8} parent=43 // pred_region
        _
      $region48: #{cross_transformer.8} parent=43 // pred_fallthru
        _
    $region44: #{cross_transformer.8} parent=5 // pred_fallthru
      _
    %p1831 = scmp.le.s32.totalorder 2, %s12
    // Predicated region
    $region49: #{cross_transformer.8} parent=5 // pred_check
      %p1832 = pneg %p1831
    $region50: #{cross_transformer.8} parent=5 // pred_check_branch
      %1834 = sbr.rel (%p1832) target = $region52
    $region51: #{cross_transformer.8} parent=5 // pred_region
      %s1835 = ssub.s32 %s12, 2
      // Predicated region
      $region53: #{cross_transformer.8} parent=51 // pred_check
        %p1836 = pneg %p172
      $region54: #{cross_transformer.8} parent=51 // pred_check_branch
        %1838 = sbr.rel (%p1836) target = $region56
      $region55: #{cross_transformer.8} parent=51 // pred_region
        %p1839 = scmp.lt.s32.totalorder %s18, 1
        %s1840 = scalar_select %p1839, %s18, 1
        %s1841 = smul.addr %s1840, 8
        %s1842 = scalar_lea.vmem %s6, %s1841
      $region56: #{cross_transformer.8} parent=51 // pred_fallthru
        _
    $region52: #{cross_transformer.8} parent=5 // pred_fallthru
      _
  $region6: #{cross_transformer.8} parent=0 // loop_footer
    %s16 = sadd.s32 1, %s12
  $region7: #{cross_transformer.8} parent=0 // loop_footer_branch
    %11 = sbr.rel target = $region3
  $region8: #{cross_transformer.8} parent=0 // loop_exit
    _

// kernel: cross_transformer.15
$region0: #{cross_transformer.15}
  #allocation0 [shape = 'u32[]', space=smem, size = 0x4, offset = 0x4, fixed_abs, tag = 'smem constant byte address 0x4 - core index']
  #allocation1 [shape = 'u32[144,128]{1,0:T(1,128)}', space=vmem, size = 0x12000, scoped, tag = 'internal scratch']
  %s0 = inlined_call_operand.vmem [shape: f32[16,32], index: 0, kind: input, shape index: {}]
  %s1 = inlined_call_operand.vmem [shape: f32[1,32], index: 1, kind: input, shape index: {}]
  %s2 = inlined_call_operand.vmem [shape: f32[1,32], index: 2, kind: input, shape index: {}]
  %s3 = inlined_call_operand.vmem [shape: f32[32,64], index: 3, kind: input, shape index: {}]
  %s4 = inlined_call_operand.vmem [shape: f32[1,64], index: 4, kind: input, shape index: {}]
  %s5 = inlined_call_operand.vmem [shape: f32[64,32], index: 5, kind: input, shape index: {}]
  %s6 = inlined_call_operand.vmem [shape: f32[1,32], index: 6, kind: input, shape index: {}]
  %s7 = inlined_call_operand.hbm [shape: f32[16,32], index: 7, kind: output, shape index: {}]
  %s8 = sld [smem:[#allocation0]]
  $region61: #{cross_transformer.15} parent=0
    _
  %s10 = ssub.s32 1, %s8
  %s11 = scalar_select 0, %s10, %s8
  $region1: #{cross_transformer.15} parent=0
    #allocation2 [shape = 'u8[8192]{0}', space=vmem, size = 0x2000, scoped, tag = 'output window, operand 0']
    #allocation3 [shape = 's32[2]{0}', space=sflag, size = 0x8, scoped, tag = 'scoped memory for cross_transformer.15']
    %12 = vsyncpa [#allocation3], 0
    %s13 = scalar_lea.sflag [#allocation3], 1
    %14 = vsyncpa %s13, 0
    loop: start=0, step=1, limit=4
    $region2: #{cross_transformer.15} parent=1 // loop_pre_header
      _
    $region3: #{cross_transformer.15} parent=1 // loop_header
      %s16 = sphi 0, %s20
      %p17 = scmp.ge.s32.totalorder %s16, 4
      %s26 = sphi 0, %s28
      %s29 = sphi 0, %s26
      %s30 = sphi 0, %s29
      %s46 = sphi 0, %s30
      %s50 = sphi 0, %s50
      %s52 = sphi 0, %s50
      %s53 = sphi 0, %s52
      %s67 = sphi 0, %s53
      %s71 = sphi 0, %s71
      %s73 = sphi 0, %s71
      %s74 = sphi 0, %s73
      %s88 = sphi 0, %s74
      %s92 = sphi 0, %s92
      %s94 = sphi 0, %s92
      %s95 = sphi 0, %s94
      %s109 = sphi 0, %s95
      %s113 = sphi 0, %s113
      %s115 = sphi 0, %s113
      %s116 = sphi 0, %s115
      %s130 = sphi 0, %s116
      %s134 = sphi 0, %s134
      %s136 = sphi 0, %s134
      %s137 = sphi 0, %s136
      %s151 = sphi 0, %s137
      %s155 = sphi 0, %s155
      %s157 = sphi 0, %s155
      %s158 = sphi 0, %s157
      %s172 = sphi 0, %s158
      %s178 = sphi 0, %s180
      %s181 = sphi 0, %s178
      %s182 = sphi 0, %s181
      %s198 = sphi 0, %s182
    $region4: #{cross_transformer.15} parent=1 // loop_header_branch
      %19 = sbr.rel (%p17) target = $region8
    $region5: #{cross_transformer.15} parent=1 // loop_body
      %s21 = ssub.s32 %s16, 1
      %s22 = ssub.s32 %s16, 2
      %s23 = sadd.s32 %s16, 1
      %s24 = ssub.s32 %s16, %s23
      %p25 = scmp.eq.s32.totalorder %s24, 0
      %s27 = sadd.s32 %s26, 1
      %s28 = scalar_select %p25, %s26, %s27
      %p31 = pneg %p25
      %p32 = scmp.eq.s32.totalorder %s16, 1
      %p33 = por %p31, %p32
      %p34 = scmp.ne.s32.totalorder %s26, %s29
      %p35 = scmp.eq.s32.totalorder %s16, 0
      %p36 = por %p34, %p35
      %p37 = scmp.ne.s32.totalorder %s26, %s29
      %p38 = scmp.eq.s32.totalorder %s21, 1
      %p39 = por %p37, %p38
      %p40 = scmp.ne.s32.totalorder %s29, %s30
      %p41 = scmp.eq.s32.totalorder %s21, 0
      %p42 = por %p40, %p41
      %p43 = scmp.ne.s32.totalorder %s29, %s30
      %p44 = scmp.eq.s32.totalorder %s22, 1
      %p45 = por %p43, %p44
      %p47 = scmp.ne.s32.totalorder %s30, %s46
      %p48 = scmp.eq.s32.totalorder %s22, 0
      %p49 = por %p47, %p48
      %s51 = sadd.s32 %s50, 1
      %p54 = scmp.eq.s32.totalorder %s16, 1
      %p55 = scmp.ne.s32.totalorder %s50, %s52
      %p56 = scmp.eq.s32.totalorder %s16, 0
      %p57 = por %p55, %p56
      %p58 = scmp.ne.s32.totalorder %s50, %s52
      %p59 = scmp.eq.s32.totalorder %s21, 1
      %p60 = por %p58, %p59
      %p61 = scmp.ne.s32.totalorder %s52, %s53
      %p62 = scmp.eq.s32.totalorder %s21, 0
      %p63 = por %p61, %p62
      %p64 = scmp.ne.s32.totalorder %s52, %s53
      %p65 = scmp.eq.s32.totalorder %s22, 1
      %p66 = por %p64, %p65
      %p68 = scmp.ne.s32.totalorder %s53, %s67
      %p69 = scmp.eq.s32.totalorder %s22, 0
      %p70 = por %p68, %p69
      %s72 = sadd.s32 %s71, 1
      %p75 = scmp.eq.s32.totalorder %s16, 1
      %p76 = scmp.ne.s32.totalorder %s71, %s73
      %p77 = scmp.eq.s32.totalorder %s16, 0
      %p78 = por %p76, %p77
      %p79 = scmp.ne.s32.totalorder %s71, %s73
      %p80 = scmp.eq.s32.totalorder %s21, 1
      %p81 = por %p79, %p80
      %p82 = scmp.ne.s32.totalorder %s73, %s74
      %p83 = scmp.eq.s32.totalorder %s21, 0
      %p84 = por %p82, %p83
      %p85 = scmp.ne.s32.totalorder %s73, %s74
      %p86 = scmp.eq.s32.totalorder %s22, 1
      %p87 = por %p85, %p86
      %p89 = scmp.ne.s32.totalorder %s74, %s88
      %p90 = scmp.eq.s32.totalorder %s22, 0
      %p91 = por %p89, %p90
      %s93 = sadd.s32 %s92, 1
      %p96 = scmp.eq.s32.totalorder %s16, 1
      %p97 = scmp.ne.s32.totalorder %s92, %s94
      %p98 = scmp.eq.s32.totalorder %s16, 0
      %p99 = por %p97, %p98
      %p100 = scmp.ne.s32.totalorder %s92, %s94
      %p101 = scmp.eq.s32.totalorder %s21, 1
      %p102 = por %p100, %p101
      %p103 = scmp.ne.s32.totalorder %s94, %s95
      %p104 = scmp.eq.s32.totalorder %s21, 0
      %p105 = por %p103, %p104
      %p106 = scmp.ne.s32.totalorder %s94, %s95
      %p107 = scmp.eq.s32.totalorder %s22, 1
      %p108 = por %p106, %p107
      %p110 = scmp.ne.s32.totalorder %s95, %s109
      %p111 = scmp.eq.s32.totalorder %s22, 0
      %p112 = por %p110, %p111
      %s114 = sadd.s32 %s113, 1
      %p117 = scmp.eq.s32.totalorder %s16, 1
      %p118 = scmp.ne.s32.totalorder %s113, %s115
      %p119 = scmp.eq.s32.totalorder %s16, 0
      %p120 = por %p118, %p119
      %p121 = scmp.ne.s32.totalorder %s113, %s115
      %p122 = scmp.eq.s32.totalorder %s21, 1
      %p123 = por %p121, %p122
      %p124 = scmp.ne.s32.totalorder %s115, %s116
      %p125 = scmp.eq.s32.totalorder %s21, 0
      %p126 = por %p124, %p125
      %p127 = scmp.ne.s32.totalorder %s115, %s116
      %p128 = scmp.eq.s32.totalorder %s22, 1
      %p129 = por %p127, %p128
      %p131 = scmp.ne.s32.totalorder %s116, %s130
      %p132 = scmp.eq.s32.totalorder %s22, 0
      %p133 = por %p131, %p132
      %s135 = sadd.s32 %s134, 1
      %p138 = scmp.eq.s32.totalorder %s16, 1
      %p139 = scmp.ne.s32.totalorder %s134, %s136
      %p140 = scmp.eq.s32.totalorder %s16, 0
      %p141 = por %p139, %p140
      %p142 = scmp.ne.s32.totalorder %s134, %s136
      %p143 = scmp.eq.s32.totalorder %s21, 1
      %p144 = por %p142, %p143
      %p145 = scmp.ne.s32.totalorder %s136, %s137
      %p146 = scmp.eq.s32.totalorder %s21, 0
      %p147 = por %p145, %p146
      %p148 = scmp.ne.s32.totalorder %s136, %s137
      %p149 = scmp.eq.s32.totalorder %s22, 1
      %p150 = por %p148, %p149
      %p152 = scmp.ne.s32.totalorder %s137, %s151
      %p153 = scmp.eq.s32.totalorder %s22, 0
      %p154 = por %p152, %p153
      %s156 = sadd.s32 %s155, 1
      %p159 = scmp.eq.s32.totalorder %s16, 1
      %p160 = scmp.ne.s32.totalorder %s155, %s157
      %p161 = scmp.eq.s32.totalorder %s16, 0
      %p162 = por %p160, %p161
      %p163 = scmp.ne.s32.totalorder %s155, %s157
      %p164 = scmp.eq.s32.totalorder %s21, 1
      %p165 = por %p163, %p164
      %p166 = scmp.ne.s32.totalorder %s157, %s158
      %p167 = scmp.eq.s32.totalorder %s21, 0
      %p168 = por %p166, %p167
      %p169 = scmp.ne.s32.totalorder %s157, %s158
      %p170 = scmp.eq.s32.totalorder %s22, 1
      %p171 = por %p169, %p170
      %p173 = scmp.ne.s32.totalorder %s158, %s172
      %p174 = scmp.eq.s32.totalorder %s22, 0
      %p175 = por %p173, %p174
      %s176 = ssub.s32 %s16, %s23
      %p177 = scmp.eq.s32.totalorder %s176, 0
      %s179 = sadd.s32 %s178, 1
      %s180 = scalar_select %p177, %s178, %s179
      %p183 = pneg %p177
      %p184 = scmp.eq.s32.totalorder %s16, 1
      %p185 = por %p183, %p184
      %p186 = scmp.ne.s32.totalorder %s178, %s181
      %p187 = scmp.eq.s32.totalorder %s16, 0
      %p188 = por %p186, %p187
      %p189 = scmp.ne.s32.totalorder %s178, %s181
      %p190 = scmp.eq.s32.totalorder %s21, 1
      %p191 = por %p189, %p190
      %p192 = scmp.ne.s32.totalorder %s181, %s182
      %p193 = scmp.eq.s32.totalorder %s21, 0
      %p194 = por %p192, %p193
      %p195 = scmp.ne.s32.totalorder %s181, %s182
      %p196 = scmp.eq.s32.totalorder %s22, 1
      %p197 = por %p195, %p196
      %p199 = scmp.ne.s32.totalorder %s182, %s198
      %p200 = scmp.eq.s32.totalorder %s22, 0
      %p201 = por %p199, %p200
      %p202 = scmp.le.s32.totalorder 1, %s16
      %p203 = scmp.lt.s32.totalorder %s16, 3
      %p204 = pnand %p202, %p203
      %p205 = pneg %p204
      // Predicated region
      $region9: #{cross_transformer.15} parent=5 // pred_check
        _
      $region10: #{cross_transformer.15} parent=5 // pred_check_branch
        %207 = sbr.rel (%p204) target = $region12
      $region11: #{cross_transformer.15} parent=5 // pred_region
        %s208 = ssub.s32 %s16, 1
        // Predicated region
        $region13: #{cross_transformer.15} parent=11 // pred_check
          %p209 = pneg %p63
        $region14: #{cross_transformer.15} parent=11 // pred_check_branch
          %211 = sbr.rel (%p209) target = $region16
        $region15: #{cross_transformer.15} parent=11 // pred_region
          _
        $region16: #{cross_transformer.15} parent=11 // pred_fallthru
          _
        // Predicated region
        $region17: #{cross_transformer.15} parent=11 // pred_check
          %p212 = pneg %p84
        $region18: #{cross_transformer.15} parent=11 // pred_check_branch
          %214 = sbr.rel (%p212) target = $region20
        $region19: #{cross_transformer.15} parent=11 // pred_region
          _
        $region20: #{cross_transformer.15} parent=11 // pred_fallthru
          _
        // Predicated region
        $region21: #{cross_transformer.15} parent=11 // pred_check
          %p215 = pneg %p105
        $region22: #{cross_transformer.15} parent=11 // pred_check_branch
          %217 = sbr.rel (%p215) target = $region24
        $region23: #{cross_transformer.15} parent=11 // pred_region
          _
        $region24: #{cross_transformer.15} parent=11 // pred_fallthru
          _
        // Predicated region
        $region25: #{cross_transformer.15} parent=11 // pred_check
          %p218 = pneg %p126
        $region26: #{cross_transformer.15} parent=11 // pred_check_branch
          %220 = sbr.rel (%p218) target = $region28
        $region27: #{cross_transformer.15} parent=11 // pred_region
          _
        $region28: #{cross_transformer.15} parent=11 // pred_fallthru
          _
        // Predicated region
        $region29: #{cross_transformer.15} parent=11 // pred_check
          %p221 = pneg %p147
        $region30: #{cross_transformer.15} parent=11 // pred_check_branch
          %223 = sbr.rel (%p221) target = $region32
        $region31: #{cross_transformer.15} parent=11 // pred_region
          _
        $region32: #{cross_transformer.15} parent=11 // pred_fallthru
          _
        // Predicated region
        $region33: #{cross_transformer.15} parent=11 // pred_check
          %p224 = pneg %p168
        $region34: #{cross_transformer.15} parent=11 // pred_check_branch
          %226 = sbr.rel (%p224) target = $region36
        $region35: #{cross_transformer.15} parent=11 // pred_region
          _
        $region36: #{cross_transformer.15} parent=11 // pred_fallthru
          _
      $region12: #{cross_transformer.15} parent=5 // pred_fallthru
        _
      %p227 = scmp.lt.s32.totalorder %s16, 2
      // Predicated region
      $region37: #{cross_transformer.15} parent=5 // pred_check
        %p228 = pneg %p227
      $region38: #{cross_transformer.15} parent=5 // pred_check_branch
        %230 = sbr.rel (%p228) target = $region40
      $region39: #{cross_transformer.15} parent=5 // pred_region
        // Predicated region
        $region41: #{cross_transformer.15} parent=39 // pred_check
          %p231 = pneg %p36
        $region42: #{cross_transformer.15} parent=39 // pred_check_branch
          %233 = sbr.rel (%p231) target = $region44
        $region43: #{cross_transformer.15} parent=39 // pred_region
          %p234 = scmp.lt.s32.totalorder %s16, 1
          %s235 = scalar_select %p234, %s16, 1
          %s236 = smul.addr %s235, 8
          %s237 = scalar_lea.vmem %s0, %s236
        $region44: #{cross_transformer.15} parent=39 // pred_fallthru
          _
      $region40: #{cross_transformer.15} parent=5 // pred_fallthru
        _
      %p238 = scmp.le.s32.totalorder 1, %s16
      %p239 = scmp.lt.s32.totalorder %s16, 3
      %p240 = pnand %p238, %p239
      %p241 = pneg %p240
      // Predicated region
      $region45: #{cross_transformer.15} parent=5 // pred_check
        _
      $region46: #{cross_transformer.15} parent=5 // pred_check_branch
        %243 = sbr.rel (%p240) target = $region48
      $region47: #{cross_transformer.15} parent=5 // pred_region
        %s244 = ssub.s32 %s16, 1
        %p245 = scmp.lt.s32.totalorder %s21, 1
        %s246 = scalar_select %p245, %s21, 1
        %s247 = smul.addr %s246, 8
        %s248 = scalar_lea.vmem %s0, %s247
        %p249 = pneg %p42
        %p250 = pneg %p39
        %p251 = pneg %p63
        %p252 = pneg %p60
        %p253 = pneg %p84
        %p254 = pneg %p81
        %p255 = pneg %p105
        %p256 = pneg %p102
        %p257 = pneg %p126
        %p258 = pneg %p123
        %p259 = pneg %p147
        %p260 = pneg %p144
        %p261 = pneg %p168
        %p262 = pneg %p165
        %p263 = pneg %p194
        %p264 = pneg %p191
        %s265 = sand.u32 %s181, 1
        %s266 = scalar_lea.sflag [#allocation3], %s265
        %s267 = sand.u32 %s181, 1
        %s268 = smul.addr %s267, 8
        %s269 = scalar_lea.vmem [#allocation2], %s268
        %p270 = scmp.lt.s32.totalorder %s21, 1
        %s271 = scalar_select %p270, %s21, 1
        %s272 = smul.addr %s271, 8
        %s273 = scalar_lea.vmem %s0, %s272
        %v274 = vld [vmem:[%s273] sm:$0xff]
        %vm275 = vcmask 261120
        %v276 = vsel %vm275, %v274, 0.0
        %277 = vadd.xlane.f32.xlu0 %v276
        %v278 = vpop.xlane.xlu0 %277
        %v279 = vrcp.pop 32.0
        %v280 = vmul.f32 %v278, %v279
        %v281 = vsub.f32 %v274, %v280
        %v282 = vmul.f32 %v281, %v281
        %v283 = vsel %vm275, %v282, 0.0
        %284 = vadd.xlane.f32.xlu0 %v283
        %v285 = vpop.xlane.xlu0 %284
        %v286 = vmul.f32 %v285, %v279
        %v287 = vadd.f32 %v286, 1e-05
        %v288 = vrsqrt.pop %v287
        %v289 = vmul.f32 %v281, %v288
        %v290 = vld [vmem:[%s1] sm:$0x1]
        %v292 = vlaneseq
        %v293 = vshrl.u32 %v292, 7
        %v294 = vsub.s32 0, %v293
        %v295 = vrot.slane %v290, %v294
        %v297 = vmul.f32 %v289, %v295
        %v298 = vld [vmem:[%s2] sm:$0x1]
        %v300 = vlaneseq
        %v301 = vshrl.u32 %v300, 7
        %v302 = vsub.s32 0, %v301
        %v303 = vrot.slane %v298, %v302
        %v305 = vadd.f32 %v297, %v303
        %v306 = vld [vmem:[%s3] sm:$0xff]
        %v307 = vld [vmem:[%s3 + $0x8] sm:$0xff]
        %v308 = vld [vmem:[%s3 + $0x10] sm:$0xff]
        %v309 = vld [vmem:[%s3 + $0x18] sm:$0xff]
        %v310 = vld [vmem:[%s4] sm:$0x1]
        %v312 = vlaneseq
        %v313 = vshrl.u32 %v312, 7
        %v314 = vsub.s32 0, %v313
        %v315 = vrot.slane %v310, %v314
        %v318 = vsel %vm275, %v305, 0
        %320 = vmatprep.subr.mxu0 0.0
        %321 = vmatpush1.msra.mxu0 %v306
        %322 = vmatprep.subr.mxu0 0.0
        %323 = vmatpush1.msra.mxu0 %v307
        %324 = vmatprep.subr.mxu0 0.0
        %325 = vmatpush1.msra.mxu0 %v308
        %326 = vmatprep.subr.mxu0 0.0
        %327 = vmatpush1.msra.mxu0 %v309
        %328 = vmatprep.subr.mxu0 0.0
        %329 = vmatpush1.msra.mxu0 0.0
        %330 = vmatprep.subr.mxu0 0.0
        %331 = vmatpush1.msra.mxu0 0.0
        %332 = vmatprep.subr.mxu0 0.0
        %333 = vmatpush1.msra.mxu0 0.0
        %334 = vmatprep.subr.mxu0 0.0
        %335 = vmatpush1.msra.mxu0 0.0
        %336 = vmatprep.subr.mxu0 0.0
        %337 = vmatpush1.msra.mxu0 0.0
        %338 = vmatprep.subr.mxu0 0.0
        %339 = vmatpush1.msra.mxu0 0.0
        %340 = vmatprep.subr.mxu0 0.0
        %341 = vmatpush1.msra.mxu0 0.0
        %342 = vmatprep.subr.mxu0 0.0
        %343 = vmatpush1.msra.mxu0 0.0
        %344 = vmatprep.subr.mxu0 0.0
        %345 = vmatpush1.msra.mxu0 0.0
        %346 = vmatprep.subr.mxu0 0.0
        %347 = vmatpush1.msra.mxu0 0.0
        %348 = vmatprep.subr.mxu0 0.0
        %349 = vmatpush1.msra.mxu0 0.0
        %350 = vmatprep.subr.mxu0 0.0
        %351 = vmatpush1.msra.mxu0 0.0
        %352 = vmatprep.subr.mxu0 0.0
        %353 = vmatpush1.msra.mxu0 0.0
        %354 = vmatprep.subr.mxu0 0.0
        %355 = vmatpush1.msra.mxu0 0.0
        %356 = vmatprep.subr.mxu0 0.0
        %357 = vmatpush1.msra.mxu0 0.0
        %358 = vmatprep.subr.mxu0 0.0
        %359 = vmatpush1.msra.mxu0 0.0
        %360 = vmatprep.subr.mxu0 0.0
        %361 = vmatpush1.msra.mxu0 0.0
        %362 = vmatprep.subr.mxu0 0.0
        %363 = vmatpush1.msra.mxu0 0.0
        %364 = vmatprep.subr.mxu0 0.0
        %365 = vmatpush1.msra.mxu0 0.0
        %366 = vmatprep.subr.mxu0 0.0
        %367 = vmatpush1.msra.mxu0 0.0
        %368 = vmatprep.subr.mxu0 0.0
        %369 = vmatpush1.msra.mxu0 0.0
        %370 = vmatprep.subr.mxu0 0.0
        %371 = vmatpush1.msra.mxu0 0.0
        %372 = vmatprep.subr.mxu0 0.0
        %373 = vmatpush1.msra.mxu0 0.0
        %374 = vmatprep.subr.mxu0 0.0
        %375 = vmatpush1.msra.mxu0 0.0
        %376 = vmatprep.subr.mxu0 0.0
        %377 = vmatpush1.msra.mxu0 0.0
        %378 = vmatprep.subr.mxu0 0.0
        %379 = vmatpush1.msra.mxu0 0.0
        %380 = vmatprep.subr.mxu0 0.0
        %381 = vmatpush1.msra.mxu0 0.0
        %382 = vmatprep.subr.mxu0 0.0
        %383 = vmatpush1.msra.mxu0 0.0
        %384 = vmatprep.mubr.f32.mxu0 0.0
        %385 = vmatmul.mubr.f32.gmra.mrb[0].mxu0 %v318
        %v386 = vpop.f32.mrb[0].mxu0
        %v387 = vadd.f32 %v315, %v386
        %v388 = vpop.f32.mrb[0].mxu0
        %389 = vdwg.mxu0
        %v390 = vmul.f32 %v387, 0.5
        %v391 = vmul.f32 %v387, 0.044715
        %v392 = vmul.f32 %v391, %v387
        %v393 = vmul.f32 %v392, %v387
        %v394 = vadd.f32 %v387, %v393
        %v395 = vmul.f32 %v394, 0.7978846
        %v396 = vtanh.pop %v395
        %v397 = vadd.f32 %v396, 1.0
        %v398 = vmul.f32 %v390, %v397
        %v399 = vld [vmem:[%s5] sm:$0xff]
        %v400 = vld [vmem:[%s5 + $0x8] sm:$0xff]
        %v401 = vld [vmem:[%s5 + $0x10] sm:$0xff]
        %v402 = vld [vmem:[%s5 + $0x18] sm:$0xff]
        %v403 = vld [vmem:[%s5 + $0x20] sm:$0xff]
        %v404 = vld [vmem:[%s5 + $0x28] sm:$0xff]
        %v405 = vld [vmem:[%s5 + $0x30] sm:$0xff]
        %v406 = vld [vmem:[%s5 + $0x38] sm:$0xff]
        %v407 = vld [vmem:[%s6] sm:$0x1]
        %v409 = vlaneseq
        %v410 = vshrl.u32 %v409, 7
        %v411 = vsub.s32 0, %v410
        %v412 = vrot.slane %v407, %v411
        %vm414 = vcmask 523264
        %v416 = vsel %vm414, %v398, 0
        %418 = vmatprep.subr.mxu0 0.0
        %419 = vmatpush1.msra.mxu0 %v399
        %420 = vmatprep.subr.mxu0 0.0
        %421 = vmatpush1.msra.mxu0 %v400
        %422 = vmatprep.subr.mxu0 0.0
        %423 = vmatpush1.msra.mxu0 %v401
        %424 = vmatprep.subr.mxu0 0.0
        %425 = vmatpush1.msra.mxu0 %v402
        %426 = vmatprep.subr.mxu0 0.0
        %427 = vmatpush1.msra.mxu0 %v403
        %428 = vmatprep.subr.mxu0 0.0
        %429 = vmatpush1.msra.mxu0 %v404
        %430 = vmatprep.subr.mxu0 0.0
        %431 = vmatpush1.msra.mxu0 %v405
        %432 = vmatprep.subr.mxu0 0.0
        %433 = vmatpush1.msra.mxu0 %v406
        %434 = vmatprep.subr.mxu0 0.0
        %435 = vmatpush1.msra.mxu0 0.0
        %436 = vmatprep.subr.mxu0 0.0
        %437 = vmatpush1.msra.mxu0 0.0
        %438 = vmatprep.subr.mxu0 0.0
        %439 = vmatpush1.msra.mxu0 0.0
        %440 = vmatprep.subr.mxu0 0.0
        %441 = vmatpush1.msra.mxu0 0.0
        %442 = vmatprep.subr.mxu0 0.0
        %443 = vmatpush1.msra.mxu0 0.0
        %444 = vmatprep.subr.mxu0 0.0
        %445 = vmatpush1.msra.mxu0 0.0
        %446 = vmatprep.subr.mxu0 0.0
        %447 = vmatpush1.msra.mxu0 0.0
        %448 = vmatprep.subr.mxu0 0.0
        %449 = vmatpush1.msra.mxu0 0.0
        %450 = vmatprep.subr.mxu0 0.0
        %451 = vmatpush1.msra.mxu0 0.0
        %452 = vmatprep.subr.mxu0 0.0
        %453 = vmatpush1.msra.mxu0 0.0
        %454 = vmatprep.subr.mxu0 0.0
        %455 = vmatpush1.msra.mxu0 0.0
        %456 = vmatprep.subr.mxu0 0.0
        %457 = vmatpush1.msra.mxu0 0.0
        %458 = vmatprep.subr.mxu0 0.0
        %459 = vmatpush1.msra.mxu0 0.0
        %460 = vmatprep.subr.mxu0 0.0
        %461 = vmatpush1.msra.mxu0 0.0
        %462 = vmatprep.subr.mxu0 0.0
        %463 = vmatpush1.msra.mxu0 0.0
        %464 = vmatprep.subr.mxu0 0.0
        %465 = vmatpush1.msra.mxu0 0.0
        %466 = vmatprep.subr.mxu0 0.0
        %467 = vmatpush1.msra.mxu0 0.0
        %468 = vmatprep.subr.mxu0 0.0
        %469 = vmatpush1.msra.mxu0 0.0
        %470 = vmatprep.subr.mxu0 0.0
        %471 = vmatpush1.msra.mxu0 0.0
        %472 = vmatprep.subr.mxu0 0.0
        %473 = vmatpush1.msra.mxu0 0.0
        %474 = vmatprep.subr.mxu0 0.0
        %475 = vmatpush1.msra.mxu0 0.0
        %476 = vmatprep.subr.mxu0 0.0
        %477 = vmatpush1.msra.mxu0 0.0
        %478 = vmatprep.subr.mxu0 0.0
        %479 = vmatpush1.msra.mxu0 0.0
        %480 = vmatprep.subr.mxu0 0.0
        %481 = vmatpush1.msra.mxu0 0.0
        %482 = vmatprep.mubr.f32.mxu0 0.0
        %483 = vmatmul.mubr.f32.gmra.mrb[0].mxu0 %v416
        %v484 = vpop.f32.mrb[0].mxu0
        %v485 = vadd.f32 %v412, %v484
        %v486 = vpop.f32.mrb[0].mxu0
        %487 = vdwg.mxu0
        %v488 = vadd.f32 %v485, %v274
        %489 = vst.msk [vmem:[%s269] sm:$0xff] %vm275, %v488
        %s490 = sand.u32 %s181, 1
        %s491 = scalar_lea.sflag [#allocation3], %s490
        %s492 = sand.u32 %s181, 1
        %s493 = smul.addr %s492, 8
        %s494 = scalar_lea.vmem [#allocation2], %s493
        // Predicated region
        $region49: #{cross_transformer.15} parent=47 // pred_check
          %p495 = pneg %p191
        $region50: #{cross_transformer.15} parent=47 // pred_check_branch
          %497 = sbr.rel (%p495) target = $region52
        $region51: #{cross_transformer.15} parent=47 // pred_region
          %s499 = ssub.s32 128, 128
          %500 = vsyncadd %s491, %s499
          %s501 = smul.addr %s21, 128
          %s502 = scalar_lea.hbm %s7, %s501
          %s504 = sshll.u32 %s494, 4
          %s505 = int_to_ptr.vmem [resolvable:$true] %s504
          %507 = dma.vmem_to_hbm [thread:$0]  %s505, 128, %s502, %s491
        $region52: #{cross_transformer.15} parent=47 // pred_fallthru
          _
      $region48: #{cross_transformer.15} parent=5 // pred_fallthru
        _
      %p508 = scmp.le.s32.totalorder 2, %s16
      // Predicated region
      $region53: #{cross_transformer.15} parent=5 // pred_check
        %p509 = pneg %p508
      $region54: #{cross_transformer.15} parent=5 // pred_check_branch
        %511 = sbr.rel (%p509) target = $region56
      $region55: #{cross_transformer.15} parent=5 // pred_region
        %s512 = ssub.s32 %s16, 2
        // Predicated region
        $region57: #{cross_transformer.15} parent=55 // pred_check
          %p513 = pneg %p197
        $region58: #{cross_transformer.15} parent=55 // pred_check_branch
          %515 = sbr.rel (%p513) target = $region60
        $region59: #{cross_transformer.15} parent=55 // pred_region
          %s516 = sand.u32 %s182, 1
          %s517 = scalar_lea.sflag [#allocation3], %s516
          %s518 = sand.u32 %s182, 1
          %s519 = smul.addr %s518, 8
          %s520 = scalar_lea.vmem [#allocation2], %s519
          %521 = dma.done %s517, 128
        $region60: #{cross_transformer.15} parent=55 // pred_fallthru
          _
      $region56: #{cross_transformer.15} parent=5 // pred_fallthru
        _
    $region6: #{cross_transformer.15} parent=1 // loop_footer
      %s20 = sadd.s32 1, %s16
    $region7: #{cross_transformer.15} parent=1 // loop_footer_branch
      %15 = sbr.rel target = $region3
    $region8: #{cross_transformer.15} parent=1 // loop_exit
      _
    %522 = vsyncpa [#allocation3], 1
    %s523 = scalar_lea.sflag [#allocation3], 1
    %524 = vsyncpa %s523, 1

// kernel: cross_transformer.10
$region0: #{cross_transformer.10}
  #allocation0 [shape = 'u32[]', space=smem, size = 0x4, offset = 0x4, fixed_abs, tag = 'smem constant byte address 0x4 - core index']
  #allocation1 [shape = 'u32[144,128]{1,0:T(1,128)}', space=vmem, size = 0x12000, scoped, tag = 'internal scratch']
  %s0 = inlined_call_operand.vmem [shape: f32[2,8,32], index: 0, kind: input, shape index: {}]
  %s1 = inlined_call_operand.vmem [shape: f32[2,8,32], index: 1, kind: input, shape index: {}]
  %s2 = inlined_call_operand.vmem [shape: f32[1,32], index: 2, kind: input, shape index: {}]
  %s3 = inlined_call_operand.vmem [shape: f32[1,32], index: 3, kind: input, shape index: {}]
  %s4 = inlined_call_operand.vmem [shape: f32[1,32], index: 4, kind: input, shape index: {}]
  %s5 = inlined_call_operand.vmem [shape: f32[1,32], index: 5, kind: input, shape index: {}]
  %s6 = inlined_call_operand.vmem [shape: f32[32,32], index: 6, kind: input, shape index: {}]
  %s7 = inlined_call_operand.vmem [shape: f32[2,32,32], index: 7, kind: input, shape index: {}]
  %s8 = inlined_call_operand.vmem [shape: f32[32,32], index: 8, kind: input, shape index: {}]
  %s9 = inlined_call_operand.vmem [shape: f32[1,32], index: 9, kind: input, shape index: {}]
  %s10 = inlined_call_operand.vmem [shape: f32[2,8,32], index: 10, kind: output, shape index: {}]
  %s11 = sld [smem:[#allocation0]]
  $region73: #{cross_transformer.10} parent=0
    _
  %s13 = ssub.s32 1, %s11
  %s14 = scalar_select 0, %s13, %s11
  loop: start=0, step=1, limit=4
  $region2: #{cross_transformer.10} parent=0 // loop_pre_header
    _
  $region3: #{cross_transformer.10} parent=0 // loop_header
    %s16 = sphi 0, %s20
    %p17 = scmp.ge.s32.totalorder %s16, 4
    %s26 = sphi 0, %s28
    %s29 = sphi 0, %s26
    %s30 = sphi 0, %s29
    %s46 = sphi 0, %s30
    %s52 = sphi 0, %s54
    %s55 = sphi 0, %s52
    %s56 = sphi 0, %s55
    %s72 = sphi 0, %s56
    %s76 = sphi 0, %s76
    %s78 = sphi 0, %s76
    %s79 = sphi 0, %s78
    %s93 = sphi 0, %s79
    %s97 = sphi 0, %s97
    %s99 = sphi 0, %s97
    %s100 = sphi 0, %s99
    %s114 = sphi 0, %s100
    %s118 = sphi 0, %s118
    %s120 = sphi 0, %s118
    %s121 = sphi 0, %s120
    %s135 = sphi 0, %s121
    %s139 = sphi 0, %s139
    %s141 = sphi 0, %s139
    %s142 = sphi 0, %s141
    %s156 = sphi 0, %s142
    %s160 = sphi 0, %s160
    %s162 = sphi 0, %s160
    %s163 = sphi 0, %s162
    %s177 = sphi 0, %s163
    %s181 = sphi 0, %s181
    %s183 = sphi 0, %s181
    %s184 = sphi 0, %s183
    %s198 = sphi 0, %s184
    %s202 = sphi 0, %s202
    %s204 = sphi 0, %s202
    %s205 = sphi 0, %s204
    %s219 = sphi 0, %s205
    %s223 = sphi 0, %s223
    %s225 = sphi 0, %s223
    %s226 = sphi 0, %s225
    %s240 = sphi 0, %s226
    %s246 = sphi 0, %s248
    %s249 = sphi 0, %s246
    %s250 = sphi 0, %s249
    %s266 = sphi 0, %s250
  $region4: #{cross_transformer.10} parent=0 // loop_header_branch
    %19 = sbr.rel (%p17) target = $region8
  $region5: #{cross_transformer.10} parent=0 // loop_body
    %s21 = ssub.s32 %s16, 1
    %s22 = ssub.s32 %s16, 2
    %s23 = sadd.s32 %s16, 1
    %s24 = ssub.s32 %s16, %s23
    %p25 = scmp.eq.s32.totalorder %s24, 0
    %s27 = sadd.s32 %s26, 1
    %s28 = scalar_select %p25, %s26, %s27
    %p31 = pneg %p25
    %p32 = scmp.eq.s32.totalorder %s16, 1
    %p33 = por %p31, %p32
    %p34 = scmp.ne.s32.totalorder %s26, %s29
    %p35 = scmp.eq.s32.totalorder %s16, 0
    %p36 = por %p34, %p35
    %p37 = scmp.ne.s32.totalorder %s26, %s29
    %p38 = scmp.eq.s32.totalorder %s21, 1
    %p39 = por %p37, %p38
    %p40 = scmp.ne.s32.totalorder %s29, %s30
    %p41 = scmp.eq.s32.totalorder %s21, 0
    %p42 = por %p40, %p41
    %p43 = scmp.ne.s32.totalorder %s29, %s30
    %p44 = scmp.eq.s32.totalorder %s22, 1
    %p45 = por %p43, %p44
    %p47 = scmp.ne.s32.totalorder %s30, %s46
    %p48 = scmp.eq.s32.totalorder %s22, 0
    %p49 = por %p47, %p48
    %s50 = ssub.s32 %s16, %s23
    %p51 = scmp.eq.s32.totalorder %s50, 0
    %s53 = sadd.s32 %s52, 1
    %s54 = scalar_select %p51, %s52, %s53
    %p57 = pneg %p51
    %p58 = scmp.eq.s32.totalorder %s16, 1
    %p59 = por %p57, %p58
    %p60 = scmp.ne.s32.totalorder %s52, %s55
    %p61 = scmp.eq.s32.totalorder %s16, 0
    %p62 = por %p60, %p61
    %p63 = scmp.ne.s32.totalorder %s52, %s55
    %p64 = scmp.eq.s32.totalorder %s21, 1
    %p65 = por %p63, %p64
    %p66 = scmp.ne.s32.totalorder %s55, %s56
    %p67 = scmp.eq.s32.totalorder %s21, 0
    %p68 = por %p66, %p67
    %p69 = scmp.ne.s32.totalorder %s55, %s56
    %p70 = scmp.eq.s32.totalorder %s22, 1
    %p71 = por %p69, %p70
    %p73 = scmp.ne.s32.totalorder %s56, %s72
    %p74 = scmp.eq.s32.totalorder %s22, 0
    %p75 = por %p73, %p74
    %s77 = sadd.s32 %s76, 1
    %p80 = scmp.eq.s32.totalorder %s16, 1
    %p81 = scmp.ne.s32.totalorder %s76, %s78
    %p82 = scmp.eq.s32.totalorder %s16, 0
    %p83 = por %p81, %p82
    %p84 = scmp.ne.s32.totalorder %s76, %s78
    %p85 = scmp.eq.s32.totalorder %s21, 1
    %p86 = por %p84, %p85
    %p87 = scmp.ne.s32.totalorder %s78, %s79
    %p88 = scmp.eq.s32.totalorder %s21, 0
    %p89 = por %p87, %p88
    %p90 = scmp.ne.s32.totalorder %s78, %s79
    %p91 = scmp.eq.s32.totalorder %s22, 1
    %p92 = por %p90, %p91
    %p94 = scmp.ne.s32.totalorder %s79, %s93
    %p95 = scmp.eq.s32.totalorder %s22, 0
    %p96 = por %p94, %p95
    %s98 = sadd.s32 %s97, 1
    %p101 = scmp.eq.s32.totalorder %s16, 1
    %p102 = scmp.ne.s32.totalorder %s97, %s99
    %p103 = scmp.eq.s32.totalorder %s16, 0
    %p104 = por %p102, %p103
    %p105 = scmp.ne.s32.totalorder %s97, %s99
    %p106 = scmp.eq.s32.totalorder %s21, 1
    %p107 = por %p105, %p106
    %p108 = scmp.ne.s32.totalorder %s99, %s100
    %p109 = scmp.eq.s32.totalorder %s21, 0
    %p110 = por %p108, %p109
    %p111 = scmp.ne.s32.totalorder %s99, %s100
    %p112 = scmp.eq.s32.totalorder %s22, 1
    %p113 = por %p111, %p112
    %p115 = scmp.ne.s32.totalorder %s100, %s114
    %p116 = scmp.eq.s32.totalorder %s22, 0
    %p117 = por %p115, %p116
    %s119 = sadd.s32 %s118, 1
    %p122 = scmp.eq.s32.totalorder %s16, 1
    %p123 = scmp.ne.s32.totalorder %s118, %s120
    %p124 = scmp.eq.s32.totalorder %s16, 0
    %p125 = por %p123, %p124
    %p126 = scmp.ne.s32.totalorder %s118, %s120
    %p127 = scmp.eq.s32.totalorder %s21, 1
    %p128 = por %p126, %p127
    %p129 = scmp.ne.s32.totalorder %s120, %s121
    %p130 = scmp.eq.s32.totalorder %s21, 0
    %p131 = por %p129, %p130
    %p132 = scmp.ne.s32.totalorder %s120, %s121
    %p133 = scmp.eq.s32.totalorder %s22, 1
    %p134 = por %p132, %p133
    %p136 = scmp.ne.s32.totalorder %s121, %s135
    %p137 = scmp.eq.s32.totalorder %s22, 0
    %p138 = por %p136, %p137
    %s140 = sadd.s32 %s139, 1
    %p143 = scmp.eq.s32.totalorder %s16, 1
    %p144 = scmp.ne.s32.totalorder %s139, %s141
    %p145 = scmp.eq.s32.totalorder %s16, 0
    %p146 = por %p144, %p145
    %p147 = scmp.ne.s32.totalorder %s139, %s141
    %p148 = scmp.eq.s32.totalorder %s21, 1
    %p149 = por %p147, %p148
    %p150 = scmp.ne.s32.totalorder %s141, %s142
    %p151 = scmp.eq.s32.totalorder %s21, 0
    %p152 = por %p150, %p151
    %p153 = scmp.ne.s32.totalorder %s141, %s142
    %p154 = scmp.eq.s32.totalorder %s22, 1
    %p155 = por %p153, %p154
    %p157 = scmp.ne.s32.totalorder %s142, %s156
    %p158 = scmp.eq.s32.totalorder %s22, 0
    %p159 = por %p157, %p158
    %s161 = sadd.s32 %s160, 1
    %p164 = scmp.eq.s32.totalorder %s16, 1
    %p165 = scmp.ne.s32.totalorder %s160, %s162
    %p166 = scmp.eq.s32.totalorder %s16, 0
    %p167 = por %p165, %p166
    %p168 = scmp.ne.s32.totalorder %s160, %s162
    %p169 = scmp.eq.s32.totalorder %s21, 1
    %p170 = por %p168, %p169
    %p171 = scmp.ne.s32.totalorder %s162, %s163
    %p172 = scmp.eq.s32.totalorder %s21, 0
    %p173 = por %p171, %p172
    %p174 = scmp.ne.s32.totalorder %s162, %s163
    %p175 = scmp.eq.s32.totalorder %s22, 1
    %p176 = por %p174, %p175
    %p178 = scmp.ne.s32.totalorder %s163, %s177
    %p179 = scmp.eq.s32.totalorder %s22, 0
    %p180 = por %p178, %p179
    %s182 = sadd.s32 %s181, 1
    %p185 = scmp.eq.s32.totalorder %s16, 1
    %p186 = scmp.ne.s32.totalorder %s181, %s183
    %p187 = scmp.eq.s32.totalorder %s16, 0
    %p188 = por %p186, %p187
    %p189 = scmp.ne.s32.totalorder %s181, %s183
    %p190 = scmp.eq.s32.totalorder %s21, 1
    %p191 = por %p189, %p190
    %p192 = scmp.ne.s32.totalorder %s183, %s184
    %p193 = scmp.eq.s32.totalorder %s21, 0
    %p194 = por %p192, %p193
    %p195 = scmp.ne.s32.totalorder %s183, %s184
    %p196 = scmp.eq.s32.totalorder %s22, 1
    %p197 = por %p195, %p196
    %p199 = scmp.ne.s32.totalorder %s184, %s198
    %p200 = scmp.eq.s32.totalorder %s22, 0
    %p201 = por %p199, %p200
    %s203 = sadd.s32 %s202, 1
    %p206 = scmp.eq.s32.totalorder %s16, 1
    %p207 = scmp.ne.s32.totalorder %s202, %s204
    %p208 = scmp.eq.s32.totalorder %s16, 0
    %p209 = por %p207, %p208
    %p210 = scmp.ne.s32.totalorder %s202, %s204
    %p211 = scmp.eq.s32.totalorder %s21, 1
    %p212 = por %p210, %p211
    %p213 = scmp.ne.s32.totalorder %s204, %s205
    %p214 = scmp.eq.s32.totalorder %s21, 0
    %p215 = por %p213, %p214
    %p216 = scmp.ne.s32.totalorder %s204, %s205
    %p217 = scmp.eq.s32.totalorder %s22, 1
    %p218 = por %p216, %p217
    %p220 = scmp.ne.s32.totalorder %s205, %s219
    %p221 = scmp.eq.s32.totalorder %s22, 0
    %p222 = por %p220, %p221
    %s224 = sadd.s32 %s223, 1
    %p227 = scmp.eq.s32.totalorder %s16, 1
    %p228 = scmp.ne.s32.totalorder %s223, %s225
    %p229 = scmp.eq.s32.totalorder %s16, 0
    %p230 = por %p228, %p229
    %p231 = scmp.ne.s32.totalorder %s223, %s225
    %p232 = scmp.eq.s32.totalorder %s21, 1
    %p233 = por %p231, %p232
    %p234 = scmp.ne.s32.totalorder %s225, %s226
    %p235 = scmp.eq.s32.totalorder %s21, 0
    %p236 = por %p234, %p235
    %p237 = scmp.ne.s32.totalorder %s225, %s226
    %p238 = scmp.eq.s32.totalorder %s22, 1
    %p239 = por %p237, %p238
    %p241 = scmp.ne.s32.totalorder %s226, %s240
    %p242 = scmp.eq.s32.totalorder %s22, 0
    %p243 = por %p241, %p242
    %s244 = ssub.s32 %s16, %s23
    %p245 = scmp.eq.s32.totalorder %s244, 0
    %s247 = sadd.s32 %s246, 1
    %s248 = scalar_select %p245, %s246, %s247
    %p251 = pneg %p245
    %p252 = scmp.eq.s32.totalorder %s16, 1
    %p253 = por %p251, %p252
    %p254 = scmp.ne.s32.totalorder %s246, %s249
    %p255 = scmp.eq.s32.totalorder %s16, 0
    %p256 = por %p254, %p255
    %p257 = scmp.ne.s32.totalorder %s246, %s249
    %p258 = scmp.eq.s32.totalorder %s21, 1
    %p259 = por %p257, %p258
    %p260 = scmp.ne.s32.totalorder %s249, %s250
    %p261 = scmp.eq.s32.totalorder %s21, 0
    %p262 = por %p260, %p261
    %p263 = scmp.ne.s32.totalorder %s249, %s250
    %p264 = scmp.eq.s32.totalorder %s22, 1
    %p265 = por %p263, %p264
    %p267 = scmp.ne.s32.totalorder %s250, %s266
    %p268 = scmp.eq.s32.totalorder %s22, 0
    %p269 = por %p267, %p268
    %p270 = scmp.le.s32.totalorder 1, %s16
    %p271 = scmp.lt.s32.totalorder %s16, 3
    %p272 = pnand %p270, %p271
    %p273 = pneg %p272
    // Predicated region
    $region9: #{cross_transformer.10} parent=5 // pred_check
      _
    $region10: #{cross_transformer.10} parent=5 // pred_check_branch
      %275 = sbr.rel (%p272) target = $region12
    $region11: #{cross_transformer.10} parent=5 // pred_region
      %s276 = ssub.s32 %s16, 1
      // Predicated region
      $region13: #{cross_transformer.10} parent=11 // pred_check
        %p277 = pneg %p89
      $region14: #{cross_transformer.10} parent=11 // pred_check_branch
        %279 = sbr.rel (%p277) target = $region16
      $region15: #{cross_transformer.10} parent=11 // pred_region
        _
      $region16: #{cross_transformer.10} parent=11 // pred_fallthru
        _
      // Predicated region
      $region17: #{cross_transformer.10} parent=11 // pred_check
        %p280 = pneg %p110
      $region18: #{cross_transformer.10} parent=11 // pred_check_branch
        %282 = sbr.rel (%p280) target = $region20
      $region19: #{cross_transformer.10} parent=11 // pred_region
        _
      $region20: #{cross_transformer.10} parent=11 // pred_fallthru
        _
      // Predicated region
      $region21: #{cross_transformer.10} parent=11 // pred_check
        %p283 = pneg %p131
      $region22: #{cross_transformer.10} parent=11 // pred_check_branch
        %285 = sbr.rel (%p283) target = $region24
      $region23: #{cross_transformer.10} parent=11 // pred_region
        _
      $region24: #{cross_transformer.10} parent=11 // pred_fallthru
        _
      // Predicated region
      $region25: #{cross_transformer.10} parent=11 // pred_check
        %p286 = pneg %p152
      $region26: #{cross_transformer.10} parent=11 // pred_check_branch
        %288 = sbr.rel (%p286) target = $region28
      $region27: #{cross_transformer.10} parent=11 // pred_region
        _
      $region28: #{cross_transformer.10} parent=11 // pred_fallthru
        _
      // Predicated region
      $region29: #{cross_transformer.10} parent=11 // pred_check
        %p289 = pneg %p173
      $region30: #{cross_transformer.10} parent=11 // pred_check_branch
        %291 = sbr.rel (%p289) target = $region32
      $region31: #{cross_transformer.10} parent=11 // pred_region
        _
      $region32: #{cross_transformer.10} parent=11 // pred_fallthru
        _
      // Predicated region
      $region33: #{cross_transformer.10} parent=11 // pred_check
        %p292 = pneg %p194
      $region34: #{cross_transformer.10} parent=11 // pred_check_branch
        %294 = sbr.rel (%p292) target = $region36
      $region35: #{cross_transformer.10} parent=11 // pred_region
        _
      $region36: #{cross_transformer.10} parent=11 // pred_fallthru
        _
      // Predicated region
      $region37: #{cross_transformer.10} parent=11 // pred_check
        %p295 = pneg %p215
      $region38: #{cross_transformer.10} parent=11 // pred_check_branch
        %297 = sbr.rel (%p295) target = $region40
      $region39: #{cross_transformer.10} parent=11 // pred_region
        _
      $region40: #{cross_transformer.10} parent=11 // pred_fallthru
        _
      // Predicated region
      $region41: #{cross_transformer.10} parent=11 // pred_check
        %p298 = pneg %p236
      $region42: #{cross_transformer.10} parent=11 // pred_check_branch
        %300 = sbr.rel (%p298) target = $region44
      $region43: #{cross_transformer.10} parent=11 // pred_region
        _
      $region44: #{cross_transformer.10} parent=11 // pred_fallthru
        _
    $region12: #{cross_transformer.10} parent=5 // pred_fallthru
      _
    %p301 = scmp.lt.s32.totalorder %s16, 2
    // Predicated region
    $region45: #{cross_transformer.10} parent=5 // pred_check
      %p302 = pneg %p301
    $region46: #{cross_transformer.10} parent=5 // pred_check_branch
      %304 = sbr.rel (%p302) target = $region48
    $region47: #{cross_transformer.10} parent=5 // pred_region
      // Predicated region
      $region49: #{cross_transformer.10} parent=47 // pred_check
        %p305 = pneg %p36
      $region50: #{cross_transformer.10} parent=47 // pred_check_branch
        %307 = sbr.rel (%p305) target = $region52
      $region51: #{cross_transformer.10} parent=47 // pred_region
        %p308 = scmp.lt.s32.totalorder %s16, 1
        %s309 = scalar_select %p308, %s16, 1
        %s310 = smul.addr %s309, 8
        %s311 = scalar_lea.vmem %s0, %s310
      $region52: #{cross_transformer.10} parent=47 // pred_fallthru
        _
      // Predicated region
      $region53: #{cross_transformer.10} parent=47 // pred_check
        %p312 = pneg %p62
      $region54: #{cross_transformer.10} parent=47 // pred_check_branch
        %314 = sbr.rel (%p312) target = $region56
      $region55: #{cross_transformer.10} parent=47 // pred_region
        %p315 = scmp.lt.s32.totalorder %s16, 1
        %s316 = scalar_select %p315, %s16, 1
        %s317 = smul.addr %s316, 8
        %s318 = scalar_lea.vmem %s1, %s317
      $region56: #{cross_transformer.10} parent=47 // pred_fallthru
        _
    $region48: #{cross_transformer.10} parent=5 // pred_fallthru
      _
    %p319 = scmp.le.s32.totalorder 1, %s16
    %p320 = scmp.lt.s32.totalorder %s16, 3
    %p321 = pnand %p319, %p320
    %p322 = pneg %p321
    // Predicated region
    $region57: #{cross_transformer.10} parent=5 // pred_check
      _
    $region58: #{cross_transformer.10} parent=5 // pred_check_branch
      %324 = sbr.rel (%p321) target = $region60
    $region59: #{cross_transformer.10} parent=5 // pred_region
      %s325 = ssub.s32 %s16, 1
      %p326 = scmp.lt.s32.totalorder %s21, 1
      %s327 = scalar_select %p326, %s21, 1
      %s328 = smul.addr %s327, 8
      %s329 = scalar_lea.vmem %s0, %s328
      %p330 = pneg %p42
      %p331 = pneg %p39
      %p332 = scmp.lt.s32.totalorder %s21, 1
      %s333 = scalar_select %p332, %s21, 1
      %s334 = smul.addr %s333, 8
      %s335 = scalar_lea.vmem %s1, %s334
      %p336 = pneg %p68
      %p337 = pneg %p65
      %p338 = pneg %p89
      %p339 = pneg %p86
      %p340 = pneg %p110
      %p341 = pneg %p107
      %p342 = pneg %p131
      %p343 = pneg %p128
      %p344 = pneg %p152
      %p345 = pneg %p149
      %p346 = pneg %p173
      %p347 = pneg %p170
      %p348 = pneg %p194
      %p349 = pneg %p191
      %p350 = pneg %p215
      %p351 = pneg %p212
      %p352 = pneg %p236
      %p353 = pneg %p233
      %p354 = pneg %p262
      %p355 = pneg %p259
      %p356 = scmp.lt.s32.totalorder %s21, 1
      %s357 = scalar_select %p356, %s21, 1
      %s358 = smul.addr %s357, 8
      %s359 = scalar_lea.vmem %s10, %s358
      %p360 = scmp.lt.s32.totalorder %s21, 1
      %s361 = scalar_select %p360, %s21, 1
      %s362 = smul.addr %s361, 8
      %s363 = scalar_lea.vmem %s0, %s362
      %p364 = scmp.lt.s32.totalorder %s21, 1
      %s365 = scalar_select %p364, %s21, 1
      %s366 = smul.addr %s365, 8
      %s367 = scalar_lea.vmem %s1, %s366
      %p368 = scmp.lt.s32.totalorder %s21, 1
      %s369 = scalar_select %p368, %s21, 1
      %s370 = smul.addr %s369, 8
      %s371 = scalar_lea.vmem %s10, %s370
      %v372 = vld [vmem:[%s363] sm:$0xff]
      %v373 = vld [vmem:[%s367] sm:$0xff]
      %vm374 = vcmask 261120
      %v375 = vsel %vm374, %v372, 0.0
      %376 = vadd.xlane.f32.xlu0 %v375
      %v377 = vpop.xlane.xlu0 %376
      %v378 = vrcp.pop 32.0
      %v379 = vmul.f32 %v377, %v378
      %v380 = vsub.f32 %v372, %v379
      %v381 = vmul.f32 %v380, %v380
      %v382 = vsel %vm374, %v381, 0.0
      %383 = vadd.xlane.f32.xlu0 %v382
      %v384 = vpop.xlane.xlu0 %383
      %v385 = vmul.f32 %v384, %v378
      %v386 = vadd.f32 %v385, 1e-05
      %v387 = vrsqrt.pop %v386
      %v388 = vmul.f32 %v380, %v387
      %v389 = vld [vmem:[%s2] sm:$0x1]
      %v391 = vlaneseq
      %v392 = vshrl.u32 %v391, 7
      %v393 = vsub.s32 0, %v392
      %v394 = vrot.slane %v389, %v393
      %v396 = vmul.f32 %v388, %v394
      %v397 = vld [vmem:[%s3] sm:$0x1]
      %v399 = vlaneseq
      %v400 = vshrl.u32 %v399, 7
      %v401 = vsub.s32 0, %v400
      %v402 = vrot.slane %v397, %v401
      %v404 = vadd.f32 %v396, %v402
      %v405 = vsel %vm374, %v373, 0.0
      %406 = vadd.xlane.f32.xlu0 %v405
      %v407 = vpop.xlane.xlu0 %406
      %v408 = vmul.f32 %v407, %v378
      %v409 = vsub.f32 %v373, %v408
      %v410 = vmul.f32 %v409, %v409
      %v411 = vsel %vm374, %v410, 0.0
      %412 = vadd.xlane.f32.xlu0 %v411
      %v413 = vpop.xlane.xlu0 %412
      %v414 = vmul.f32 %v413, %v378
      %v415 = vadd.f32 %v414, 1e-05
      %v416 = vrsqrt.pop %v415
      %v417 = vmul.f32 %v409, %v416
      %v418 = vld [vmem:[%s4] sm:$0x1]
      %v420 = vlaneseq
      %v421 = vshrl.u32 %v420, 7
      %v422 = vsub.s32 0, %v421
      %v423 = vrot.slane %v418, %v422
      %v425 = vmul.f32 %v417, %v423
      %v426 = vld [vmem:[%s5] sm:$0x1]
      %v428 = vlaneseq
      %v429 = vshrl.u32 %v428, 7
      %v430 = vsub.s32 0, %v429
      %v431 = vrot.slane %v426, %v430
      %v433 = vadd.f32 %v425, %v431
      %v434 = vld [vmem:[%s6] sm:$0xff]
      %v435 = vld [vmem:[%s6 + $0x8] sm:$0xff]
      %v436 = vld [vmem:[%s6 + $0x10] sm:$0xff]
      %v437 = vld [vmem:[%s6 + $0x18] sm:$0xff]
      %v439 = vsel %vm374, %v404, 0
      %441 = vmatprep.subr.mxu0 0.0
      %442 = vmatpush1.msra.mxu0 %v434
      %443 = vmatprep.subr.mxu0 0.0
      %444 = vmatpush1.msra.mxu0 %v435
      %445 = vmatprep.subr.mxu0 0.0
      %446 = vmatpush1.msra.mxu0 %v436
      %447 = vmatprep.subr.mxu0 0.0
      %448 = vmatpush1.msra.mxu0 %v437
      %449 = vmatprep.subr.mxu0 0.0
      %450 = vmatpush1.msra.mxu0 0.0
      %451 = vmatprep.subr.mxu0 0.0
      %452 = vmatpush1.msra.mxu0 0.0
      %453 = vmatprep.subr.mxu0 0.0
      %454 = vmatpush1.msra.mxu0 0.0
      %455 = vmatprep.subr.mxu0 0.0
      %456 = vmatpush1.msra.mxu0 0.0
      %457 = vmatprep.subr.mxu0 0.0
      %458 = vmatpush1.msra.mxu0 0.0
      %459 = vmatprep.subr.mxu0 0.0
      %460 = vmatpush1.msra.mxu0 0.0
      %461 = vmatprep.subr.mxu0 0.0
      %462 = vmatpush1.msra.mxu0 0.0
      %463 = vmatprep.subr.mxu0 0.0
      %464 = vmatpush1.msra.mxu0 0.0
      %465 = vmatprep.subr.mxu0 0.0
      %466 = vmatpush1.msra.mxu0 0.0
      %467 = vmatprep.subr.mxu0 0.0
      %468 = vmatpush1.msra.mxu0 0.0
      %469 = vmatprep.subr.mxu0 0.0
      %470 = vmatpush1.msra.mxu0 0.0
      %471 = vmatprep.subr.mxu0 0.0
      %472 = vmatpush1.msra.mxu0 0.0
      %473 = vmatprep.subr.mxu0 0.0
      %474 = vmatpush1.msra.mxu0 0.0
      %475 = vmatprep.subr.mxu0 0.0
      %476 = vmatpush1.msra.mxu0 0.0
      %477 = vmatprep.subr.mxu0 0.0
      %478 = vmatpush1.msra.mxu0 0.0
      %479 = vmatprep.subr.mxu0 0.0
      %480 = vmatpush1.msra.mxu0 0.0
      %481 = vmatprep.subr.mxu0 0.0
      %482 = vmatpush1.msra.mxu0 0.0
      %483 = vmatprep.subr.mxu0 0.0
      %484 = vmatpush1.msra.mxu0 0.0
      %485 = vmatprep.subr.mxu0 0.0
      %486 = vmatpush1.msra.mxu0 0.0
      %487 = vmatprep.subr.mxu0 0.0
      %488 = vmatpush1.msra.mxu0 0.0
      %489 = vmatprep.subr.mxu0 0.0
      %490 = vmatpush1.msra.mxu0 0.0
      %491 = vmatprep.subr.mxu0 0.0
      %492 = vmatpush1.msra.mxu0 0.0
      %493 = vmatprep.subr.mxu0 0.0
      %494 = vmatpush1.msra.mxu0 0.0
      %495 = vmatprep.subr.mxu0 0.0
      %496 = vmatpush1.msra.mxu0 0.0
      %497 = vmatprep.subr.mxu0 0.0
      %498 = vmatpush1.msra.mxu0 0.0
      %499 = vmatprep.subr.mxu0 0.0
      %500 = vmatpush1.msra.mxu0 0.0
      %501 = vmatprep.subr.mxu0 0.0
      %502 = vmatpush1.msra.mxu0 0.0
      %503 = vmatprep.subr.mxu0 0.0
      %504 = vmatpush1.msra.mxu0 0.0
      %505 = vmatprep.mubr.f32.mxu0 0.0
      %506 = vmatmul.mubr.f32.gmra.mrb[0].mxu0 %v439
      %v507 = vpop.f32.mrb[0].mxu0
      %v508 = vadd.f32 0.0, %v507
      %v509 = vpop.f32.mrb[0].mxu0
      %510 = vdwg.mxu0
      %v511 = vld [vmem:[%s7] sm:$0xff]
      %v512 = vld [vmem:[%s7 + $0x8] sm:$0xff]
      %v513 = vld [vmem:[%s7 + $0x10] sm:$0xff]
      %v514 = vld [vmem:[%s7 + $0x18] sm:$0xff]
      %v516 = vsel %vm374, %v433, 0
      %518 = vmatprep.subr.mxu0 0.0
      %519 = vmatpush1.msra.mxu0 %v511
      %520 = vmatprep.subr.mxu0 0.0
      %521 = vmatpush1.msra.mxu0 %v512
      %522 = vmatprep.subr.mxu0 0.0
      %523 = vmatpush1.msra.mxu0 %v513
      %524 = vmatprep.subr.mxu0 0.0
      %525 = vmatpush1.msra.mxu0 %v514
      %526 = vmatprep.subr.mxu0 0.0
      %527 = vmatpush1.msra.mxu0 0.0
      %528 = vmatprep.subr.mxu0 0.0
      %529 = vmatpush1.msra.mxu0 0.0
      %530 = vmatprep.subr.mxu0 0.0
      %531 = vmatpush1.msra.mxu0 0.0
      %532 = vmatprep.subr.mxu0 0.0
      %533 = vmatpush1.msra.mxu0 0.0
      %534 = vmatprep.subr.mxu0 0.0
      %535 = vmatpush1.msra.mxu0 0.0
      %536 = vmatprep.subr.mxu0 0.0
      %537 = vmatpush1.msra.mxu0 0.0
      %538 = vmatprep.subr.mxu0 0.0
      %539 = vmatpush1.msra.mxu0 0.0
      %540 = vmatprep.subr.mxu0 0.0
      %541 = vmatpush1.msra.mxu0 0.0
      %542 = vmatprep.subr.mxu0 0.0
      %543 = vmatpush1.msra.mxu0 0.0
      %544 = vmatprep.subr.mxu0 0.0
      %545 = vmatpush1.msra.mxu0 0.0
      %546 = vmatprep.subr.mxu0 0.0
      %547 = vmatpush1.msra.mxu0 0.0
      %548 = vmatprep.subr.mxu0 0.0
      %549 = vmatpush1.msra.mxu0 0.0
      %550 = vmatprep.subr.mxu0 0.0
      %551 = vmatpush1.msra.mxu0 0.0
      %552 = vmatprep.subr.mxu0 0.0
      %553 = vmatpush1.msra.mxu0 0.0
      %554 = vmatprep.subr.mxu0 0.0
      %555 = vmatpush1.msra.mxu0 0.0
      %556 = vmatprep.subr.mxu0 0.0
      %557 = vmatpush1.msra.mxu0 0.0
      %558 = vmatprep.subr.mxu0 0.0
      %559 = vmatpush1.msra.mxu0 0.0
      %560 = vmatprep.subr.mxu0 0.0
      %561 = vmatpush1.msra.mxu0 0.0
      %562 = vmatprep.subr.mxu0 0.0
      %563 = vmatpush1.msra.mxu0 0.0
      %564 = vmatprep.subr.mxu0 0.0
      %565 = vmatpush1.msra.mxu0 0.0
      %566 = vmatprep.subr.mxu0 0.0
      %567 = vmatpush1.msra.mxu0 0.0
      %568 = vmatprep.subr.mxu0 0.0
      %569 = vmatpush1.msra.mxu0 0.0
      %570 = vmatprep.subr.mxu0 0.0
      %571 = vmatpush1.msra.mxu0 0.0
      %572 = vmatprep.subr.mxu0 0.0
      %573 = vmatpush1.msra.mxu0 0.0
      %574 = vmatprep.subr.mxu0 0.0
      %575 = vmatpush1.msra.mxu0 0.0
      %576 = vmatprep.subr.mxu0 0.0
      %577 = vmatpush1.msra.mxu0 0.0
      %578 = vmatprep.subr.mxu0 0.0
      %579 = vmatpush1.msra.mxu0 0.0
      %580 = vmatprep.subr.mxu0 0.0
      %581 = vmatpush1.msra.mxu0 0.0
      %582 = vmatprep.mubr.f32.mxu0 0.0
      %583 = vmatmul.mubr.f32.gmra.mrb[0].mxu0 %v516
      %v584 = vpop.f32.mrb[0].mxu0
      %v585 = vadd.f32 0.0, %v584
      %v586 = vpop.f32.mrb[0].mxu0
      %587 = vdwg.mxu0
      %s588 = scalar_lea.vmem %s7, 32
      %v589 = vld [vmem:[%s588] sm:$0xff]
      %v590 = vld [vmem:[%s588 + $0x8] sm:$0xff]
      %v591 = vld [vmem:[%s588 + $0x10] sm:$0xff]
      %v592 = vld [vmem:[%s588 + $0x18] sm:$0xff]
      %593 = vmatprep.subr.mxu0 0.0
      %594 = vmatpush1.msra.mxu0 %v589
      %595 = vmatprep.subr.mxu0 0.0
      %596 = vmatpush1.msra.mxu0 %v590
      %597 = vmatprep.subr.mxu0 0.0
      %598 = vmatpush1.msra.mxu0 %v591
      %599 = vmatprep.subr.mxu0 0.0
      %600 = vmatpush1.msra.mxu0 %v592
      %601 = vmatprep.subr.mxu0 0.0
      %602 = vmatpush1.msra.mxu0 0.0
      %603 = vmatprep.subr.mxu0 0.0
      %604 = vmatpush1.msra.mxu0 0.0
      %605 = vmatprep.subr.mxu0 0.0
      %606 = vmatpush1.msra.mxu0 0.0
      %607 = vmatprep.subr.mxu0 0.0
      %608 = vmatpush1.msra.mxu0 0.0
      %609 = vmatprep.subr.mxu0 0.0
      %610 = vmatpush1.msra.mxu0 0.0
      %611 = vmatprep.subr.mxu0 0.0
      %612 = vmatpush1.msra.mxu0 0.0
      %613 = vmatprep.subr.mxu0 0.0
      %614 = vmatpush1.msra.mxu0 0.0
      %615 = vmatprep.subr.mxu0 0.0
      %616 = vmatpush1.msra.mxu0 0.0
      %617 = vmatprep.subr.mxu0 0.0
      %618 = vmatpush1.msra.mxu0 0.0
      %619 = vmatprep.subr.mxu0 0.0
      %620 = vmatpush1.msra.mxu0 0.0
      %621 = vmatprep.subr.mxu0 0.0
      %622 = vmatpush1.msra.mxu0 0.0
      %623 = vmatprep.subr.mxu0 0.0
      %624 = vmatpush1.msra.mxu0 0.0
      %625 = vmatprep.subr.mxu0 0.0
      %626 = vmatpush1.msra.mxu0 0.0
      %627 = vmatprep.subr.mxu0 0.0
      %628 = vmatpush1.msra.mxu0 0.0
      %629 = vmatprep.subr.mxu0 0.0
      %630 = vmatpush1.msra.mxu0 0.0
      %631 = vmatprep.subr.mxu0 0.0
      %632 = vmatpush1.msra.mxu0 0.0
      %633 = vmatprep.subr.mxu0 0.0
      %634 = vmatpush1.msra.mxu0 0.0
      %635 = vmatprep.subr.mxu0 0.0
      %636 = vmatpush1.msra.mxu0 0.0
      %637 = vmatprep.subr.mxu0 0.0
      %638 = vmatpush1.msra.mxu0 0.0
      %639 = vmatprep.subr.mxu0 0.0
      %640 = vmatpush1.msra.mxu0 0.0
      %641 = vmatprep.subr.mxu0 0.0
      %642 = vmatpush1.msra.mxu0 0.0
      %643 = vmatprep.subr.mxu0 0.0
      %644 = vmatpush1.msra.mxu0 0.0
      %645 = vmatprep.subr.mxu0 0.0
      %646 = vmatpush1.msra.mxu0 0.0
      %647 = vmatprep.subr.mxu0 0.0
      %648 = vmatpush1.msra.mxu0 0.0
      %649 = vmatprep.subr.mxu0 0.0
      %650 = vmatpush1.msra.mxu0 0.0
      %651 = vmatprep.subr.mxu0 0.0
      %652 = vmatpush1.msra.mxu0 0.0
      %653 = vmatprep.subr.mxu0 0.0
      %654 = vmatpush1.msra.mxu0 0.0
      %655 = vmatprep.subr.mxu0 0.0
      %656 = vmatpush1.msra.mxu0 0.0
      %657 = vmatprep.mubr.f32.mxu0 0.0
      %658 = vmatmul.mubr.f32.gmra.mrb[0].mxu0 %v516
      %v659 = vpop.f32.mrb[0].mxu0
      %v660 = vadd.f32 0.0, %v659
      %v661 = vpop.f32.mrb[0].mxu0
      %662 = vdwg.mxu0
      %664 = vrot.lane.b32.xlu0 %v508, 120
      %v665 = vpop.permute.xlu0 %664
      %667 = vrot.lane.b32.xlu0 %v508, 112
      %v668 = vpop.permute.xlu0 %667
      %670 = vrot.lane.b32.xlu0 %v508, 104
      %v671 = vpop.permute.xlu0 %670
      %v673 = vcombine.low %v508, %v668
      %v674 = vcombine.high %v508, %v668
      %v676 = vunpack.c.l.s4 1983009808
      %v677 = vunpack.c.0.s8 %v676
      %v678 = vlaneseq
      %v679 = vshrl.u32 %v678, 7
      %v680 = vsub.s32 %v677, %v679
      %v681 = vrot.slane %v673, %v680
      %v683 = vunpack.c.l.s4 1983009808
      %v684 = vunpack.c.0.s8 %v683
      %v685 = vlaneseq
      %v686 = vshrl.u32 %v685, 7
      %v687 = vsub.s32 %v684, %v686
      %v688 = vrot.slane %v674, %v687
      %v689 = vcombine.low %v665, %v671
      %v690 = vcombine.high %v665, %v671
      %v692 = vunpack.c.l.s4 1983009808
      %v693 = vunpack.c.0.s8 %v692
      %v694 = vlaneseq
      %v695 = vshrl.u32 %v694, 7
      %v696 = vsub.s32 %v693, %v695
      %v697 = vrot.slane %v689, %v696
      %v699 = vunpack.c.l.s4 1983009808
      %v700 = vunpack.c.0.s8 %v699
      %v701 = vlaneseq
      %v702 = vshrl.u32 %v701, 7
      %v703 = vsub.s32 %v700, %v702
      %v704 = vrot.slane %v690, %v703
      %v705 = vcombine.low %v681, %v697
      %v706 = vcombine.high %v681, %v697
      %v708 = vunpack.c.l.s4 1934713408
      %v709 = vunpack.c.0.s8 %v708
      %v710 = vlaneseq
      %v711 = vshrl.u32 %v710, 7
      %v712 = vsub.s32 %v709, %v711
      %v713 = vrot.slane %v705, %v712
      %v715 = vunpack.c.l.s4 1934713408
      %v716 = vunpack.c.0.s8 %v715
      %v717 = vlaneseq
      %v718 = vshrl.u32 %v717, 7
      %v719 = vsub.s32 %v716, %v718
      %v720 = vrot.slane %v706, %v719
      %v721 = vcombine.low %v688, %v704
      %v722 = vcombine.high %v688, %v704
      %v724 = vunpack.c.l.s4 1934713408
      %v725 = vunpack.c.0.s8 %v724
      %v726 = vlaneseq
      %v727 = vshrl.u32 %v726, 7
      %v728 = vsub.s32 %v725, %v727
      %v729 = vrot.slane %v721, %v728
      %v731 = vunpack.c.l.s4 1934713408
      %v732 = vunpack.c.0.s8 %v731
      %v733 = vlaneseq
      %v734 = vshrl.u32 %v733, 7
      %v735 = vsub.s32 %v732, %v734
      %v736 = vrot.slane %v722, %v735
      %v737 = vcombine.high %v713, 0.0
      %v738 = vcombine.high %v720, 0.0
      %v739 = vcombine.high %v729, 0.0
      %v740 = vcombine.high %v736, 0.0
      %v741 = vcombine.low %v713, %v720
      %v743 = vunpack.c.l.s4 1983009808
      %v744 = vunpack.c.0.s8 %v743
      %v745 = vlaneseq
      %v746 = vshrl.u32 %v745, 7
      %v747 = vsub.s32 %v744, %v746
      %v748 = vrot.slane %v741, %v747
      %v749 = vcombine.low %v737, %v738
      %v751 = vunpack.c.l.s4 1983009808
      %v752 = vunpack.c.0.s8 %v751
      %v753 = vlaneseq
      %v754 = vshrl.u32 %v753, 7
      %v755 = vsub.s32 %v752, %v754
      %v756 = vrot.slane %v749, %v755
      %v757 = vcombine.low %v729, %v736
      %v759 = vunpack.c.l.s4 1983009808
      %v760 = vunpack.c.0.s8 %v759
      %v761 = vlaneseq
      %v762 = vshrl.u32 %v761, 7
      %v763 = vsub.s32 %v760, %v762
      %v764 = vrot.slane %v757, %v763
      %v765 = vcombine.low %v739, %v740
      %v767 = vunpack.c.l.s4 1983009808
      %v768 = vunpack.c.0.s8 %v767
      %v769 = vlaneseq
      %v770 = vshrl.u32 %v769, 7
      %v771 = vsub.s32 %v768, %v770
      %v772 = vrot.slane %v765, %v771
      %v773 = vcombine.low %v748, %v756
      %v774 = vcombine.high %v748, %v756
      %v776 = vunpack.c.l.s4 1934713408
      %v777 = vunpack.c.0.s8 %v776
      %v778 = vlaneseq
      %v779 = vshrl.u32 %v778, 7
      %v780 = vsub.s32 %v777, %v779
      %v781 = vrot.slane %v773, %v780
      %v783 = vunpack.c.l.s4 1934713408
      %v784 = vunpack.c.0.s8 %v783
      %v785 = vlaneseq
      %v786 = vshrl.u32 %v785, 7
      %v787 = vsub.s32 %v784, %v786
      %v788 = vrot.slane %v774, %v787
      %v789 = vcombine.low %v764, %v772
      %v790 = vcombine.high %v764, %v772
      %v792 = vunpack.c.l.s4 1934713408
      %v793 = vunpack.c.0.s8 %v792
      %v794 = vlaneseq
      %v795 = vshrl.u32 %v794, 7
      %v796 = vsub.s32 %v793, %v795
      %v797 = vrot.slane %v789, %v796
      %v799 = vunpack.c.l.s4 1934713408
      %v800 = vunpack.c.0.s8 %v799
      %v801 = vlaneseq
      %v802 = vshrl.u32 %v801, 7
      %v803 = vsub.s32 %v800, %v802
      %v804 = vrot.slane %v790, %v803
      %v805 = vcombine.low %v781, %v797
      %v806 = vcombine.high %v781, %v797
      %v807 = vcombine.low %v788, %v804
      %v808 = vcombine.high %v788, %v804
      %810 = vrot.lane.b32.xlu0 %v585, 120
      %v811 = vpop.permute.xlu0 %810
      %813 = vrot.lane.b32.xlu0 %v585, 112
      %v814 = vpop.permute.xlu0 %813
      %816 = vrot.lane.b32.xlu0 %v585, 104
      %v817 = vpop.permute.xlu0 %816
      %v819 = vcombine.low %v585, %v814
      %v820 = vcombine.high %v585, %v814
      %v822 = vunpack.c.l.s4 1983009808
      %v823 = vunpack.c.0.s8 %v822
      %v824 = vlaneseq
      %v825 = vshrl.u32 %v824, 7
      %v826 = vsub.s32 %v823, %v825
      %v827 = vrot.slane %v819, %v826
      %v829 = vunpack.c.l.s4 1983009808
      %v830 = vunpack.c.0.s8 %v829
      %v831 = vlaneseq
      %v832 = vshrl.u32 %v831, 7
      %v833 = vsub.s32 %v830, %v832
      %v834 = vrot.slane %v820, %v833
      %v835 = vcombine.low %v811, %v817
      %v836 = vcombine.high %v811, %v817
      %v838 = vunpack.c.l.s4 1983009808
      %v839 = vunpack.c.0.s8 %v838
      %v840 = vlaneseq
      %v841 = vshrl.u32 %v840, 7
      %v842 = vsub.s32 %v839, %v841
      %v843 = vrot.slane %v835, %v842
      %v845 = vunpack.c.l.s4 1983009808
      %v846 = vunpack.c.0.s8 %v845
      %v847 = vlaneseq
      %v848 = vshrl.u32 %v847, 7
      %v849 = vsub.s32 %v846, %v848
      %v850 = vrot.slane %v836, %v849
      %v851 = vcombine.low %v827, %v843
      %v852 = vcombine.high %v827, %v843
      %v854 = vunpack.c.l.s4 1934713408
      %v855 = vunpack.c.0.s8 %v854
      %v856 = vlaneseq
      %v857 = vshrl.u32 %v856, 7
      %v858 = vsub.s32 %v855, %v857
      %v859 = vrot.slane %v851, %v858
      %v861 = vunpack.c.l.s4 1934713408
      %v862 = vunpack.c.0.s8 %v861
      %v863 = vlaneseq
      %v864 = vshrl.u32 %v863, 7
      %v865 = vsub.s32 %v862, %v864
      %v866 = vrot.slane %v852, %v865
      %v867 = vcombine.low %v834, %v850
      %v868 = vcombine.high %v834, %v850
      %v870 = vunpack.c.l.s4 1934713408
      %v871 = vunpack.c.0.s8 %v870
      %v872 = vlaneseq
      %v873 = vshrl.u32 %v872, 7
      %v874 = vsub.s32 %v871, %v873
      %v875 = vrot.slane %v867, %v874
      %v877 = vunpack.c.l.s4 1934713408
      %v878 = vunpack.c.0.s8 %v877
      %v879 = vlaneseq
      %v880 = vshrl.u32 %v879, 7
      %v881 = vsub.s32 %v878, %v880
      %v882 = vrot.slane %v868, %v881
      %v883 = vcombine.high %v859, 0.0
      %v884 = vcombine.high %v866, 0.0
      %v885 = vcombine.high %v875, 0.0
      %v886 = vcombine.high %v882, 0.0
      %v887 = vcombine.low %v859, %v866
      %v889 = vunpack.c.l.s4 1983009808
      %v890 = vunpack.c.0.s8 %v889
      %v891 = vlaneseq
      %v892 = vshrl.u32 %v891, 7
      %v893 = vsub.s32 %v890, %v892
      %v894 = vrot.slane %v887, %v893
      %v895 = vcombine.low %v883, %v884
      %v897 = vunpack.c.l.s4 1983009808
      %v898 = vunpack.c.0.s8 %v897
      %v899 = vlaneseq
      %v900 = vshrl.u32 %v899, 7
      %v901 = vsub.s32 %v898, %v900
      %v902 = vrot.slane %v895, %v901
      %v903 = vcombine.low %v875, %v882
      %v905 = vunpack.c.l.s4 1983009808
      %v906 = vunpack.c.0.s8 %v905
      %v907 = vlaneseq
      %v908 = vshrl.u32 %v907, 7
      %v909 = vsub.s32 %v906, %v908
      %v910 = vrot.slane %v903, %v909
      %v911 = vcombine.low %v885, %v886
      %v913 = vunpack.c.l.s4 1983009808
      %v914 = vunpack.c.0.s8 %v913
      %v915 = vlaneseq
      %v916 = vshrl.u32 %v915, 7
      %v917 = vsub.s32 %v914, %v916
      %v918 = vrot.slane %v911, %v917
      %v919 = vcombine.low %v894, %v902
      %v920 = vcombine.high %v894, %v902
      %v922 = vunpack.c.l.s4 1934713408
      %v923 = vunpack.c.0.s8 %v922
      %v924 = vlaneseq
      %v925 = vshrl.u32 %v924, 7
      %v926 = vsub.s32 %v923, %v925
      %v927 = vrot.slane %v919, %v926
      %v929 = vunpack.c.l.s4 1934713408
      %v930 = vunpack.c.0.s8 %v929
      %v931 = vlaneseq
      %v932 = vshrl.u32 %v931, 7
      %v933 = vsub.s32 %v930, %v932
      %v934 = vrot.slane %v920, %v933
      %v935 = vcombine.low %v910, %v918
      %v936 = vcombine.high %v910, %v918
      %v938 = vunpack.c.l.s4 1934713408
      %v939 = vunpack.c.0.s8 %v938
      %v940 = vlaneseq
      %v941 = vshrl.u32 %v940, 7
      %v942 = vsub.s32 %v939, %v941
      %v943 = vrot.slane %v935, %v942
      %v945 = vunpack.c.l.s4 1934713408
      %v946 = vunpack.c.0.s8 %v945
      %v947 = vlaneseq
      %v948 = vshrl.u32 %v947, 7
      %v949 = vsub.s32 %v946, %v948
      %v950 = vrot.slane %v936, %v949
      %v951 = vcombine.low %v927, %v943
      %v952 = vcombine.high %v927, %v943
      %v953 = vcombine.low %v934, %v950
      %v954 = vcombine.high %v934, %v950
      %956 = vrot.lane.b32.xlu0 %v660, 120
      %v957 = vpop.permute.xlu0 %956
      %959 = vrot.lane.b32.xlu0 %v660, 112
      %v960 = vpop.permute.xlu0 %959
      %962 = vrot.lane.b32.xlu0 %v660, 104
      %v963 = vpop.permute.xlu0 %962
      %v965 = vcombine.low %v660, %v960
      %v966 = vcombine.high %v660, %v960
      %v968 = vunpack.c.l.s4 1983009808
      %v969 = vunpack.c.0.s8 %v968
      %v970 = vlaneseq
      %v971 = vshrl.u32 %v970, 7
      %v972 = vsub.s32 %v969, %v971
      %v973 = vrot.slane %v965, %v972
      %v975 = vunpack.c.l.s4 1983009808
      %v976 = vunpack.c.0.s8 %v975
      %v977 = vlaneseq
      %v978 = vshrl.u32 %v977, 7
      %v979 = vsub.s32 %v976, %v978
      %v980 = vrot.slane %v966, %v979
      %v981 = vcombine.low %v957, %v963
      %v982 = vcombine.high %v957, %v963
      %v984 = vunpack.c.l.s4 1983009808
      %v985 = vunpack.c.0.s8 %v984
      %v986 = vlaneseq
      %v987 = vshrl.u32 %v986, 7
      %v988 = vsub.s32 %v985, %v987
      %v989 = vrot.slane %v981, %v988
      %v991 = vunpack.c.l.s4 1983009808
      %v992 = vunpack.c.0.s8 %v991
      %v993 = vlaneseq
      %v994 = vshrl.u32 %v993, 7
      %v995 = vsub.s32 %v992, %v994
      %v996 = vrot.slane %v982, %v995
      %v997 = vcombine.low %v973, %v989
      %v998 = vcombine.high %v973, %v989
      %v1000 = vunpack.c.l.s4 1934713408
      %v1001 = vunpack.c.0.s8 %v1000
      %v1002 = vlaneseq
      %v1003 = vshrl.u32 %v1002, 7
      %v1004 = vsub.s32 %v1001, %v1003
      %v1005 = vrot.slane %v997, %v1004
      %v1007 = vunpack.c.l.s4 1934713408
      %v1008 = vunpack.c.0.s8 %v1007
      %v1009 = vlaneseq
      %v1010 = vshrl.u32 %v1009, 7
      %v1011 = vsub.s32 %v1008, %v1010
      %v1012 = vrot.slane %v998, %v1011
      %v1013 = vcombine.low %v980, %v996
      %v1014 = vcombine.high %v980, %v996
      %v1016 = vunpack.c.l.s4 1934713408
      %v1017 = vunpack.c.0.s8 %v1016
      %v1018 = vlaneseq
      %v1019 = vshrl.u32 %v1018, 7
      %v1020 = vsub.s32 %v1017, %v1019
      %v1021 = vrot.slane %v1013, %v1020
      %v1023 = vunpack.c.l.s4 1934713408
      %v1024 = vunpack.c.0.s8 %v1023
      %v1025 = vlaneseq
      %v1026 = vshrl.u32 %v1025, 7
      %v1027 = vsub.s32 %v1024, %v1026
      %v1028 = vrot.slane %v1014, %v1027
      %v1029 = vcombine.high %v1005, 0.0
      %v1030 = vcombine.high %v1012, 0.0
      %v1031 = vcombine.high %v1021, 0.0
      %v1032 = vcombine.high %v1028, 0.0
      %v1033 = vcombine.low %v1005, %v1012
      %v1035 = vunpack.c.l.s4 1983009808
      %v1036 = vunpack.c.0.s8 %v1035
      %v1037 = vlaneseq
      %v1038 = vshrl.u32 %v1037, 7
      %v1039 = vsub.s32 %v1036, %v1038
      %v1040 = vrot.slane %v1033, %v1039
      %v1041 = vcombine.low %v1029, %v1030
      %v1043 = vunpack.c.l.s4 1983009808
      %v1044 = vunpack.c.0.s8 %v1043
      %v1045 = vlaneseq
      %v1046 = vshrl.u32 %v1045, 7
      %v1047 = vsub.s32 %v1044, %v1046
      %v1048 = vrot.slane %v1041, %v1047
      %v1049 = vcombine.low %v1021, %v1028
      %v1051 = vunpack.c.l.s4 1983009808
      %v1052 = vunpack.c.0.s8 %v1051
      %v1053 = vlaneseq
      %v1054 = vshrl.u32 %v1053, 7
      %v1055 = vsub.s32 %v1052, %v1054
      %v1056 = vrot.slane %v1049, %v1055
      %v1057 = vcombine.low %v1031, %v1032
      %v1059 = vunpack.c.l.s4 1983009808
      %v1060 = vunpack.c.0.s8 %v1059
      %v1061 = vlaneseq
      %v1062 = vshrl.u32 %v1061, 7
      %v1063 = vsub.s32 %v1060, %v1062
      %v1064 = vrot.slane %v1057, %v1063
      %v1065 = vcombine.low %v1040, %v1048
      %v1066 = vcombine.high %v1040, %v1048
      %v1068 = vunpack.c.l.s4 1934713408
      %v1069 = vunpack.c.0.s8 %v1068
      %v1070 = vlaneseq
      %v1071 = vshrl.u32 %v1070, 7
      %v1072 = vsub.s32 %v1069, %v1071
      %v1073 = vrot.slane %v1065, %v1072
      %v1075 = vunpack.c.l.s4 1934713408
      %v1076 = vunpack.c.0.s8 %v1075
      %v1077 = vlaneseq
      %v1078 = vshrl.u32 %v1077, 7
      %v1079 = vsub.s32 %v1076, %v1078
      %v1080 = vrot.slane %v1066, %v1079
      %v1081 = vcombine.low %v1056, %v1064
      %v1082 = vcombine.high %v1056, %v1064
      %v1084 = vunpack.c.l.s4 1934713408
      %v1085 = vunpack.c.0.s8 %v1084
      %v1086 = vlaneseq
      %v1087 = vshrl.u32 %v1086, 7
      %v1088 = vsub.s32 %v1085, %v1087
      %v1089 = vrot.slane %v1081, %v1088
      %v1091 = vunpack.c.l.s4 1934713408
      %v1092 = vunpack.c.0.s8 %v1091
      %v1093 = vlaneseq
      %v1094 = vshrl.u32 %v1093, 7
      %v1095 = vsub.s32 %v1092, %v1094
      %v1096 = vrot.slane %v1082, %v1095
      %v1097 = vcombine.low %v1073, %v1089
      %v1098 = vcombine.high %v1073, %v1089
      %v1099 = vcombine.low %v1080, %v1096
      %v1100 = vcombine.high %v1080, %v1096
      %vm1101 = vcmask 64512
      %v1103 = vsel %vm1101, %v805, 0
      %v1106 = vsel %vm1101, %v951, 0
      %1108 = vmatprep.subr.mxu0 0.0
      %1109 = vmatpush1.xpose.msra.mxu0 %v1106
      %1110 = vmatprep.subr.mxu0 0.0
      %1111 = vmatpush1.xpose.msra.mxu0 0.0
      %1112 = vmatprep.subr.mxu0 0.0
      %1113 = vmatpush1.xpose.msra.mxu0 0.0
      %1114 = vmatprep.subr.mxu0 0.0
      %1115 = vmatpush1.xpose.msra.mxu0 0.0
      %1116 = vmatprep.subr.mxu0 0.0
      %1117 = vmatpush1.xpose.msra.mxu0 0.0
      %1118 = vmatprep.subr.mxu0 0.0
      %1119 = vmatpush1.xpose.msra.mxu0 0.0
      %1120 = vmatprep.subr.mxu0 0.0
      %1121 = vmatpush1.xpose.msra.mxu0 0.0
      %1122 = vmatprep.subr.mxu0 0.0
      %1123 = vmatpush1.xpose.msra.mxu0 0.0
      %1124 = vmatprep.subr.mxu0 0.0
      %1125 = vmatpush1.xpose.msra.mxu0 0.0
      %1126 = vmatprep.subr.mxu0 0.0
      %1127 = vmatpush1.xpose.msra.mxu0 0.0
      %1128 = vmatprep.subr.mxu0 0.0
      %1129 = vmatpush1.xpose.msra.mxu0 0.0
      %1130 = vmatprep.subr.mxu0 0.0
      %1131 = vmatpush1.xpose.msra.mxu0 0.0
      %1132 = vmatprep.subr.mxu0 0.0
      %1133 = vmatpush1.xpose.msra.mxu0 0.0
      %1134 = vmatprep.subr.mxu0 0.0
      %1135 = vmatpush1.xpose.msra.mxu0 0.0
      %1136 = vmatprep.subr.mxu0 0.0
      %1137 = vmatpush1.xpose.msra.mxu0 0.0
      %1138 = vmatprep.subr.mxu0 0.0
      %1139 = vmatpush1.xpose.msra.mxu0 0.0
      %1140 = vmatprep.subr.mxu0 0.0
      %1141 = vmatpush1.xpose.msra.mxu0 0.0
      %1142 = vmatprep.subr.mxu0 0.0
      %1143 = vmatpush1.xpose.msra.mxu0 0.0
      %1144 = vmatprep.subr.mxu0 0.0
      %1145 = vmatpush1.xpose.msra.mxu0 0.0
      %1146 = vmatprep.subr.mxu0 0.0
      %1147 = vmatpush1.xpose.msra.mxu0 0.0
      %1148 = vmatprep.subr.mxu0 0.0
      %1149 = vmatpush1.xpose.msra.mxu0 0.0
      %1150 = vmatprep.subr.mxu0 0.0
      %1151 = vmatpush1.xpose.msra.mxu0 0.0
      %1152 = vmatprep.subr.mxu0 0.0
      %1153 = vmatpush1.xpose.msra.mxu0 0.0
      %1154 = vmatprep.subr.mxu0 0.0
      %1155 = vmatpush1.xpose.msra.mxu0 0.0
      %1156 = vmatprep.subr.mxu0 0.0
      %1157 = vmatpush1.xpose.msra.mxu0 0.0
      %1158 = vmatprep.subr.mxu0 0.0
      %1159 = vmatpush1.xpose.msra.mxu0 0.0
      %1160 = vmatprep.subr.mxu0 0.0
      %1161 = vmatpush1.xpose.msra.mxu0 0.0
      %1162 = vmatprep.subr.mxu0 0.0
      %1163 = vmatpush1.xpose.msra.mxu0 0.0
      %1164 = vmatprep.subr.mxu0 0.0
      %1165 = vmatpush1.xpose.msra.mxu0 0.0
      %1166 = vmatprep.subr.mxu0 0.0
      %1167 = vmatpush1.xpose.msra.mxu0 0.0
      %1168 = vmatprep.subr.mxu0 0.0
      %1169 = vmatpush1.xpose.msra.mxu0 0.0
      %1170 = vmatprep.subr.mxu0 0.0
      %1171 = vmatpush1.xpose.msra.mxu0 0.0
      %1172 = vmatprep.mubr.f32.mxu0 0.0
      %1173 = vmatmul.mubr.f32.gmra.mrb[0].mxu0 %v1103
      %v1174 = vpop.f32.mrb[0].mxu0
      %v1175 = vadd.f32 0.0, %v1174
      %v1176 = vpop.f32.mrb[0].mxu0
      %1177 = vdwg.mxu0
      %v1179 = vsel %vm1101, %v806, 0
      %v1182 = vsel %vm1101, %v952, 0
      %1184 = vmatprep.subr.mxu0 0.0
      %1185 = vmatpush1.xpose.msra.mxu0 %v1182
      %1186 = vmatprep.subr.mxu0 0.0
      %1187 = vmatpush1.xpose.msra.mxu0 0.0
      %1188 = vmatprep.subr.mxu0 0.0
      %1189 = vmatpush1.xpose.msra.mxu0 0.0
      %1190 = vmatprep.subr.mxu0 0.0
      %1191 = vmatpush1.xpose.msra.mxu0 0.0
      %1192 = vmatprep.subr.mxu0 0.0
      %1193 = vmatpush1.xpose.msra.mxu0 0.0
      %1194 = vmatprep.subr.mxu0 0.0
      %1195 = vmatpush1.xpose.msra.mxu0 0.0
      %1196 = vmatprep.subr.mxu0 0.0
      %1197 = vmatpush1.xpose.msra.mxu0 0.0
      %1198 = vmatprep.subr.mxu0 0.0
      %1199 = vmatpush1.xpose.msra.mxu0 0.0
      %1200 = vmatprep.subr.mxu0 0.0
      %1201 = vmatpush1.xpose.msra.mxu0 0.0
      %1202 = vmatprep.subr.mxu0 0.0
      %1203 = vmatpush1.xpose.msra.mxu0 0.0
      %1204 = vmatprep.subr.mxu0 0.0
      %1205 = vmatpush1.xpose.msra.mxu0 0.0
      %1206 = vmatprep.subr.mxu0 0.0
      %1207 = vmatpush1.xpose.msra.mxu0 0.0
      %1208 = vmatprep.subr.mxu0 0.0
      %1209 = vmatpush1.xpose.msra.mxu0 0.0
      %1210 = vmatprep.subr.mxu0 0.0
      %1211 = vmatpush1.xpose.msra.mxu0 0.0
      %1212 = vmatprep.subr.mxu0 0.0
      %1213 = vmatpush1.xpose.msra.mxu0 0.0
      %1214 = vmatprep.subr.mxu0 0.0
      %1215 = vmatpush1.xpose.msra.mxu0 0.0
      %1216 = vmatprep.subr.mxu0 0.0
      %1217 = vmatpush1.xpose.msra.mxu0 0.0
      %1218 = vmatprep.subr.mxu0 0.0
      %1219 = vmatpush1.xpose.msra.mxu0 0.0
      %1220 = vmatprep.subr.mxu0 0.0
      %1221 = vmatpush1.xpose.msra.mxu0 0.0
      %1222 = vmatprep.subr.mxu0 0.0
      %1223 = vmatpush1.xpose.msra.mxu0 0.0
      %1224 = vmatprep.subr.mxu0 0.0
      %1225 = vmatpush1.xpose.msra.mxu0 0.0
      %1226 = vmatprep.subr.mxu0 0.0
      %1227 = vmatpush1.xpose.msra.mxu0 0.0
      %1228 = vmatprep.subr.mxu0 0.0
      %1229 = vmatpush1.xpose.msra.mxu0 0.0
      %1230 = vmatprep.subr.mxu0 0.0
      %1231 = vmatpush1.xpose.msra.mxu0 0.0
      %1232 = vmatprep.subr.mxu0 0.0
      %1233 = vmatpush1.xpose.msra.mxu0 0.0
      %1234 = vmatprep.subr.mxu0 0.0
      %1235 = vmatpush1.xpose.msra.mxu0 0.0
      %1236 = vmatprep.subr.mxu0 0.0
      %1237 = vmatpush1.xpose.msra.mxu0 0.0
      %1238 = vmatprep.subr.mxu0 0.0
      %1239 = vmatpush1.xpose.msra.mxu0 0.0
      %1240 = vmatprep.subr.mxu0 0.0
      %1241 = vmatpush1.xpose.msra.mxu0 0.0
      %1242 = vmatprep.subr.mxu0 0.0
      %1243 = vmatpush1.xpose.msra.mxu0 0.0
      %1244 = vmatprep.subr.mxu0 0.0
      %1245 = vmatpush1.xpose.msra.mxu0 0.0
      %1246 = vmatprep.subr.mxu0 0.0
      %1247 = vmatpush1.xpose.msra.mxu0 0.0
      %1248 = vmatprep.mubr.f32.mxu0 0.0
      %1249 = vmatmul.mubr.f32.gmra.mrb[0].mxu0 %v1179
      %v1250 = vpop.f32.mrb[0].mxu0
      %v1251 = vadd.f32 0.0, %v1250
      %v1252 = vpop.f32.mrb[0].mxu0
      %1253 = vdwg.mxu0
      %v1255 = vsel %vm1101, %v807, 0
      %v1258 = vsel %vm1101, %v953, 0
      %1260 = vmatprep.subr.mxu0 0.0
      %1261 = vmatpush1.xpose.msra.mxu0 %v1258
      %1262 = vmatprep.subr.mxu0 0.0
      %1263 = vmatpush1.xpose.msra.mxu0 0.0
      %1264 = vmatprep.subr.mxu0 0.0
      %1265 = vmatpush1.xpose.msra.mxu0 0.0
      %1266 = vmatprep.subr.mxu0 0.0
      %1267 = vmatpush1.xpose.msra.mxu0 0.0
      %1268 = vmatprep.subr.mxu0 0.0
      %1269 = vmatpush1.xpose.msra.mxu0 0.0
      %1270 = vmatprep.subr.mxu0 0.0
      %1271 = vmatpush1.xpose.msra.mxu0 0.0
      %1272 = vmatprep.subr.mxu0 0.0
      %1273 = vmatpush1.xpose.msra.mxu0 0.0
      %1274 = vmatprep.subr.mxu0 0.0
      %1275 = vmatpush1.xpose.msra.mxu0 0.0
      %1276 = vmatprep.subr.mxu0 0.0
      %1277 = vmatpush1.xpose.msra.mxu0 0.0
      %1278 = vmatprep.subr.mxu0 0.0
      %1279 = vmatpush1.xpose.msra.mxu0 0.0
      %1280 = vmatprep.subr.mxu0 0.0
      %1281 = vmatpush1.xpose.msra.mxu0 0.0
      %1282 = vmatprep.subr.mxu0 0.0
      %1283 = vmatpush1.xpose.msra.mxu0 0.0
      %1284 = vmatprep.subr.mxu0 0.0
      %1285 = vmatpush1.xpose.msra.mxu0 0.0
      %1286 = vmatprep.subr.mxu0 0.0
      %1287 = vmatpush1.xpose.msra.mxu0 0.0
      %1288 = vmatprep.subr.mxu0 0.0
      %1289 = vmatpush1.xpose.msra.mxu0 0.0
      %1290 = vmatprep.subr.mxu0 0.0
      %1291 = vmatpush1.xpose.msra.mxu0 0.0
      %1292 = vmatprep.subr.mxu0 0.0
      %1293 = vmatpush1.xpose.msra.mxu0 0.0
      %1294 = vmatprep.subr.mxu0 0.0
      %1295 = vmatpush1.xpose.msra.mxu0 0.0
      %1296 = vmatprep.subr.mxu0 0.0
      %1297 = vmatpush1.xpose.msra.mxu0 0.0
      %1298 = vmatprep.subr.mxu0 0.0
      %1299 = vmatpush1.xpose.msra.mxu0 0.0
      %1300 = vmatprep.subr.mxu0 0.0
      %1301 = vmatpush1.xpose.msra.mxu0 0.0
      %1302 = vmatprep.subr.mxu0 0.0
      %1303 = vmatpush1.xpose.msra.mxu0 0.0
      %1304 = vmatprep.subr.mxu0 0.0
      %1305 = vmatpush1.xpose.msra.mxu0 0.0
      %1306 = vmatprep.subr.mxu0 0.0
      %1307 = vmatpush1.xpose.msra.mxu0 0.0
      %1308 = vmatprep.subr.mxu0 0.0
      %1309 = vmatpush1.xpose.msra.mxu0 0.0
      %1310 = vmatprep.subr.mxu0 0.0
      %1311 = vmatpush1.xpose.msra.mxu0 0.0
      %1312 = vmatprep.subr.mxu0 0.0
      %1313 = vmatpush1.xpose.msra.mxu0 0.0
      %1314 = vmatprep.subr.mxu0 0.0
      %1315 = vmatpush1.xpose.msra.mxu0 0.0
      %1316 = vmatprep.subr.mxu0 0.0
      %1317 = vmatpush1.xpose.msra.mxu0 0.0
      %1318 = vmatprep.subr.mxu0 0.0
      %1319 = vmatpush1.xpose.msra.mxu0 0.0
      %1320 = vmatprep.subr.mxu0 0.0
      %1321 = vmatpush1.xpose.msra.mxu0 0.0
      %1322 = vmatprep.subr.mxu0 0.0
      %1323 = vmatpush1.xpose.msra.mxu0 0.0
      %1324 = vmatprep.mubr.f32.mxu0 0.0
      %1325 = vmatmul.mubr.f32.gmra.mrb[0].mxu0 %v1255
      %v1326 = vpop.f32.mrb[0].mxu0
      %v1327 = vadd.f32 0.0, %v1326
      %v1328 = vpop.f32.mrb[0].mxu0
      %1329 = vdwg.mxu0
      %v1331 = vsel %vm1101, %v808, 0
      %v1334 = vsel %vm1101, %v954, 0
      %1336 = vmatprep.subr.mxu0 0.0
      %1337 = vmatpush1.xpose.msra.mxu0 %v1334
      %1338 = vmatprep.subr.mxu0 0.0
      %1339 = vmatpush1.xpose.msra.mxu0 0.0
      %1340 = vmatprep.subr.mxu0 0.0
      %1341 = vmatpush1.xpose.msra.mxu0 0.0
      %1342 = vmatprep.subr.mxu0 0.0
      %1343 = vmatpush1.xpose.msra.mxu0 0.0
      %1344 = vmatprep.subr.mxu0 0.0
      %1345 = vmatpush1.xpose.msra.mxu0 0.0
      %1346 = vmatprep.subr.mxu0 0.0
      %1347 = vmatpush1.xpose.msra.mxu0 0.0
      %1348 = vmatprep.subr.mxu0 0.0
      %1349 = vmatpush1.xpose.msra.mxu0 0.0
      %1350 = vmatprep.subr.mxu0 0.0
      %1351 = vmatpush1.xpose.msra.mxu0 0.0
      %1352 = vmatprep.subr.mxu0 0.0
      %1353 = vmatpush1.xpose.msra.mxu0 0.0
      %1354 = vmatprep.subr.mxu0 0.0
      %1355 = vmatpush1.xpose.msra.mxu0 0.0
      %1356 = vmatprep.subr.mxu0 0.0
      %1357 = vmatpush1.xpose.msra.mxu0 0.0
      %1358 = vmatprep.subr.mxu0 0.0
      %1359 = vmatpush1.xpose.msra.mxu0 0.0
      %1360 = vmatprep.subr.mxu0 0.0
      %1361 = vmatpush1.xpose.msra.mxu0 0.0
      %1362 = vmatprep.subr.mxu0 0.0
      %1363 = vmatpush1.xpose.msra.mxu0 0.0
      %1364 = vmatprep.subr.mxu0 0.0
      %1365 = vmatpush1.xpose.msra.mxu0 0.0
      %1366 = vmatprep.subr.mxu0 0.0
      %1367 = vmatpush1.xpose.msra.mxu0 0.0
      %1368 = vmatprep.subr.mxu0 0.0
      %1369 = vmatpush1.xpose.msra.mxu0 0.0
      %1370 = vmatprep.subr.mxu0 0.0
      %1371 = vmatpush1.xpose.msra.mxu0 0.0
      %1372 = vmatprep.subr.mxu0 0.0
      %1373 = vmatpush1.xpose.msra.mxu0 0.0
      %1374 = vmatprep.subr.mxu0 0.0
      %1375 = vmatpush1.xpose.msra.mxu0 0.0
      %1376 = vmatprep.subr.mxu0 0.0
      %1377 = vmatpush1.xpose.msra.mxu0 0.0
      %1378 = vmatprep.subr.mxu0 0.0
      %1379 = vmatpush1.xpose.msra.mxu0 0.0
      %1380 = vmatprep.subr.mxu0 0.0
      %1381 = vmatpush1.xpose.msra.mxu0 0.0
      %1382 = vmatprep.subr.mxu0 0.0
      %1383 = vmatpush1.xpose.msra.mxu0 0.0
      %1384 = vmatprep.subr.mxu0 0.0
      %1385 = vmatpush1.xpose.msra.mxu0 0.0
      %1386 = vmatprep.subr.mxu0 0.0
      %1387 = vmatpush1.xpose.msra.mxu0 0.0
      %1388 = vmatprep.subr.mxu0 0.0
      %1389 = vmatpush1.xpose.msra.mxu0 0.0
      %1390 = vmatprep.subr.mxu0 0.0
      %1391 = vmatpush1.xpose.msra.mxu0 0.0
      %1392 = vmatprep.subr.mxu0 0.0
      %1393 = vmatpush1.xpose.msra.mxu0 0.0
      %1394 = vmatprep.subr.mxu0 0.0
      %1395 = vmatpush1.xpose.msra.mxu0 0.0
      %1396 = vmatprep.subr.mxu0 0.0
      %1397 = vmatpush1.xpose.msra.mxu0 0.0
      %1398 = vmatprep.subr.mxu0 0.0
      %1399 = vmatpush1.xpose.msra.mxu0 0.0
      %1400 = vmatprep.mubr.f32.mxu0 0.0
      %1401 = vmatmul.mubr.f32.gmra.mrb[0].mxu0 %v1331
      %v1402 = vpop.f32.mrb[0].mxu0
      %v1403 = vadd.f32 0.0, %v1402
      %v1404 = vpop.f32.mrb[0].mxu0
      %1405 = vdwg.mxu0
      %v1406 = vsel %vm1101, %v1175, -inf
      %1407 = vmax.xlane.f32.xlu0 %v1406
      %v1408 = vpop.xlane.xlu0 %1407
      %v1409 = vsel %vm1101, %v1251, -inf
      %1410 = vmax.xlane.f32.xlu0 %v1409
      %v1411 = vpop.xlane.xlu0 %1410
      %v1412 = vsel %vm1101, %v1327, -inf
      %1413 = vmax.xlane.f32.xlu0 %v1412
      %v1414 = vpop.xlane.xlu0 %1413
      %v1415 = vsel %vm1101, %v1403, -inf
      %1416 = vmax.xlane.f32.xlu0 %v1415
      %v1417 = vpop.xlane.xlu0 %1416
      %v1418 = vsub.f32 %v1175, %v1408
      %v1419 = vsub.f32 %v1251, %v1411
      %v1420 = vsub.f32 %v1327, %v1414
      %v1421 = vsub.f32 %v1403, %v1417
      %v1422 = vmul.f32 %v1418, 1.442695
      %v1423 = vpow.pop %v1422
      %v1424 = vmul.f32 %v1419, 1.442695
      %v1425 = vpow.pop %v1424
      %v1426 = vmul.f32 %v1420, 1.442695
      %v1427 = vpow.pop %v1426
      %v1428 = vmul.f32 %v1421, 1.442695
      %v1429 = vpow.pop %v1428
      %v1430 = vsel %vm1101, %v1423, 0.0
      %1431 = vadd.xlane.f32.xlu0 %v1430
      %v1432 = vpop.xlane.xlu0 %1431
      %v1433 = vsel %vm1101, %v1425, 0.0
      %1434 = vadd.xlane.f32.xlu0 %v1433
      %v1435 = vpop.xlane.xlu0 %1434
      %v1436 = vsel %vm1101, %v1427, 0.0
      %1437 = vadd.xlane.f32.xlu0 %v1436
      %v1438 = vpop.xlane.xlu0 %1437
      %v1439 = vsel %vm1101, %v1429, 0.0
      %1440 = vadd.xlane.f32.xlu0 %v1439
      %v1441 = vpop.xlane.xlu0 %1440
      %v1442 = vrcp.pop %v1432
      %v1443 = vrcp.pop %v1435
      %v1444 = vrcp.pop %v1438
      %v1445 = vrcp.pop %v1441
      %v1446 = vmul.f32 %v1423, %v1442
      %v1447 = vmul.f32 %v1425, %v1443
      %v1448 = vmul.f32 %v1427, %v1444
      %v1449 = vmul.f32 %v1429, %v1445
      %v1451 = vsel %vm1101, %v1446, 0
      %1453 = vmatprep.subr.mxu0 0.0
      %1454 = vmatpush1.msra.mxu0 %v1097
      %1455 = vmatprep.subr.mxu0 0.0
      %1456 = vmatpush1.msra.mxu0 0.0
      %1457 = vmatprep.subr.mxu0 0.0
      %1458 = vmatpush1.msra.mxu0 0.0
      %1459 = vmatprep.subr.mxu0 0.0
      %1460 = vmatpush1.msra.mxu0 0.0
      %1461 = vmatprep.subr.mxu0 0.0
      %1462 = vmatpush1.msra.mxu0 0.0
      %1463 = vmatprep.subr.mxu0 0.0
      %1464 = vmatpush1.msra.mxu0 0.0
      %1465 = vmatprep.subr.mxu0 0.0
      %1466 = vmatpush1.msra.mxu0 0.0
      %1467 = vmatprep.subr.mxu0 0.0
      %1468 = vmatpush1.msra.mxu0 0.0
      %1469 = vmatprep.subr.mxu0 0.0
      %1470 = vmatpush1.msra.mxu0 0.0
      %1471 = vmatprep.subr.mxu0 0.0
      %1472 = vmatpush1.msra.mxu0 0.0
      %1473 = vmatprep.subr.mxu0 0.0
      %1474 = vmatpush1.msra.mxu0 0.0
      %1475 = vmatprep.subr.mxu0 0.0
      %1476 = vmatpush1.msra.mxu0 0.0
      %1477 = vmatprep.subr.mxu0 0.0
      %1478 = vmatpush1.msra.mxu0 0.0
      %1479 = vmatprep.subr.mxu0 0.0
      %1480 = vmatpush1.msra.mxu0 0.0
      %1481 = vmatprep.subr.mxu0 0.0
      %1482 = vmatpush1.msra.mxu0 0.0
      %1483 = vmatprep.subr.mxu0 0.0
      %1484 = vmatpush1.msra.mxu0 0.0
      %1485 = vmatprep.subr.mxu0 0.0
      %1486 = vmatpush1.msra.mxu0 0.0
      %1487 = vmatprep.subr.mxu0 0.0
      %1488 = vmatpush1.msra.mxu0 0.0
      %1489 = vmatprep.subr.mxu0 0.0
      %1490 = vmatpush1.msra.mxu0 0.0
      %1491 = vmatprep.subr.mxu0 0.0
      %1492 = vmatpush1.msra.mxu0 0.0
      %1493 = vmatprep.subr.mxu0 0.0
      %1494 = vmatpush1.msra.mxu0 0.0
      %1495 = vmatprep.subr.mxu0 0.0
      %1496 = vmatpush1.msra.mxu0 0.0
      %1497 = vmatprep.subr.mxu0 0.0
      %1498 = vmatpush1.msra.mxu0 0.0
      %1499 = vmatprep.subr.mxu0 0.0
      %1500 = vmatpush1.msra.mxu0 0.0
      %1501 = vmatprep.subr.mxu0 0.0
      %1502 = vmatpush1.msra.mxu0 0.0
      %1503 = vmatprep.subr.mxu0 0.0
      %1504 = vmatpush1.msra.mxu0 0.0
      %1505 = vmatprep.subr.mxu0 0.0
      %1506 = vmatpush1.msra.mxu0 0.0
      %1507 = vmatprep.subr.mxu0 0.0
      %1508 = vmatpush1.msra.mxu0 0.0
      %1509 = vmatprep.subr.mxu0 0.0
      %1510 = vmatpush1.msra.mxu0 0.0
      %1511 = vmatprep.subr.mxu0 0.0
      %1512 = vmatpush1.msra.mxu0 0.0
      %1513 = vmatprep.subr.mxu0 0.0
      %1514 = vmatpush1.msra.mxu0 0.0
      %1515 = vmatprep.subr.mxu0 0.0
      %1516 = vmatpush1.msra.mxu0 0.0
      %1517 = vmatprep.mubr.f32.mxu0 0.0
      %1518 = vmatmul.mubr.f32.gmra.mrb[0].mxu0 %v1451
      %v1519 = vpop.f32.mrb[0].mxu0
      %v1520 = vadd.f32 0.0, %v1519
      %v1521 = vpop.f32.mrb[0].mxu0
      %1522 = vdwg.mxu0
      %v1524 = vsel %vm1101, %v1447, 0
      %1526 = vmatprep.subr.mxu0 0.0
      %1527 = vmatpush1.msra.mxu0 %v1098
      %1528 = vmatprep.subr.mxu0 0.0
      %1529 = vmatpush1.msra.mxu0 0.0
      %1530 = vmatprep.subr.mxu0 0.0
      %1531 = vmatpush1.msra.mxu0 0.0
      %1532 = vmatprep.subr.mxu0 0.0
      %1533 = vmatpush1.msra.mxu0 0.0
      %1534 = vmatprep.subr.mxu0 0.0
      %1535 = vmatpush1.msra.mxu0 0.0
      %1536 = vmatprep.subr.mxu0 0.0
      %1537 = vmatpush1.msra.mxu0 0.0
      %1538 = vmatprep.subr.mxu0 0.0
      %1539 = vmatpush1.msra.mxu0 0.0
      %1540 = vmatprep.subr.mxu0 0.0
      %1541 = vmatpush1.msra.mxu0 0.0
      %1542 = vmatprep.subr.mxu0 0.0
      %1543 = vmatpush1.msra.mxu0 0.0
      %1544 = vmatprep.subr.mxu0 0.0
      %1545 = vmatpush1.msra.mxu0 0.0
      %1546 = vmatprep.subr.mxu0 0.0
      %1547 = vmatpush1.msra.mxu0 0.0
      %1548 = vmatprep.subr.mxu0 0.0
      %1549 = vmatpush1.msra.mxu0 0.0
      %1550 = vmatprep.subr.mxu0 0.0
      %1551 = vmatpush1.msra.mxu0 0.0
      %1552 = vmatprep.subr.mxu0 0.0
      %1553 = vmatpush1.msra.mxu0 0.0
      %1554 = vmatprep.subr.mxu0 0.0
      %1555 = vmatpush1.msra.mxu0 0.0
      %1556 = vmatprep.subr.mxu0 0.0
      %1557 = vmatpush1.msra.mxu0 0.0
      %1558 = vmatprep.subr.mxu0 0.0
      %1559 = vmatpush1.msra.mxu0 0.0
      %1560 = vmatprep.subr.mxu0 0.0
      %1561 = vmatpush1.msra.mxu0 0.0
      %1562 = vmatprep.subr.mxu0 0.0
      %1563 = vmatpush1.msra.mxu0 0.0
      %1564 = vmatprep.subr.mxu0 0.0
      %1565 = vmatpush1.msra.mxu0 0.0
      %1566 = vmatprep.subr.mxu0 0.0
      %1567 = vmatpush1.msra.mxu0 0.0
      %1568 = vmatprep.subr.mxu0 0.0
      %1569 = vmatpush1.msra.mxu0 0.0
      %1570 = vmatprep.subr.mxu0 0.0
      %1571 = vmatpush1.msra.mxu0 0.0
      %1572 = vmatprep.subr.mxu0 0.0
      %1573 = vmatpush1.msra.mxu0 0.0
      %1574 = vmatprep.subr.mxu0 0.0
      %1575 = vmatpush1.msra.mxu0 0.0
      %1576 = vmatprep.subr.mxu0 0.0
      %1577 = vmatpush1.msra.mxu0 0.0
      %1578 = vmatprep.subr.mxu0 0.0
      %1579 = vmatpush1.msra.mxu0 0.0
      %1580 = vmatprep.subr.mxu0 0.0
      %1581 = vmatpush1.msra.mxu0 0.0
      %1582 = vmatprep.subr.mxu0 0.0
      %1583 = vmatpush1.msra.mxu0 0.0
      %1584 = vmatprep.subr.mxu0 0.0
      %1585 = vmatpush1.msra.mxu0 0.0
      %1586 = vmatprep.subr.mxu0 0.0
      %1587 = vmatpush1.msra.mxu0 0.0
      %1588 = vmatprep.subr.mxu0 0.0
      %1589 = vmatpush1.msra.mxu0 0.0
      %1590 = vmatprep.mubr.f32.mxu0 0.0
      %1591 = vmatmul.mubr.f32.gmra.mrb[0].mxu0 %v1524
      %v1592 = vpop.f32.mrb[0].mxu0
      %v1593 = vadd.f32 0.0, %v1592
      %v1594 = vpop.f32.mrb[0].mxu0
      %1595 = vdwg.mxu0
      %v1597 = vsel %vm1101, %v1448, 0
      %1599 = vmatprep.subr.mxu0 0.0
      %1600 = vmatpush1.msra.mxu0 %v1099
      %1601 = vmatprep.subr.mxu0 0.0
      %1602 = vmatpush1.msra.mxu0 0.0
      %1603 = vmatprep.subr.mxu0 0.0
      %1604 = vmatpush1.msra.mxu0 0.0
      %1605 = vmatprep.subr.mxu0 0.0
      %1606 = vmatpush1.msra.mxu0 0.0
      %1607 = vmatprep.subr.mxu0 0.0
      %1608 = vmatpush1.msra.mxu0 0.0
      %1609 = vmatprep.subr.mxu0 0.0
      %1610 = vmatpush1.msra.mxu0 0.0
      %1611 = vmatprep.subr.mxu0 0.0
      %1612 = vmatpush1.msra.mxu0 0.0
      %1613 = vmatprep.subr.mxu0 0.0
      %1614 = vmatpush1.msra.mxu0 0.0
      %1615 = vmatprep.subr.mxu0 0.0
      %1616 = vmatpush1.msra.mxu0 0.0
      %1617 = vmatprep.subr.mxu0 0.0
      %1618 = vmatpush1.msra.mxu0 0.0
      %1619 = vmatprep.subr.mxu0 0.0
      %1620 = vmatpush1.msra.mxu0 0.0
      %1621 = vmatprep.subr.mxu0 0.0
      %1622 = vmatpush1.msra.mxu0 0.0
      %1623 = vmatprep.subr.mxu0 0.0
      %1624 = vmatpush1.msra.mxu0 0.0
      %1625 = vmatprep.subr.mxu0 0.0
      %1626 = vmatpush1.msra.mxu0 0.0
      %1627 = vmatprep.subr.mxu0 0.0
      %1628 = vmatpush1.msra.mxu0 0.0
      %1629 = vmatprep.subr.mxu0 0.0
      %1630 = vmatpush1.msra.mxu0 0.0
      %1631 = vmatprep.subr.mxu0 0.0
      %1632 = vmatpush1.msra.mxu0 0.0
      %1633 = vmatprep.subr.mxu0 0.0
      %1634 = vmatpush1.msra.mxu0 0.0
      %1635 = vmatprep.subr.mxu0 0.0
      %1636 = vmatpush1.msra.mxu0 0.0
      %1637 = vmatprep.subr.mxu0 0.0
      %1638 = vmatpush1.msra.mxu0 0.0
      %1639 = vmatprep.subr.mxu0 0.0
      %1640 = vmatpush1.msra.mxu0 0.0
      %1641 = vmatprep.subr.mxu0 0.0
      %1642 = vmatpush1.msra.mxu0 0.0
      %1643 = vmatprep.subr.mxu0 0.0
      %1644 = vmatpush1.msra.mxu0 0.0
      %1645 = vmatprep.subr.mxu0 0.0
      %1646 = vmatpush1.msra.mxu0 0.0
      %1647 = vmatprep.subr.mxu0 0.0
      %1648 = vmatpush1.msra.mxu0 0.0
      %1649 = vmatprep.subr.mxu0 0.0
      %1650 = vmatpush1.msra.mxu0 0.0
      %1651 = vmatprep.subr.mxu0 0.0
      %1652 = vmatpush1.msra.mxu0 0.0
      %1653 = vmatprep.subr.mxu0 0.0
      %1654 = vmatpush1.msra.mxu0 0.0
      %1655 = vmatprep.subr.mxu0 0.0
      %1656 = vmatpush1.msra.mxu0 0.0
      %1657 = vmatprep.subr.mxu0 0.0
      %1658 = vmatpush1.msra.mxu0 0.0
      %1659 = vmatprep.subr.mxu0 0.0
      %1660 = vmatpush1.msra.mxu0 0.0
      %1661 = vmatprep.subr.mxu0 0.0
      %1662 = vmatpush1.msra.mxu0 0.0
      %1663 = vmatprep.mubr.f32.mxu0 0.0
      %1664 = vmatmul.mubr.f32.gmra.mrb[0].mxu0 %v1597
      %v1665 = vpop.f32.mrb[0].mxu0
      %v1666 = vadd.f32 0.0, %v1665
      %v1667 = vpop.f32.mrb[0].mxu0
      %1668 = vdwg.mxu0
      %v1670 = vsel %vm1101, %v1449, 0
      %1672 = vmatprep.subr.mxu0 0.0
      %1673 = vmatpush1.msra.mxu0 %v1100
      %1674 = vmatprep.subr.mxu0 0.0
      %1675 = vmatpush1.msra.mxu0 0.0
      %1676 = vmatprep.subr.mxu0 0.0
      %1677 = vmatpush1.msra.mxu0 0.0
      %1678 = vmatprep.subr.mxu0 0.0
      %1679 = vmatpush1.msra.mxu0 0.0
      %1680 = vmatprep.subr.mxu0 0.0
      %1681 = vmatpush1.msra.mxu0 0.0
      %1682 = vmatprep.subr.mxu0 0.0
      %1683 = vmatpush1.msra.mxu0 0.0
      %1684 = vmatprep.subr.mxu0 0.0
      %1685 = vmatpush1.msra.mxu0 0.0
      %1686 = vmatprep.subr.mxu0 0.0
      %1687 = vmatpush1.msra.mxu0 0.0
      %1688 = vmatprep.subr.mxu0 0.0
      %1689 = vmatpush1.msra.mxu0 0.0
      %1690 = vmatprep.subr.mxu0 0.0
      %1691 = vmatpush1.msra.mxu0 0.0
      %1692 = vmatprep.subr.mxu0 0.0
      %1693 = vmatpush1.msra.mxu0 0.0
      %1694 = vmatprep.subr.mxu0 0.0
      %1695 = vmatpush1.msra.mxu0 0.0
      %1696 = vmatprep.subr.mxu0 0.0
      %1697 = vmatpush1.msra.mxu0 0.0
      %1698 = vmatprep.subr.mxu0 0.0
      %1699 = vmatpush1.msra.mxu0 0.0
      %1700 = vmatprep.subr.mxu0 0.0
      %1701 = vmatpush1.msra.mxu0 0.0
      %1702 = vmatprep.subr.mxu0 0.0
      %1703 = vmatpush1.msra.mxu0 0.0
      %1704 = vmatprep.subr.mxu0 0.0
      %1705 = vmatpush1.msra.mxu0 0.0
      %1706 = vmatprep.subr.mxu0 0.0
      %1707 = vmatpush1.msra.mxu0 0.0
      %1708 = vmatprep.subr.mxu0 0.0
      %1709 = vmatpush1.msra.mxu0 0.0
      %1710 = vmatprep.subr.mxu0 0.0
      %1711 = vmatpush1.msra.mxu0 0.0
      %1712 = vmatprep.subr.mxu0 0.0
      %1713 = vmatpush1.msra.mxu0 0.0
      %1714 = vmatprep.subr.mxu0 0.0
      %1715 = vmatpush1.msra.mxu0 0.0
      %1716 = vmatprep.subr.mxu0 0.0
      %1717 = vmatpush1.msra.mxu0 0.0
      %1718 = vmatprep.subr.mxu0 0.0
      %1719 = vmatpush1.msra.mxu0 0.0
      %1720 = vmatprep.subr.mxu0 0.0
      %1721 = vmatpush1.msra.mxu0 0.0
      %1722 = vmatprep.subr.mxu0 0.0
      %1723 = vmatpush1.msra.mxu0 0.0
      %1724 = vmatprep.subr.mxu0 0.0
      %1725 = vmatpush1.msra.mxu0 0.0
      %1726 = vmatprep.subr.mxu0 0.0
      %1727 = vmatpush1.msra.mxu0 0.0
      %1728 = vmatprep.subr.mxu0 0.0
      %1729 = vmatpush1.msra.mxu0 0.0
      %1730 = vmatprep.subr.mxu0 0.0
      %1731 = vmatpush1.msra.mxu0 0.0
      %1732 = vmatprep.subr.mxu0 0.0
      %1733 = vmatpush1.msra.mxu0 0.0
      %1734 = vmatprep.subr.mxu0 0.0
      %1735 = vmatpush1.msra.mxu0 0.0
      %1736 = vmatprep.mubr.f32.mxu0 0.0
      %1737 = vmatmul.mubr.f32.gmra.mrb[0].mxu0 %v1670
      %v1738 = vpop.f32.mrb[0].mxu0
      %v1739 = vadd.f32 0.0, %v1738
      %v1740 = vpop.f32.mrb[0].mxu0
      %1741 = vdwg.mxu0
      %v1742 = vcombine.low %v1520, %v1666
      %v1743 = vcombine.high %v1520, %v1666
      %v1745 = vunpack.c.l.s4 1983009808
      %v1746 = vunpack.c.0.s8 %v1745
      %v1747 = vlaneseq
      %v1748 = vshrl.u32 %v1747, 7
      %v1749 = vsub.s32 %v1746, %v1748
      %v1750 = vrot.slane %v1742, %v1749
      %v1752 = vunpack.c.l.s4 1983009808
      %v1753 = vunpack.c.0.s8 %v1752
      %v1754 = vlaneseq
      %v1755 = vshrl.u32 %v1754, 7
      %v1756 = vsub.s32 %v1753, %v1755
      %v1757 = vrot.slane %v1743, %v1756
      %v1758 = vcombine.low %v1593, %v1739
      %v1759 = vcombine.high %v1593, %v1739
      %v1761 = vunpack.c.l.s4 1983009808
      %v1762 = vunpack.c.0.s8 %v1761
      %v1763 = vlaneseq
      %v1764 = vshrl.u32 %v1763, 7
      %v1765 = vsub.s32 %v1762, %v1764
      %v1766 = vrot.slane %v1758, %v1765
      %v1768 = vunpack.c.l.s4 1983009808
      %v1769 = vunpack.c.0.s8 %v1768
      %v1770 = vlaneseq
      %v1771 = vshrl.u32 %v1770, 7
      %v1772 = vsub.s32 %v1769, %v1771
      %v1773 = vrot.slane %v1759, %v1772
      %v1774 = vcombine.low %v1750, %v1766
      %v1775 = vcombine.high %v1750, %v1766
      %v1777 = vunpack.c.l.s4 1934713408
      %v1778 = vunpack.c.0.s8 %v1777
      %v1779 = vlaneseq
      %v1780 = vshrl.u32 %v1779, 7
      %v1781 = vsub.s32 %v1778, %v1780
      %v1782 = vrot.slane %v1774, %v1781
      %v1784 = vunpack.c.l.s4 1934713408
      %v1785 = vunpack.c.0.s8 %v1784
      %v1786 = vlaneseq
      %v1787 = vshrl.u32 %v1786, 7
      %v1788 = vsub.s32 %v1785, %v1787
      %v1789 = vrot.slane %v1775, %v1788
      %v1790 = vcombine.low %v1757, %v1773
      %v1791 = vcombine.high %v1757, %v1773
      %v1793 = vunpack.c.l.s4 1934713408
      %v1794 = vunpack.c.0.s8 %v1793
      %v1795 = vlaneseq
      %v1796 = vshrl.u32 %v1795, 7
      %v1797 = vsub.s32 %v1794, %v1796
      %v1798 = vrot.slane %v1790, %v1797
      %v1800 = vunpack.c.l.s4 1934713408
      %v1801 = vunpack.c.0.s8 %v1800
      %v1802 = vlaneseq
      %v1803 = vshrl.u32 %v1802, 7
      %v1804 = vsub.s32 %v1801, %v1803
      %v1805 = vrot.slane %v1791, %v1804
      %v1806 = vcombine.high %v1782, 0.0
      %v1807 = vcombine.high %v1789, 0.0
      %v1808 = vcombine.high %v1798, 0.0
      %v1809 = vcombine.high %v1805, 0.0
      %v1810 = vcombine.low %v1782, %v1789
      %v1812 = vunpack.c.l.s4 1983009808
      %v1813 = vunpack.c.0.s8 %v1812
      %v1814 = vlaneseq
      %v1815 = vshrl.u32 %v1814, 7
      %v1816 = vsub.s32 %v1813, %v1815
      %v1817 = vrot.slane %v1810, %v1816
      %v1818 = vcombine.low %v1806, %v1807
      %v1820 = vunpack.c.l.s4 1983009808
      %v1821 = vunpack.c.0.s8 %v1820
      %v1822 = vlaneseq
      %v1823 = vshrl.u32 %v1822, 7
      %v1824 = vsub.s32 %v1821, %v1823
      %v1825 = vrot.slane %v1818, %v1824
      %v1826 = vcombine.low %v1798, %v1805
      %v1828 = vunpack.c.l.s4 1983009808
      %v1829 = vunpack.c.0.s8 %v1828
      %v1830 = vlaneseq
      %v1831 = vshrl.u32 %v1830, 7
      %v1832 = vsub.s32 %v1829, %v1831
      %v1833 = vrot.slane %v1826, %v1832
      %v1834 = vcombine.low %v1808, %v1809
      %v1836 = vunpack.c.l.s4 1983009808
      %v1837 = vunpack.c.0.s8 %v1836
      %v1838 = vlaneseq
      %v1839 = vshrl.u32 %v1838, 7
      %v1840 = vsub.s32 %v1837, %v1839
      %v1841 = vrot.slane %v1834, %v1840
      %v1842 = vcombine.low %v1817, %v1825
      %v1843 = vcombine.high %v1817, %v1825
      %v1845 = vunpack.c.l.s4 1934713408
      %v1846 = vunpack.c.0.s8 %v1845
      %v1847 = vlaneseq
      %v1848 = vshrl.u32 %v1847, 7
      %v1849 = vsub.s32 %v1846, %v1848
      %v1850 = vrot.slane %v1842, %v1849
      %v1852 = vunpack.c.l.s4 1934713408
      %v1853 = vunpack.c.0.s8 %v1852
      %v1854 = vlaneseq
      %v1855 = vshrl.u32 %v1854, 7
      %v1856 = vsub.s32 %v1853, %v1855
      %v1857 = vrot.slane %v1843, %v1856
      %v1858 = vcombine.low %v1833, %v1841
      %v1859 = vcombine.high %v1833, %v1841
      %v1861 = vunpack.c.l.s4 1934713408
      %v1862 = vunpack.c.0.s8 %v1861
      %v1863 = vlaneseq
      %v1864 = vshrl.u32 %v1863, 7
      %v1865 = vsub.s32 %v1862, %v1864
      %v1866 = vrot.slane %v1858, %v1865
      %v1868 = vunpack.c.l.s4 1934713408
      %v1869 = vunpack.c.0.s8 %v1868
      %v1870 = vlaneseq
      %v1871 = vshrl.u32 %v1870, 7
      %v1872 = vsub.s32 %v1869, %v1871
      %v1873 = vrot.slane %v1859, %v1872
      %v1874 = vcombine.low %v1850, %v1866
      %v1875 = vcombine.high %v1850, %v1866
      %v1876 = vcombine.low %v1857, %v1873
      %v1877 = vcombine.high %v1857, %v1873
      %1879 = vrot.lane.b32.xlu0 %v1875, 8
      %v1880 = vpop.permute.xlu0 %1879
      %1883 = vrot.lane.b32.xlu0 %v1876, 16
      %v1884 = vpop.permute.xlu0 %1883
      %1887 = vrot.lane.b32.xlu0 %v1877, 24
      %v1888 = vpop.permute.xlu0 %1887
      %v1890 = vsel %vm1101, %v1874, %v1880
      %vm1891 = vcmask 130048
      %v1892 = vsel %vm1891, %v1890, %v1884
      %vm1893 = vcmask 195584
      %v1894 = vsel %vm1893, %v1892, %v1888
      %v1895 = vld [vmem:[%s8] sm:$0xff]
      %v1896 = vld [vmem:[%s8 + $0x8] sm:$0xff]
      %v1897 = vld [vmem:[%s8 + $0x10] sm:$0xff]
      %v1898 = vld [vmem:[%s8 + $0x18] sm:$0xff]
      %v1899 = vld [vmem:[%s9] sm:$0x1]
      %v1901 = vlaneseq
      %v1902 = vshrl.u32 %v1901, 7
      %v1903 = vsub.s32 0, %v1902
      %v1904 = vrot.slane %v1899, %v1903
      %v1907 = vsel %vm374, %v1894, 0
      %1909 = vmatprep.subr.mxu0 0.0
      %1910 = vmatpush1.msra.mxu0 %v1895
      %1911 = vmatprep.subr.mxu0 0.0
      %1912 = vmatpush1.msra.mxu0 %v1896
      %1913 = vmatprep.subr.mxu0 0.0
      %1914 = vmatpush1.msra.mxu0 %v1897
      %1915 = vmatprep.subr.mxu0 0.0
      %1916 = vmatpush1.msra.mxu0 %v1898
      %1917 = vmatprep.subr.mxu0 0.0
      %1918 = vmatpush1.msra.mxu0 0.0
      %1919 = vmatprep.subr.mxu0 0.0
      %1920 = vmatpush1.msra.mxu0 0.0
      %1921 = vmatprep.subr.mxu0 0.0
      %1922 = vmatpush1.msra.mxu0 0.0
      %1923 = vmatprep.subr.mxu0 0.0
      %1924 = vmatpush1.msra.mxu0 0.0
      %1925 = vmatprep.subr.mxu0 0.0
      %1926 = vmatpush1.msra.mxu0 0.0
      %1927 = vmatprep.subr.mxu0 0.0
      %1928 = vmatpush1.msra.mxu0 0.0
      %1929 = vmatprep.subr.mxu0 0.0
      %1930 = vmatpush1.msra.mxu0 0.0
      %1931 = vmatprep.subr.mxu0 0.0
      %1932 = vmatpush1.msra.mxu0 0.0
      %1933 = vmatprep.subr.mxu0 0.0
      %1934 = vmatpush1.msra.mxu0 0.0
      %1935 = vmatprep.subr.mxu0 0.0
      %1936 = vmatpush1.msra.mxu0 0.0
      %1937 = vmatprep.subr.mxu0 0.0
      %1938 = vmatpush1.msra.mxu0 0.0
      %1939 = vmatprep.subr.mxu0 0.0
      %1940 = vmatpush1.msra.mxu0 0.0
      %1941 = vmatprep.subr.mxu0 0.0
      %1942 = vmatpush1.msra.mxu0 0.0
      %1943 = vmatprep.subr.mxu0 0.0
      %1944 = vmatpush1.msra.mxu0 0.0
      %1945 = vmatprep.subr.mxu0 0.0
      %1946 = vmatpush1.msra.mxu0 0.0
      %1947 = vmatprep.subr.mxu0 0.0
      %1948 = vmatpush1.msra.mxu0 0.0
      %1949 = vmatprep.subr.mxu0 0.0
      %1950 = vmatpush1.msra.mxu0 0.0
      %1951 = vmatprep.subr.mxu0 0.0
      %1952 = vmatpush1.msra.mxu0 0.0
      %1953 = vmatprep.subr.mxu0 0.0
      %1954 = vmatpush1.msra.mxu0 0.0
      %1955 = vmatprep.subr.mxu0 0.0
      %1956 = vmatpush1.msra.mxu0 0.0
      %1957 = vmatprep.subr.mxu0 0.0
      %1958 = vmatpush1.msra.mxu0 0.0
      %1959 = vmatprep.subr.mxu0 0.0
      %1960 = vmatpush1.msra.mxu0 0.0
      %1961 = vmatprep.subr.mxu0 0.0
      %1962 = vmatpush1.msra.mxu0 0.0
      %1963 = vmatprep.subr.mxu0 0.0
      %1964 = vmatpush1.msra.mxu0 0.0
      %1965 = vmatprep.subr.mxu0 0.0
      %1966 = vmatpush1.msra.mxu0 0.0
      %1967 = vmatprep.subr.mxu0 0.0
      %1968 = vmatpush1.msra.mxu0 0.0
      %1969 = vmatprep.subr.mxu0 0.0
      %1970 = vmatpush1.msra.mxu0 0.0
      %1971 = vmatprep.subr.mxu0 0.0
      %1972 = vmatpush1.msra.mxu0 0.0
      %1973 = vmatprep.mubr.f32.mxu0 0.0
      %1974 = vmatmul.mubr.f32.gmra.mrb[0].mxu0 %v1907
      %v1975 = vpop.f32.mrb[0].mxu0
      %v1976 = vadd.f32 %v1904, %v1975
      %v1977 = vpop.f32.mrb[0].mxu0
      %1978 = vdwg.mxu0
      %v1979 = vadd.f32 %v1976, %v372
      %1980 = vst.msk [vmem:[%s371] sm:$0xff] %vm374, %v1979
      %p1981 = scmp.lt.s32.totalorder %s21, 1
      %s1982 = scalar_select %p1981, %s21, 1
      %s1983 = smul.addr %s1982, 8
      %s1984 = scalar_lea.vmem %s10, %s1983
      // Predicated region
      $region61: #{cross_transformer.10} parent=59 // pred_check
        %p1985 = pneg %p259
      $region62: #{cross_transformer.10} parent=59 // pred_check_branch
        %1987 = sbr.rel (%p1985) target = $region64
      $region63: #{cross_transformer.10} parent=59 // pred_region
        _
      $region64: #{cross_transformer.10} parent=59 // pred_fallthru
        _
    $region60: #{cross_transformer.10} parent=5 // pred_fallthru
      _
    %p1988 = scmp.le.s32.totalorder 2, %s16
    // Predicated region
    $region65: #{cross_transformer.10} parent=5 // pred_check
      %p1989 = pneg %p1988
    $region66: #{cross_transformer.10} parent=5 // pred_check_branch
      %1991 = sbr.rel (%p1989) target = $region68
    $region67: #{cross_transformer.10} parent=5 // pred_region
      %s1992 = ssub.s32 %s16, 2
      // Predicated region
      $region69: #{cross_transformer.10} parent=67 // pred_check
        %p1993 = pneg %p265
      $region70: #{cross_transformer.10} parent=67 // pred_check_branch
        %1995 = sbr.rel (%p1993) target = $region72
      $region71: #{cross_transformer.10} parent=67 // pred_region
        %p1996 = scmp.lt.s32.totalorder %s22, 1
        %s1997 = scalar_select %p1996, %s22, 1
        %s1998 = smul.addr %s1997, 8
        %s1999 = scalar_lea.vmem %s10, %s1998
      $region72: #{cross_transformer.10} parent=67 // pred_fallthru
        _
    $region68: #{cross_transformer.10} parent=5 // pred_fallthru
      _
  $region6: #{cross_transformer.10} parent=0 // loop_footer
    %s20 = sadd.s32 1, %s16
  $region7: #{cross_transformer.10} parent=0 // loop_footer_branch
    %15 = sbr.rel target = $region3
  $region8: #{cross_transformer.10} parent=0 // loop_exit
    _

</llo_original>
